<compile_context>
chip_gen: v7x
topology: tpu7x:2x2x1
jax: 0.10.0
libtpu: 0.0.40
codegen_flags: <defaults>
</compile_context>

<pallas_src>
import jax
import jax.numpy as jnp
from jax.experimental import pallas as pl
from jax.experimental.pallas import tpu as pltpu

KH, KW = 3, 3  # kernel spatial size


def relu_conv2d_kernel(x_ref, w_ref, o_ref, lhs_ref):
    # x_ref:   [H+2, W+2, Cin]     bf16, ReLU already applied, zero-padded, resident
    # w_ref:   [KW*Cin, KH*Cout]   weights: (kw,ci) on K, (kh,co) on N (bf16), resident
    # o_ref:   [TH, W, Cout]       output row tile (f32)
    # lhs_ref: [(TH+2)*W, KW*Cin]  kw-im2col slab scratch (bf16)
    TH, W, Cout = o_ref.shape
    Cin = x_ref.shape[-1]
    row0 = pl.program_id(0) * TH

    # Build the kw-im2col slab once per tile:
    #   lhs[h'*W + w, kw*Cin + ci] = x_pad[row0 + h', w + kw, ci]
    # The bf16 window is widened to f32 before the [TH+2,W]->[(TH+2)*W] collapse
    # so the reshape is a pure retiling (W % 8 == 0) instead of a packed-bf16
    # relayout (W % 16 != 0); the converts ride the otherwise-idle VALU slots.
    for kw in range(KW):
        xsl = x_ref[pl.ds(row0, TH + 2), kw:kw + W, :].astype(jnp.float32)
        lhs_ref[:, kw * Cin:(kw + 1) * Cin] = (
            xsl.reshape((TH + 2) * W, Cin).astype(jnp.bfloat16))

    # One MXU matmul per tile (K = 3*Cin, N = 3*Cout carries the kh taps),
    # bf16 operands with f32 accumulation.
    p = jnp.dot(lhs_ref[...], w_ref[...], preferred_element_type=jnp.float32)
    p = p.reshape(TH + 2, W, KH * Cout)                      # free: W % 8 == 0

    # Recombine the kh taps: shifted slices along the cheap outer dim and
    # lane-tile-aligned slices along channels; two VPU adds total.
    acc = (p[0:TH, :, 0:Cout]
           + p[1:TH + 1, :, Cout:2 * Cout]
           + p[2:TH + 2, :, 2 * Cout:3 * Cout])
    o_ref[...] = acc.astype(o_ref.dtype)


def _pick_row_tile(H):
    # Prefer >=4 grid steps (pipelined writeback, 2 steps/core on v7x) while
    # keeping the (TH+2)/TH halo inflation modest.
    for t in (14, 16, 8, 28, 7, 4, 2, 1):
        if H % t == 0:
            return t
    return H


def relu_conv2d(x_nchw, weight_oihw, row_tile=None):
    """x_nchw: [1, Cin, H, W], weight_oihw: [Cout, Cin, 3, 3] -> [1, Cout, H, W]."""
    n, cin, H, W = x_nchw.shape
    assert n == 1, "kernel written for batch=1 (as in the reference module)"
    cout, cin2, kh, kw = weight_oihw.shape
    assert (kh, kw) == (KH, KW) and cin2 == cin
    assert W % 8 == 0, "free in-kernel reshape relies on W % 8 == 0"
    TH = row_tile if row_tile is not None else _pick_row_tile(H)
    assert H % TH == 0

    # ReLU -> bf16 -> NCHW->HWC -> zero-pad, fused by XLA into one layout pass.
    # bf16 rounding commutes with ReLU, so numerics match relu-then-cast.
    x_hwc = jnp.transpose(jnp.maximum(x_nchw[0], 0.0).astype(jnp.bfloat16),
                          (1, 2, 0))                          # [H, W, Cin]
    x_pad = jnp.pad(x_hwc, ((1, 1), (1, 1), (0, 0)))          # [H+2, W+2, Cin]

    # OIHW -> [kw, ci, kh, co] -> [KW*Cin, KH*Cout], bf16 for the MXU.
    w2 = jnp.transpose(weight_oihw, (3, 1, 2, 0)).reshape(
        KW * cin, KH * cout).astype(jnp.bfloat16)

    flops = 2 * H * W * cout * cin * KH * KW
    bytes_accessed = x_pad.size * 2 + w2.size * 2 + H * W * cout * 4

    out_hwc = pl.pallas_call(
        relu_conv2d_kernel,
        out_shape=jax.ShapeDtypeStruct((H, W, cout), jnp.float32),
        grid=(H // TH,),
        in_specs=[
            pl.BlockSpec((H + 2, W + 2, cin), lambda i: (0, 0, 0)),  # resident
            pl.BlockSpec((KW * cin, KH * cout), lambda i: (0, 0)),   # resident
        ],
        out_specs=pl.BlockSpec((TH, W, cout), lambda i: (i, 0, 0)),
        scratch_shapes=[pltpu.VMEM(((TH + 2) * W, KW * cin), jnp.bfloat16)],
        compiler_params=pltpu.CompilerParams(
            dimension_semantics=("parallel",)),
        cost_estimate=pl.CostEstimate(
            flops=flops, transcendentals=0, bytes_accessed=bytes_accessed),
    )(x_pad, w2)

    # TODO(synk): the final HWC->NCHW transpose stays as one wrapper XLA op;
    # producing NCHW in-kernel would turn the lane-dense 128-wide stores into
    # masked 56-wide stores plus an in-kernel transpose and measures worse.
    return jnp.transpose(out_hwc, (2, 0, 1))[None].astype(x_nchw.dtype)


if __name__ == "__main__":
    key = jax.random.PRNGKey(0)
    k_x, k_w = jax.random.split(key)

    CIN, COUT = 128, 128      # fixed by the module definition
    H = W = 56                # matches the module's forward input [1, 128, 56, 56]

    x = jax.random.normal(k_x, (1, CIN, H, W), dtype=jnp.float32)
    fan_in = CIN * KH * KW
    weight = jax.random.normal(k_w, (COUT, CIN, KH, KW), dtype=jnp.float32) * (
        (2.0 / fan_in) ** 0.5)

    out = jax.block_until_ready(jax.jit(relu_conv2d)(x, weight))
    assert out.shape == (1, COUT, H, W)

    # Tight check against a reference with the same bf16 operand rounding
    # (f32 accumulation) as the kernel's MXU matmul.
    x_b = jnp.maximum(x, 0.0).astype(jnp.bfloat16).astype(jnp.float32)
    w_b = weight.astype(jnp.bfloat16).astype(jnp.float32)
    ref_b = jax.lax.conv_general_dilated(
        x_b, w_b, window_strides=(1, 1), padding=((1, 1), (1, 1)),
        dimension_numbers=("NCHW", "OIHW", "NCHW"),
        precision=jax.lax.Precision.HIGHEST)
    assert jnp.allclose(out, ref_b, atol=1e-3, rtol=1e-3), \
        "mismatch vs bf16-rounded reference"

    # Loose sanity check against the full-f32 reference (bf16 operand rounding
    # contributes ~0.5% relative error over this K=1152 reduction).
    ref_f32 = jax.lax.conv_general_dilated(
        jnp.maximum(x, 0.0), weight, window_strides=(1, 1),
        padding=((1, 1), (1, 1)),
        dimension_numbers=("NCHW", "OIHW", "NCHW"),
        precision=jax.lax.Precision.HIGHEST)
    assert jnp.allclose(out, ref_f32, atol=5e-2, rtol=5e-2), \
        "mismatch vs f32 reference"

    print("KERNEL_OK")
</pallas_src>

<mosaic_0001>
module attributes {stable_mosaic.version = 11 : i64} {
  func.func @relu_conv2d_kernel(%arg0: i32, %arg1: memref<58x58x128xbf16, #tpu.memory_space<vmem>>, %arg2: memref<384x384xbf16, #tpu.memory_space<vmem>>, %arg3: memref<14x56x128xf32, #tpu.memory_space<vmem>>, %arg4: memref<896x384xbf16, #tpu.memory_space<vmem>>) attributes {dimension_semantics = [#tpu.dimension_semantics<parallel>], iteration_bounds = array<i64: 4>, scalar_prefetch = 0 : i64, scratch_operands = 1 : i64, tpu.core_type = #tpu.core_type<tc>, window_params = [{pipeline_mode = #tpu.pipeline_mode<synchronous>, transform_indices = @transform_0, window_bounds = array<i64: 58, 58, 128>}, {pipeline_mode = #tpu.pipeline_mode<synchronous>, transform_indices = @transform_1, window_bounds = array<i64: 384, 384>}, {transform_indices = @transform_2, window_bounds = array<i64: 14, 56, 128>}]} {
    %c14_i32 = arith.constant 14 : i32
    %0 = arith.muli %arg0, %c14_i32 : i32
    %1 = arith.index_cast %0 : i32 to index
    %c0 = arith.constant 0 : index
    %c0_0 = arith.constant 0 : index
    %2 = vector.load %arg1[%1, %c0, %c0_0] : memref<58x58x128xbf16, #tpu.memory_space<vmem>>, vector<16x56x128xbf16>
    %3 = arith.extf %2 : vector<16x56x128xbf16> to vector<16x56x128xf32>
    %4 = vector.shape_cast %3 : vector<16x56x128xf32> to vector<896x128xf32>
    %5 = arith.truncf %4 : vector<896x128xf32> to vector<896x128xbf16>
    %c0_1 = arith.constant 0 : index
    %c0_2 = arith.constant 0 : index
    %6 = vector.load %arg4[%c0_1, %c0_2] : memref<896x384xbf16, #tpu.memory_space<vmem>>, vector<896x128xbf16>
    tpu.vector_store %arg4[%c0_1, %c0_2], %5 {strides = array<i32>} : memref<896x384xbf16, #tpu.memory_space<vmem>>, vector<896x128xbf16>,
    %7 = arith.index_cast %0 : i32 to index
    %c1 = arith.constant 1 : index
    %c0_3 = arith.constant 0 : index
    %8 = vector.load %arg1[%7, %c1, %c0_3] : memref<58x58x128xbf16, #tpu.memory_space<vmem>>, vector<16x56x128xbf16>
    %9 = arith.extf %8 : vector<16x56x128xbf16> to vector<16x56x128xf32>
    %10 = vector.shape_cast %9 : vector<16x56x128xf32> to vector<896x128xf32>
    %11 = arith.truncf %10 : vector<896x128xf32> to vector<896x128xbf16>
    %c0_4 = arith.constant 0 : index
    %c128 = arith.constant 128 : index
    %12 = vector.load %arg4[%c0_4, %c128] : memref<896x384xbf16, #tpu.memory_space<vmem>>, vector<896x128xbf16>
    tpu.vector_store %arg4[%c0_4, %c128], %11 {strides = array<i32>} : memref<896x384xbf16, #tpu.memory_space<vmem>>, vector<896x128xbf16>,
    %13 = arith.index_cast %0 : i32 to index
    %c2 = arith.constant 2 : index
    %c0_5 = arith.constant 0 : index
    %14 = vector.load %arg1[%13, %c2, %c0_5] : memref<58x58x128xbf16, #tpu.memory_space<vmem>>, vector<16x56x128xbf16>
    %15 = arith.extf %14 : vector<16x56x128xbf16> to vector<16x56x128xf32>
    %16 = vector.shape_cast %15 : vector<16x56x128xf32> to vector<896x128xf32>
    %17 = arith.truncf %16 : vector<896x128xf32> to vector<896x128xbf16>
    %c0_6 = arith.constant 0 : index
    %c256 = arith.constant 256 : index
    %18 = vector.load %arg4[%c0_6, %c256] : memref<896x384xbf16, #tpu.memory_space<vmem>>, vector<896x128xbf16>
    tpu.vector_store %arg4[%c0_6, %c256], %17 {strides = array<i32>} : memref<896x384xbf16, #tpu.memory_space<vmem>>, vector<896x128xbf16>,
    %c0_7 = arith.constant 0 : index
    %c0_8 = arith.constant 0 : index
    %19 = vector.load %arg4[%c0_7, %c0_8] : memref<896x384xbf16, #tpu.memory_space<vmem>>, vector<896x384xbf16>
    %c0_9 = arith.constant 0 : index
    %c0_10 = arith.constant 0 : index
    %20 = vector.load %arg2[%c0_9, %c0_10] : memref<384x384xbf16, #tpu.memory_space<vmem>>, vector<384x384xbf16>
    %cst = arith.constant dense<0.000000e+00> : vector<896x384xf32>
    %21 = tpu.matmul %19, %20, %cst {dimension_numbers = #tpu.dot_dimension_numbers<[1], [0], [0], [1], [0, 0, 1, 1], [], []>} : vector<896x384xbf16>, vector<384x384xbf16>, vector<896x384xf32> -> vector<896x384xf32>
    %22 = vector.shape_cast %21 : vector<896x384xf32> to vector<16x56x384xf32>
    %23 = vector.extract_strided_slice %22 {offsets = [0, 0, 0], sizes = [14, 56, 128], strides = [1, 1, 1]} : vector<16x56x384xf32> to vector<14x56x128xf32>
    %24 = vector.extract_strided_slice %22 {offsets = [1, 0, 128], sizes = [14, 56, 128], strides = [1, 1, 1]} : vector<16x56x384xf32> to vector<14x56x128xf32>
    %25 = arith.addf %23, %24 : vector<14x56x128xf32>
    %26 = vector.extract_strided_slice %22 {offsets = [2, 0, 256], sizes = [14, 56, 128], strides = [1, 1, 1]} : vector<16x56x384xf32> to vector<14x56x128xf32>
    %27 = arith.addf %25, %26 : vector<14x56x128xf32>
    %c0_11 = arith.constant 0 : index
    %c0_12 = arith.constant 0 : index
    %c0_13 = arith.constant 0 : index
    %28 = vector.load %arg3[%c0_11, %c0_12, %c0_13] : memref<14x56x128xf32, #tpu.memory_space<vmem>>, vector<14x56x128xf32>
    tpu.vector_store %arg3[%c0_11, %c0_12, %c0_13], %27 {strides = array<i32>} : memref<14x56x128xf32, #tpu.memory_space<vmem>>, vector<14x56x128xf32>,
    return
  }
  func.func @transform_0(%arg0: i32) -> (i32, i32, i32) {
    %c0_i32 = arith.constant 0 : i32
    %c0_i32_0 = arith.constant 0 : i32
    %c0_i32_1 = arith.constant 0 : i32
    %c0_i32_2 = arith.constant 0 : i32
    return %c0_i32, %c0_i32_0, %c0_i32_1 : i32, i32, i32
  }
  func.func @transform_1(%arg0: i32) -> (i32, i32) {
    %c0_i32 = arith.constant 0 : i32
    %c0_i32_0 = arith.constant 0 : i32
    %c0_i32_1 = arith.constant 0 : i32
    return %c0_i32, %c0_i32_0 : i32, i32
  }
  func.func @transform_2(%arg0: i32) -> (i32, i32, i32) {
    %c0_i32 = arith.constant 0 : i32
    %c0_i32_0 = arith.constant 0 : i32
    %c0_i32_1 = arith.constant 0 : i32
    return %arg0, %c0_i32, %c0_i32_0 : i32, i32, i32
  }
}

</mosaic_0001>

<llo_original>
// kernel: relu_conv2d.1
$region0: #{relu_conv2d.1}
  #allocation0 [shape = 'u32[]', space=smem, size = 0x4, offset = 0x4, fixed_abs, tag = 'smem constant byte address 0x4 - core index']
  #allocation1 [shape = 'u32[144,128]{1,0:T(1,128)}', space=vmem, size = 0x12000, scoped, tag = 'internal scratch']
  #allocation2 [shape = 'bf16[896,384]{1,0:T(16,128)(2,1)}', space=vmem, size = 0xa8000, scoped, tag = 'scratch operand']
  %s0 = inlined_call_operand.vmem [shape: bf16[58,58,128], index: 0, kind: input, shape index: {}]
  %s1 = inlined_call_operand.vmem [shape: bf16[384,384], index: 1, kind: input, shape index: {}]
  %s2 = inlined_call_operand.hbm [shape: f32[56,56,128], index: 2, kind: output, shape index: {}]
  %s3 = sld [smem:[#allocation0]]
  $region41: #{relu_conv2d.1} parent=0
    _
  %s5 = ssub.s32 1, %s3
  %s6 = scalar_select 0, %s5, %s3
  $region1: #{relu_conv2d.1} parent=0
    #allocation3 [shape = 'u8[802816]{0}', space=vmem, size = 0xc4000, scoped, tag = 'output window, operand 0']
    #allocation4 [shape = 's32[2]{0}', space=sflag, size = 0x8, scoped, tag = 'scoped memory for relu_conv2d.1']
    %7 = vsyncpa [#allocation4], 0
    %s8 = scalar_lea.sflag [#allocation4], 1
    %9 = vsyncpa %s8, 0
    loop: start=0, step=1, limit=6
    $region2: #{relu_conv2d.1} parent=1 // loop_pre_header
      _
    $region3: #{relu_conv2d.1} parent=1 // loop_header
      %s11 = sphi 0, %s15
      %p12 = scmp.ge.s32.totalorder %s11, 6
      %s19 = sphi 0, %s19
      %s21 = sphi 0, %s19
      %s22 = sphi 0, %s21
      %s36 = sphi 0, %s22
      %s40 = sphi 0, %s40
      %s42 = sphi 0, %s40
      %s43 = sphi 0, %s42
      %s57 = sphi 0, %s43
      %s63 = sphi 0, %s65
      %s66 = sphi 0, %s63
      %s67 = sphi 0, %s66
      %s83 = sphi 0, %s67
    $region4: #{relu_conv2d.1} parent=1 // loop_header_branch
      %14 = sbr.rel (%p12) target = $region8
    $region5: #{relu_conv2d.1} parent=1 // loop_body
      %s16 = ssub.s32 %s11, 1
      %s17 = ssub.s32 %s11, 2
      %s18 = sadd.s32 %s11, 1
      %s20 = sadd.s32 %s19, 1
      %p23 = scmp.eq.s32.totalorder %s11, 3
      %p24 = scmp.ne.s32.totalorder %s19, %s21
      %p25 = scmp.eq.s32.totalorder %s11, 0
      %p26 = por %p24, %p25
      %p27 = scmp.ne.s32.totalorder %s19, %s21
      %p28 = scmp.eq.s32.totalorder %s16, 3
      %p29 = por %p27, %p28
      %p30 = scmp.ne.s32.totalorder %s21, %s22
      %p31 = scmp.eq.s32.totalorder %s16, 0
      %p32 = por %p30, %p31
      %p33 = scmp.ne.s32.totalorder %s21, %s22
      %p34 = scmp.eq.s32.totalorder %s17, 3
      %p35 = por %p33, %p34
      %p37 = scmp.ne.s32.totalorder %s22, %s36
      %p38 = scmp.eq.s32.totalorder %s17, 0
      %p39 = por %p37, %p38
      %s41 = sadd.s32 %s40, 1
      %p44 = scmp.eq.s32.totalorder %s11, 3
      %p45 = scmp.ne.s32.totalorder %s40, %s42
      %p46 = scmp.eq.s32.totalorder %s11, 0
      %p47 = por %p45, %p46
      %p48 = scmp.ne.s32.totalorder %s40, %s42
      %p49 = scmp.eq.s32.totalorder %s16, 3
      %p50 = por %p48, %p49
      %p51 = scmp.ne.s32.totalorder %s42, %s43
      %p52 = scmp.eq.s32.totalorder %s16, 0
      %p53 = por %p51, %p52
      %p54 = scmp.ne.s32.totalorder %s42, %s43
      %p55 = scmp.eq.s32.totalorder %s17, 3
      %p56 = por %p54, %p55
      %p58 = scmp.ne.s32.totalorder %s43, %s57
      %p59 = scmp.eq.s32.totalorder %s17, 0
      %p60 = por %p58, %p59
      %s61 = ssub.s32 %s11, %s18
      %p62 = scmp.eq.s32.totalorder %s61, 0
      %s64 = sadd.s32 %s63, 1
      %s65 = scalar_select %p62, %s63, %s64
      %p68 = pneg %p62
      %p69 = scmp.eq.s32.totalorder %s11, 3
      %p70 = por %p68, %p69
      %p71 = scmp.ne.s32.totalorder %s63, %s66
      %p72 = scmp.eq.s32.totalorder %s11, 0
      %p73 = por %p71, %p72
      %p74 = scmp.ne.s32.totalorder %s63, %s66
      %p75 = scmp.eq.s32.totalorder %s16, 3
      %p76 = por %p74, %p75
      %p77 = scmp.ne.s32.totalorder %s66, %s67
      %p78 = scmp.eq.s32.totalorder %s16, 0
      %p79 = por %p77, %p78
      %p80 = scmp.ne.s32.totalorder %s66, %s67
      %p81 = scmp.eq.s32.totalorder %s17, 3
      %p82 = por %p80, %p81
      %p84 = scmp.ne.s32.totalorder %s67, %s83
      %p85 = scmp.eq.s32.totalorder %s17, 0
      %p86 = por %p84, %p85
      %p87 = scmp.le.s32.totalorder 1, %s11
      %p88 = scmp.lt.s32.totalorder %s11, 5
      %p89 = pnand %p87, %p88
      %p90 = pneg %p89
      // Predicated region
      $region9: #{relu_conv2d.1} parent=5 // pred_check
        _
      $region10: #{relu_conv2d.1} parent=5 // pred_check_branch
        %92 = sbr.rel (%p89) target = $region12
      $region11: #{relu_conv2d.1} parent=5 // pred_region
        %s93 = ssub.s32 %s11, 1
        // Predicated region
        $region13: #{relu_conv2d.1} parent=11 // pred_check
          %p94 = pneg %p32
        $region14: #{relu_conv2d.1} parent=11 // pred_check_branch
          %96 = sbr.rel (%p94) target = $region16
        $region15: #{relu_conv2d.1} parent=11 // pred_region
          _
        $region16: #{relu_conv2d.1} parent=11 // pred_fallthru
          _
        // Predicated region
        $region17: #{relu_conv2d.1} parent=11 // pred_check
          %p97 = pneg %p53
        $region18: #{relu_conv2d.1} parent=11 // pred_check_branch
          %99 = sbr.rel (%p97) target = $region20
        $region19: #{relu_conv2d.1} parent=11 // pred_region
          _
        $region20: #{relu_conv2d.1} parent=11 // pred_fallthru
          _
      $region12: #{relu_conv2d.1} parent=5 // pred_fallthru
        _
      %p100 = scmp.lt.s32.totalorder %s11, 4
      // Predicated region
      $region21: #{relu_conv2d.1} parent=5 // pred_check
        %p101 = pneg %p100
      $region22: #{relu_conv2d.1} parent=5 // pred_check_branch
        %103 = sbr.rel (%p101) target = $region24
      $region23: #{relu_conv2d.1} parent=5 // pred_region
        _
      $region24: #{relu_conv2d.1} parent=5 // pred_fallthru
        _
      %p104 = scmp.le.s32.totalorder 1, %s11
      %p105 = scmp.lt.s32.totalorder %s11, 5
      %p106 = pnand %p104, %p105
      %p107 = pneg %p106
      // Predicated region
      $region25: #{relu_conv2d.1} parent=5 // pred_check
        _
      $region26: #{relu_conv2d.1} parent=5 // pred_check_branch
        %109 = sbr.rel (%p106) target = $region28
      $region27: #{relu_conv2d.1} parent=5 // pred_region
        %s110 = ssub.s32 %s11, 1
        %p111 = pneg %p32
        %p112 = pneg %p29
        %p113 = pneg %p53
        %p114 = pneg %p50
        %p115 = pneg %p79
        %p116 = pneg %p76
        %s117 = sand.u32 %s66, 1
        %s118 = scalar_lea.sflag [#allocation4], %s117
        %s119 = sand.u32 %s66, 1
        %s120 = smul.addr %s119, 784
        %s121 = scalar_lea.vmem [#allocation3], %s120
        %s122 = smul.u32 14, %s16
        %s124 = smul.u32 %s16, 14
        %s125 = smul.u32 %s124, 8
        %s126 = smul.addr %s125, 4
        %s127 = scalar_lea.vmem %s0, %s126
        %v128 = vld [vmem:[%s127] sm:$0xf]
        %v129 = vld [vmem:[%s127 + $0x4] sm:$0xf]
        %v130 = vld [vmem:[%s127 + $0x8] sm:$0xf]
        %v131 = vld [vmem:[%s127 + $0xc] sm:$0xf]
        %v132 = vld [vmem:[%s127 + $0x10] sm:$0xf]
        %v133 = vld [vmem:[%s127 + $0x14] sm:$0xf]
        %v134 = vld [vmem:[%s127 + $0x18] sm:$0xf]
        %v135 = vld [vmem:[%s127 + $0x20] sm:$0xf]
        %v136 = vld [vmem:[%s127 + $0x24] sm:$0xf]
        %v137 = vld [vmem:[%s127 + $0x28] sm:$0xf]
        %v138 = vld [vmem:[%s127 + $0x2c] sm:$0xf]
        %v139 = vld [vmem:[%s127 + $0x30] sm:$0xf]
        %v140 = vld [vmem:[%s127 + $0x34] sm:$0xf]
        %v141 = vld [vmem:[%s127 + $0x38] sm:$0xf]
        %v142 = vld [vmem:[%s127 + $0x40] sm:$0xf]
        %v143 = vld [vmem:[%s127 + $0x44] sm:$0xf]
        %v144 = vld [vmem:[%s127 + $0x48] sm:$0xf]
        %v145 = vld [vmem:[%s127 + $0x4c] sm:$0xf]
        %v146 = vld [vmem:[%s127 + $0x50] sm:$0xf]
        %v147 = vld [vmem:[%s127 + $0x54] sm:$0xf]
        %v148 = vld [vmem:[%s127 + $0x58] sm:$0xf]
        %v149 = vld [vmem:[%s127 + $0x60] sm:$0xf]
        %v150 = vld [vmem:[%s127 + $0x64] sm:$0xf]
        %v151 = vld [vmem:[%s127 + $0x68] sm:$0xf]
        %v152 = vld [vmem:[%s127 + $0x6c] sm:$0xf]
        %v153 = vld [vmem:[%s127 + $0x70] sm:$0xf]
        %v154 = vld [vmem:[%s127 + $0x74] sm:$0xf]
        %v155 = vld [vmem:[%s127 + $0x78] sm:$0xf]
        %v156 = vld [vmem:[%s127 + $0x80] sm:$0xf]
        %v157 = vld [vmem:[%s127 + $0x84] sm:$0xf]
        %v158 = vld [vmem:[%s127 + $0x88] sm:$0xf]
        %v159 = vld [vmem:[%s127 + $0x8c] sm:$0xf]
        %v160 = vld [vmem:[%s127 + $0x90] sm:$0xf]
        %v161 = vld [vmem:[%s127 + $0x94] sm:$0xf]
        %v162 = vld [vmem:[%s127 + $0x98] sm:$0xf]
        %v163 = vld [vmem:[%s127 + $0xa0] sm:$0xf]
        %v164 = vld [vmem:[%s127 + $0xa4] sm:$0xf]
        %v165 = vld [vmem:[%s127 + $0xa8] sm:$0xf]
        %v166 = vld [vmem:[%s127 + $0xac] sm:$0xf]
        %v167 = vld [vmem:[%s127 + $0xb0] sm:$0xf]
        %v168 = vld [vmem:[%s127 + $0xb4] sm:$0xf]
        %v169 = vld [vmem:[%s127 + $0xb8] sm:$0xf]
        %v170 = vld [vmem:[%s127 + $0xc0] sm:$0xf]
        %v171 = vld [vmem:[%s127 + $0xc4] sm:$0xf]
        %v172 = vld [vmem:[%s127 + $0xc8] sm:$0xf]
        %v173 = vld [vmem:[%s127 + $0xcc] sm:$0xf]
        %v174 = vld [vmem:[%s127 + $0xd0] sm:$0xf]
        %v175 = vld [vmem:[%s127 + $0xd4] sm:$0xf]
        %v176 = vld [vmem:[%s127 + $0xd8] sm:$0xf]
        %v177 = vld [vmem:[%s127 + $0xe0] sm:$0xf]
        %v178 = vld [vmem:[%s127 + $0xe4] sm:$0xf]
        %v179 = vld [vmem:[%s127 + $0xe8] sm:$0xf]
        %v180 = vld [vmem:[%s127 + $0xec] sm:$0xf]
        %v181 = vld [vmem:[%s127 + $0xf0] sm:$0xf]
        %v182 = vld [vmem:[%s127 + $0xf4] sm:$0xf]
        %v183 = vld [vmem:[%s127 + $0xf8] sm:$0xf]
        %v184 = vld [vmem:[%s127 + $0x100] sm:$0xf]
        %v185 = vld [vmem:[%s127 + $0x104] sm:$0xf]
        %v186 = vld [vmem:[%s127 + $0x108] sm:$0xf]
        %v187 = vld [vmem:[%s127 + $0x10c] sm:$0xf]
        %v188 = vld [vmem:[%s127 + $0x110] sm:$0xf]
        %v189 = vld [vmem:[%s127 + $0x114] sm:$0xf]
        %v190 = vld [vmem:[%s127 + $0x118] sm:$0xf]
        %v191 = vld [vmem:[%s127 + $0x120] sm:$0xf]
        %v192 = vld [vmem:[%s127 + $0x124] sm:$0xf]
        %v193 = vld [vmem:[%s127 + $0x128] sm:$0xf]
        %v194 = vld [vmem:[%s127 + $0x12c] sm:$0xf]
        %v195 = vld [vmem:[%s127 + $0x130] sm:$0xf]
        %v196 = vld [vmem:[%s127 + $0x134] sm:$0xf]
        %v197 = vld [vmem:[%s127 + $0x138] sm:$0xf]
        %v198 = vld [vmem:[%s127 + $0x140] sm:$0xf]
        %v199 = vld [vmem:[%s127 + $0x144] sm:$0xf]
        %v200 = vld [vmem:[%s127 + $0x148] sm:$0xf]
        %v201 = vld [vmem:[%s127 + $0x14c] sm:$0xf]
        %v202 = vld [vmem:[%s127 + $0x150] sm:$0xf]
        %v203 = vld [vmem:[%s127 + $0x154] sm:$0xf]
        %v204 = vld [vmem:[%s127 + $0x158] sm:$0xf]
        %v205 = vld [vmem:[%s127 + $0x160] sm:$0xf]
        %v206 = vld [vmem:[%s127 + $0x164] sm:$0xf]
        %v207 = vld [vmem:[%s127 + $0x168] sm:$0xf]
        %v208 = vld [vmem:[%s127 + $0x16c] sm:$0xf]
        %v209 = vld [vmem:[%s127 + $0x170] sm:$0xf]
        %v210 = vld [vmem:[%s127 + $0x174] sm:$0xf]
        %v211 = vld [vmem:[%s127 + $0x178] sm:$0xf]
        %v212 = vld [vmem:[%s127 + $0x180] sm:$0xf]
        %v213 = vld [vmem:[%s127 + $0x184] sm:$0xf]
        %v214 = vld [vmem:[%s127 + $0x188] sm:$0xf]
        %v215 = vld [vmem:[%s127 + $0x18c] sm:$0xf]
        %v216 = vld [vmem:[%s127 + $0x190] sm:$0xf]
        %v217 = vld [vmem:[%s127 + $0x194] sm:$0xf]
        %v218 = vld [vmem:[%s127 + $0x198] sm:$0xf]
        %v219 = vld [vmem:[%s127 + $0x1a0] sm:$0xf]
        %v220 = vld [vmem:[%s127 + $0x1a4] sm:$0xf]
        %v221 = vld [vmem:[%s127 + $0x1a8] sm:$0xf]
        %v222 = vld [vmem:[%s127 + $0x1ac] sm:$0xf]
        %v223 = vld [vmem:[%s127 + $0x1b0] sm:$0xf]
        %v224 = vld [vmem:[%s127 + $0x1b4] sm:$0xf]
        %v225 = vld [vmem:[%s127 + $0x1b8] sm:$0xf]
        %v226 = vld [vmem:[%s127 + $0x1c0] sm:$0xf]
        %v227 = vld [vmem:[%s127 + $0x1c4] sm:$0xf]
        %v228 = vld [vmem:[%s127 + $0x1c8] sm:$0xf]
        %v229 = vld [vmem:[%s127 + $0x1cc] sm:$0xf]
        %v230 = vld [vmem:[%s127 + $0x1d0] sm:$0xf]
        %v231 = vld [vmem:[%s127 + $0x1d4] sm:$0xf]
        %v232 = vld [vmem:[%s127 + $0x1d8] sm:$0xf]
        %v233 = vld [vmem:[%s127 + $0x1e0] sm:$0xf]
        %v234 = vld [vmem:[%s127 + $0x1e4] sm:$0xf]
        %v235 = vld [vmem:[%s127 + $0x1e8] sm:$0xf]
        %v236 = vld [vmem:[%s127 + $0x1ec] sm:$0xf]
        %v237 = vld [vmem:[%s127 + $0x1f0] sm:$0xf]
        %v238 = vld [vmem:[%s127 + $0x1f4] sm:$0xf]
        %v239 = vld [vmem:[%s127 + $0x1f8] sm:$0xf]
        %v240 = vunpack.c.l.bf16 %v128
        %v241 = vunpack.c.l.bf16 %v129
        %v242 = vunpack.c.l.bf16 %v130
        %v243 = vunpack.c.l.bf16 %v131
        %v244 = vunpack.c.l.bf16 %v132
        %v245 = vunpack.c.l.bf16 %v133
        %v246 = vunpack.c.l.bf16 %v134
        %v247 = vunpack.c.l.bf16 %v135
        %v248 = vunpack.c.l.bf16 %v136
        %v249 = vunpack.c.l.bf16 %v137
        %v250 = vunpack.c.l.bf16 %v138
        %v251 = vunpack.c.l.bf16 %v139
        %v252 = vunpack.c.l.bf16 %v140
        %v253 = vunpack.c.l.bf16 %v141
        %v254 = vunpack.c.l.bf16 %v142
        %v255 = vunpack.c.l.bf16 %v143
        %v256 = vunpack.c.l.bf16 %v144
        %v257 = vunpack.c.l.bf16 %v145
        %v258 = vunpack.c.l.bf16 %v146
        %v259 = vunpack.c.l.bf16 %v147
        %v260 = vunpack.c.l.bf16 %v148
        %v261 = vunpack.c.l.bf16 %v149
        %v262 = vunpack.c.l.bf16 %v150
        %v263 = vunpack.c.l.bf16 %v151
        %v264 = vunpack.c.l.bf16 %v152
        %v265 = vunpack.c.l.bf16 %v153
        %v266 = vunpack.c.l.bf16 %v154
        %v267 = vunpack.c.l.bf16 %v155
        %v268 = vunpack.c.l.bf16 %v156
        %v269 = vunpack.c.l.bf16 %v157
        %v270 = vunpack.c.l.bf16 %v158
        %v271 = vunpack.c.l.bf16 %v159
        %v272 = vunpack.c.l.bf16 %v160
        %v273 = vunpack.c.l.bf16 %v161
        %v274 = vunpack.c.l.bf16 %v162
        %v275 = vunpack.c.l.bf16 %v163
        %v276 = vunpack.c.l.bf16 %v164
        %v277 = vunpack.c.l.bf16 %v165
        %v278 = vunpack.c.l.bf16 %v166
        %v279 = vunpack.c.l.bf16 %v167
        %v280 = vunpack.c.l.bf16 %v168
        %v281 = vunpack.c.l.bf16 %v169
        %v282 = vunpack.c.l.bf16 %v170
        %v283 = vunpack.c.l.bf16 %v171
        %v284 = vunpack.c.l.bf16 %v172
        %v285 = vunpack.c.l.bf16 %v173
        %v286 = vunpack.c.l.bf16 %v174
        %v287 = vunpack.c.l.bf16 %v175
        %v288 = vunpack.c.l.bf16 %v176
        %v289 = vunpack.c.l.bf16 %v177
        %v290 = vunpack.c.l.bf16 %v178
        %v291 = vunpack.c.l.bf16 %v179
        %v292 = vunpack.c.l.bf16 %v180
        %v293 = vunpack.c.l.bf16 %v181
        %v294 = vunpack.c.l.bf16 %v182
        %v295 = vunpack.c.l.bf16 %v183
        %v296 = vunpack.c.l.bf16 %v184
        %v297 = vunpack.c.l.bf16 %v185
        %v298 = vunpack.c.l.bf16 %v186
        %v299 = vunpack.c.l.bf16 %v187
        %v300 = vunpack.c.l.bf16 %v188
        %v301 = vunpack.c.l.bf16 %v189
        %v302 = vunpack.c.l.bf16 %v190
        %v303 = vunpack.c.l.bf16 %v191
        %v304 = vunpack.c.l.bf16 %v192
        %v305 = vunpack.c.l.bf16 %v193
        %v306 = vunpack.c.l.bf16 %v194
        %v307 = vunpack.c.l.bf16 %v195
        %v308 = vunpack.c.l.bf16 %v196
        %v309 = vunpack.c.l.bf16 %v197
        %v310 = vunpack.c.l.bf16 %v198
        %v311 = vunpack.c.l.bf16 %v199
        %v312 = vunpack.c.l.bf16 %v200
        %v313 = vunpack.c.l.bf16 %v201
        %v314 = vunpack.c.l.bf16 %v202
        %v315 = vunpack.c.l.bf16 %v203
        %v316 = vunpack.c.l.bf16 %v204
        %v317 = vunpack.c.l.bf16 %v205
        %v318 = vunpack.c.l.bf16 %v206
        %v319 = vunpack.c.l.bf16 %v207
        %v320 = vunpack.c.l.bf16 %v208
        %v321 = vunpack.c.l.bf16 %v209
        %v322 = vunpack.c.l.bf16 %v210
        %v323 = vunpack.c.l.bf16 %v211
        %v324 = vunpack.c.l.bf16 %v212
        %v325 = vunpack.c.l.bf16 %v213
        %v326 = vunpack.c.l.bf16 %v214
        %v327 = vunpack.c.l.bf16 %v215
        %v328 = vunpack.c.l.bf16 %v216
        %v329 = vunpack.c.l.bf16 %v217
        %v330 = vunpack.c.l.bf16 %v218
        %v331 = vunpack.c.l.bf16 %v219
        %v332 = vunpack.c.l.bf16 %v220
        %v333 = vunpack.c.l.bf16 %v221
        %v334 = vunpack.c.l.bf16 %v222
        %v335 = vunpack.c.l.bf16 %v223
        %v336 = vunpack.c.l.bf16 %v224
        %v337 = vunpack.c.l.bf16 %v225
        %v338 = vunpack.c.l.bf16 %v226
        %v339 = vunpack.c.l.bf16 %v227
        %v340 = vunpack.c.l.bf16 %v228
        %v341 = vunpack.c.l.bf16 %v229
        %v342 = vunpack.c.l.bf16 %v230
        %v343 = vunpack.c.l.bf16 %v231
        %v344 = vunpack.c.l.bf16 %v232
        %v345 = vunpack.c.l.bf16 %v233
        %v346 = vunpack.c.l.bf16 %v234
        %v347 = vunpack.c.l.bf16 %v235
        %v348 = vunpack.c.l.bf16 %v236
        %v349 = vunpack.c.l.bf16 %v237
        %v350 = vunpack.c.l.bf16 %v238
        %v351 = vunpack.c.l.bf16 %v239
        %v352 = vpack.c.bf16 %v241, %v240
        %v353 = vpack.c.bf16 %v243, %v242
        %v354 = vpack.c.bf16 %v245, %v244
        %v355 = vpack.c.bf16 %v247, %v246
        %v356 = vpack.c.bf16 %v249, %v248
        %v357 = vpack.c.bf16 %v251, %v250
        %v358 = vpack.c.bf16 %v253, %v252
        %v359 = vpack.c.bf16 %v255, %v254
        %v360 = vpack.c.bf16 %v257, %v256
        %v361 = vpack.c.bf16 %v259, %v258
        %v362 = vpack.c.bf16 %v261, %v260
        %v363 = vpack.c.bf16 %v263, %v262
        %v364 = vpack.c.bf16 %v265, %v264
        %v365 = vpack.c.bf16 %v267, %v266
        %v366 = vpack.c.bf16 %v269, %v268
        %v367 = vpack.c.bf16 %v271, %v270
        %v368 = vpack.c.bf16 %v273, %v272
        %v369 = vpack.c.bf16 %v275, %v274
        %v370 = vpack.c.bf16 %v277, %v276
        %v371 = vpack.c.bf16 %v279, %v278
        %v372 = vpack.c.bf16 %v281, %v280
        %v373 = vpack.c.bf16 %v283, %v282
        %v374 = vpack.c.bf16 %v285, %v284
        %v375 = vpack.c.bf16 %v287, %v286
        %v376 = vpack.c.bf16 %v289, %v288
        %v377 = vpack.c.bf16 %v291, %v290
        %v378 = vpack.c.bf16 %v293, %v292
        %v379 = vpack.c.bf16 %v295, %v294
        %v380 = vpack.c.bf16 %v297, %v296
        %v381 = vpack.c.bf16 %v299, %v298
        %v382 = vpack.c.bf16 %v301, %v300
        %v383 = vpack.c.bf16 %v303, %v302
        %v384 = vpack.c.bf16 %v305, %v304
        %v385 = vpack.c.bf16 %v307, %v306
        %v386 = vpack.c.bf16 %v309, %v308
        %v387 = vpack.c.bf16 %v311, %v310
        %v388 = vpack.c.bf16 %v313, %v312
        %v389 = vpack.c.bf16 %v315, %v314
        %v390 = vpack.c.bf16 %v317, %v316
        %v391 = vpack.c.bf16 %v319, %v318
        %v392 = vpack.c.bf16 %v321, %v320
        %v393 = vpack.c.bf16 %v323, %v322
        %v394 = vpack.c.bf16 %v325, %v324
        %v395 = vpack.c.bf16 %v327, %v326
        %v396 = vpack.c.bf16 %v329, %v328
        %v397 = vpack.c.bf16 %v331, %v330
        %v398 = vpack.c.bf16 %v333, %v332
        %v399 = vpack.c.bf16 %v335, %v334
        %v400 = vpack.c.bf16 %v337, %v336
        %v401 = vpack.c.bf16 %v339, %v338
        %v402 = vpack.c.bf16 %v341, %v340
        %v403 = vpack.c.bf16 %v343, %v342
        %v404 = vpack.c.bf16 %v345, %v344
        %v405 = vpack.c.bf16 %v347, %v346
        %v406 = vpack.c.bf16 %v349, %v348
        %v407 = vpack.c.bf16 %v351, %v350
        %408 = vst [vmem:[#allocation2] sm:$0xff] %v352
        %409 = vst [vmem:[#allocation2 + $0x18] sm:$0xff] %v353
        %410 = vst [vmem:[#allocation2 + $0x30] sm:$0xff] %v354
        %411 = vst [vmem:[#allocation2 + $0x48] sm:$0xff] %v355
        %412 = vst [vmem:[#allocation2 + $0x60] sm:$0xff] %v356
        %413 = vst [vmem:[#allocation2 + $0x78] sm:$0xff] %v357
        %414 = vst [vmem:[#allocation2 + $0x90] sm:$0xff] %v358
        %415 = vst [vmem:[#allocation2 + $0xa8] sm:$0xff] %v359
        %416 = vst [vmem:[#allocation2 + $0xc0] sm:$0xff] %v360
        %417 = vst [vmem:[#allocation2 + $0xd8] sm:$0xff] %v361
        %418 = vst [vmem:[#allocation2 + $0xf0] sm:$0xff] %v362
        %419 = vst [vmem:[#allocation2 + $0x108] sm:$0xff] %v363
        %420 = vst [vmem:[#allocation2 + $0x120] sm:$0xff] %v364
        %421 = vst [vmem:[#allocation2 + $0x138] sm:$0xff] %v365
        %422 = vst [vmem:[#allocation2 + $0x150] sm:$0xff] %v366
        %423 = vst [vmem:[#allocation2 + $0x168] sm:$0xff] %v367
        %424 = vst [vmem:[#allocation2 + $0x180] sm:$0xff] %v368
        %425 = vst [vmem:[#allocation2 + $0x198] sm:$0xff] %v369
        %426 = vst [vmem:[#allocation2 + $0x1b0] sm:$0xff] %v370
        %427 = vst [vmem:[#allocation2 + $0x1c8] sm:$0xff] %v371
        %428 = vst [vmem:[#allocation2 + $0x1e0] sm:$0xff] %v372
        %429 = vst [vmem:[#allocation2 + $0x1f8] sm:$0xff] %v373
        %430 = vst [vmem:[#allocation2 + $0x210] sm:$0xff] %v374
        %431 = vst [vmem:[#allocation2 + $0x228] sm:$0xff] %v375
        %432 = vst [vmem:[#allocation2 + $0x240] sm:$0xff] %v376
        %433 = vst [vmem:[#allocation2 + $0x258] sm:$0xff] %v377
        %434 = vst [vmem:[#allocation2 + $0x270] sm:$0xff] %v378
        %435 = vst [vmem:[#allocation2 + $0x288] sm:$0xff] %v379
        %436 = vst [vmem:[#allocation2 + $0x2a0] sm:$0xff] %v380
        %437 = vst [vmem:[#allocation2 + $0x2b8] sm:$0xff] %v381
        %438 = vst [vmem:[#allocation2 + $0x2d0] sm:$0xff] %v382
        %439 = vst [vmem:[#allocation2 + $0x2e8] sm:$0xff] %v383
        %440 = vst [vmem:[#allocation2 + $0x300] sm:$0xff] %v384
        %441 = vst [vmem:[#allocation2 + $0x318] sm:$0xff] %v385
        %442 = vst [vmem:[#allocation2 + $0x330] sm:$0xff] %v386
        %443 = vst [vmem:[#allocation2 + $0x348] sm:$0xff] %v387
        %444 = vst [vmem:[#allocation2 + $0x360] sm:$0xff] %v388
        %445 = vst [vmem:[#allocation2 + $0x378] sm:$0xff] %v389
        %446 = vst [vmem:[#allocation2 + $0x390] sm:$0xff] %v390
        %447 = vst [vmem:[#allocation2 + $0x3a8] sm:$0xff] %v391
        %448 = vst [vmem:[#allocation2 + $0x3c0] sm:$0xff] %v392
        %449 = vst [vmem:[#allocation2 + $0x3d8] sm:$0xff] %v393
        %450 = vst [vmem:[#allocation2 + $0x3f0] sm:$0xff] %v394
        %451 = vst [vmem:[#allocation2 + $0x408] sm:$0xff] %v395
        %452 = vst [vmem:[#allocation2 + $0x420] sm:$0xff] %v396
        %453 = vst [vmem:[#allocation2 + $0x438] sm:$0xff] %v397
        %454 = vst [vmem:[#allocation2 + $0x450] sm:$0xff] %v398
        %455 = vst [vmem:[#allocation2 + $0x468] sm:$0xff] %v399
        %456 = vst [vmem:[#allocation2 + $0x480] sm:$0xff] %v400
        %457 = vst [vmem:[#allocation2 + $0x498] sm:$0xff] %v401
        %458 = vst [vmem:[#allocation2 + $0x4b0] sm:$0xff] %v402
        %459 = vst [vmem:[#allocation2 + $0x4c8] sm:$0xff] %v403
        %460 = vst [vmem:[#allocation2 + $0x4e0] sm:$0xff] %v404
        %461 = vst [vmem:[#allocation2 + $0x4f8] sm:$0xff] %v405
        %462 = vst [vmem:[#allocation2 + $0x510] sm:$0xff] %v406
        %463 = vst [vmem:[#allocation2 + $0x528] sm:$0xff] %v407
        %v464 = vld [vmem:[%s127] sm:$0xf]
        %v465 = vld [vmem:[%s127 + $0x4] sm:$0xf]
        %v466 = vld [vmem:[%s127 + $0x8] sm:$0xf]
        %v467 = vld [vmem:[%s127 + $0xc] sm:$0xf]
        %v468 = vld [vmem:[%s127 + $0x10] sm:$0xf]
        %v469 = vld [vmem:[%s127 + $0x14] sm:$0xf]
        %v470 = vld [vmem:[%s127 + $0x18] sm:$0xf]
        %v471 = vld [vmem:[%s127 + $0x1c] sm:$0x1]
        %v472 = vld [vmem:[%s127 + $0x20] sm:$0xf]
        %v473 = vld [vmem:[%s127 + $0x24] sm:$0xf]
        %v474 = vld [vmem:[%s127 + $0x28] sm:$0xf]
        %v475 = vld [vmem:[%s127 + $0x2c] sm:$0xf]
        %v476 = vld [vmem:[%s127 + $0x30] sm:$0xf]
        %v477 = vld [vmem:[%s127 + $0x34] sm:$0xf]
        %v478 = vld [vmem:[%s127 + $0x38] sm:$0xf]
        %v479 = vld [vmem:[%s127 + $0x3c] sm:$0x1]
        %v480 = vld [vmem:[%s127 + $0x40] sm:$0xf]
        %v481 = vld [vmem:[%s127 + $0x44] sm:$0xf]
        %v482 = vld [vmem:[%s127 + $0x48] sm:$0xf]
        %v483 = vld [vmem:[%s127 + $0x4c] sm:$0xf]
        %v484 = vld [vmem:[%s127 + $0x50] sm:$0xf]
        %v485 = vld [vmem:[%s127 + $0x54] sm:$0xf]
        %v486 = vld [vmem:[%s127 + $0x58] sm:$0xf]
        %v487 = vld [vmem:[%s127 + $0x5c] sm:$0x1]
        %v488 = vld [vmem:[%s127 + $0x60] sm:$0xf]
        %v489 = vld [vmem:[%s127 + $0x64] sm:$0xf]
        %v490 = vld [vmem:[%s127 + $0x68] sm:$0xf]
        %v491 = vld [vmem:[%s127 + $0x6c] sm:$0xf]
        %v492 = vld [vmem:[%s127 + $0x70] sm:$0xf]
        %v493 = vld [vmem:[%s127 + $0x74] sm:$0xf]
        %v494 = vld [vmem:[%s127 + $0x78] sm:$0xf]
        %v495 = vld [vmem:[%s127 + $0x7c] sm:$0x1]
        %v496 = vld [vmem:[%s127 + $0x80] sm:$0xf]
        %v497 = vld [vmem:[%s127 + $0x84] sm:$0xf]
        %v498 = vld [vmem:[%s127 + $0x88] sm:$0xf]
        %v499 = vld [vmem:[%s127 + $0x8c] sm:$0xf]
        %v500 = vld [vmem:[%s127 + $0x90] sm:$0xf]
        %v501 = vld [vmem:[%s127 + $0x94] sm:$0xf]
        %v502 = vld [vmem:[%s127 + $0x98] sm:$0xf]
        %v503 = vld [vmem:[%s127 + $0x9c] sm:$0x1]
        %v504 = vld [vmem:[%s127 + $0xa0] sm:$0xf]
        %v505 = vld [vmem:[%s127 + $0xa4] sm:$0xf]
        %v506 = vld [vmem:[%s127 + $0xa8] sm:$0xf]
        %v507 = vld [vmem:[%s127 + $0xac] sm:$0xf]
        %v508 = vld [vmem:[%s127 + $0xb0] sm:$0xf]
        %v509 = vld [vmem:[%s127 + $0xb4] sm:$0xf]
        %v510 = vld [vmem:[%s127 + $0xb8] sm:$0xf]
        %v511 = vld [vmem:[%s127 + $0xbc] sm:$0x1]
        %v512 = vld [vmem:[%s127 + $0xc0] sm:$0xf]
        %v513 = vld [vmem:[%s127 + $0xc4] sm:$0xf]
        %v514 = vld [vmem:[%s127 + $0xc8] sm:$0xf]
        %v515 = vld [vmem:[%s127 + $0xcc] sm:$0xf]
        %v516 = vld [vmem:[%s127 + $0xd0] sm:$0xf]
        %v517 = vld [vmem:[%s127 + $0xd4] sm:$0xf]
        %v518 = vld [vmem:[%s127 + $0xd8] sm:$0xf]
        %v519 = vld [vmem:[%s127 + $0xdc] sm:$0x1]
        %v520 = vld [vmem:[%s127 + $0xe0] sm:$0xf]
        %v521 = vld [vmem:[%s127 + $0xe4] sm:$0xf]
        %v522 = vld [vmem:[%s127 + $0xe8] sm:$0xf]
        %v523 = vld [vmem:[%s127 + $0xec] sm:$0xf]
        %v524 = vld [vmem:[%s127 + $0xf0] sm:$0xf]
        %v525 = vld [vmem:[%s127 + $0xf4] sm:$0xf]
        %v526 = vld [vmem:[%s127 + $0xf8] sm:$0xf]
        %v527 = vld [vmem:[%s127 + $0xfc] sm:$0x1]
        %v528 = vld [vmem:[%s127 + $0x100] sm:$0xf]
        %v529 = vld [vmem:[%s127 + $0x104] sm:$0xf]
        %v530 = vld [vmem:[%s127 + $0x108] sm:$0xf]
        %v531 = vld [vmem:[%s127 + $0x10c] sm:$0xf]
        %v532 = vld [vmem:[%s127 + $0x110] sm:$0xf]
        %v533 = vld [vmem:[%s127 + $0x114] sm:$0xf]
        %v534 = vld [vmem:[%s127 + $0x118] sm:$0xf]
        %v535 = vld [vmem:[%s127 + $0x11c] sm:$0x1]
        %v536 = vld [vmem:[%s127 + $0x120] sm:$0xf]
        %v537 = vld [vmem:[%s127 + $0x124] sm:$0xf]
        %v538 = vld [vmem:[%s127 + $0x128] sm:$0xf]
        %v539 = vld [vmem:[%s127 + $0x12c] sm:$0xf]
        %v540 = vld [vmem:[%s127 + $0x130] sm:$0xf]
        %v541 = vld [vmem:[%s127 + $0x134] sm:$0xf]
        %v542 = vld [vmem:[%s127 + $0x138] sm:$0xf]
        %v543 = vld [vmem:[%s127 + $0x13c] sm:$0x1]
        %v544 = vld [vmem:[%s127 + $0x140] sm:$0xf]
        %v545 = vld [vmem:[%s127 + $0x144] sm:$0xf]
        %v546 = vld [vmem:[%s127 + $0x148] sm:$0xf]
        %v547 = vld [vmem:[%s127 + $0x14c] sm:$0xf]
        %v548 = vld [vmem:[%s127 + $0x150] sm:$0xf]
        %v549 = vld [vmem:[%s127 + $0x154] sm:$0xf]
        %v550 = vld [vmem:[%s127 + $0x158] sm:$0xf]
        %v551 = vld [vmem:[%s127 + $0x15c] sm:$0x1]
        %v552 = vld [vmem:[%s127 + $0x160] sm:$0xf]
        %v553 = vld [vmem:[%s127 + $0x164] sm:$0xf]
        %v554 = vld [vmem:[%s127 + $0x168] sm:$0xf]
        %v555 = vld [vmem:[%s127 + $0x16c] sm:$0xf]
        %v556 = vld [vmem:[%s127 + $0x170] sm:$0xf]
        %v557 = vld [vmem:[%s127 + $0x174] sm:$0xf]
        %v558 = vld [vmem:[%s127 + $0x178] sm:$0xf]
        %v559 = vld [vmem:[%s127 + $0x17c] sm:$0x1]
        %v560 = vld [vmem:[%s127 + $0x180] sm:$0xf]
        %v561 = vld [vmem:[%s127 + $0x184] sm:$0xf]
        %v562 = vld [vmem:[%s127 + $0x188] sm:$0xf]
        %v563 = vld [vmem:[%s127 + $0x18c] sm:$0xf]
        %v564 = vld [vmem:[%s127 + $0x190] sm:$0xf]
        %v565 = vld [vmem:[%s127 + $0x194] sm:$0xf]
        %v566 = vld [vmem:[%s127 + $0x198] sm:$0xf]
        %v567 = vld [vmem:[%s127 + $0x19c] sm:$0x1]
        %v568 = vld [vmem:[%s127 + $0x1a0] sm:$0xf]
        %v569 = vld [vmem:[%s127 + $0x1a4] sm:$0xf]
        %v570 = vld [vmem:[%s127 + $0x1a8] sm:$0xf]
        %v571 = vld [vmem:[%s127 + $0x1ac] sm:$0xf]
        %v572 = vld [vmem:[%s127 + $0x1b0] sm:$0xf]
        %v573 = vld [vmem:[%s127 + $0x1b4] sm:$0xf]
        %v574 = vld [vmem:[%s127 + $0x1b8] sm:$0xf]
        %v575 = vld [vmem:[%s127 + $0x1bc] sm:$0x1]
        %v576 = vld [vmem:[%s127 + $0x1c0] sm:$0xf]
        %v577 = vld [vmem:[%s127 + $0x1c4] sm:$0xf]
        %v578 = vld [vmem:[%s127 + $0x1c8] sm:$0xf]
        %v579 = vld [vmem:[%s127 + $0x1cc] sm:$0xf]
        %v580 = vld [vmem:[%s127 + $0x1d0] sm:$0xf]
        %v581 = vld [vmem:[%s127 + $0x1d4] sm:$0xf]
        %v582 = vld [vmem:[%s127 + $0x1d8] sm:$0xf]
        %v583 = vld [vmem:[%s127 + $0x1dc] sm:$0x1]
        %v584 = vld [vmem:[%s127 + $0x1e0] sm:$0xf]
        %v585 = vld [vmem:[%s127 + $0x1e4] sm:$0xf]
        %v586 = vld [vmem:[%s127 + $0x1e8] sm:$0xf]
        %v587 = vld [vmem:[%s127 + $0x1ec] sm:$0xf]
        %v588 = vld [vmem:[%s127 + $0x1f0] sm:$0xf]
        %v589 = vld [vmem:[%s127 + $0x1f4] sm:$0xf]
        %v590 = vld [vmem:[%s127 + $0x1f8] sm:$0xf]
        %v591 = vld [vmem:[%s127 + $0x1fc] sm:$0x1]
        %v592 = vunpack.c.l.bf16 %v464
        %v593 = vunpack.c.l.bf16 %v465
        %v594 = vunpack.c.l.bf16 %v466
        %v595 = vunpack.c.l.bf16 %v467
        %v596 = vunpack.c.l.bf16 %v468
        %v597 = vunpack.c.l.bf16 %v469
        %v598 = vunpack.c.l.bf16 %v470
        %v599 = vunpack.c.l.bf16 %v471
        %v600 = vunpack.c.l.bf16 %v472
        %v601 = vunpack.c.l.bf16 %v473
        %v602 = vunpack.c.l.bf16 %v474
        %v603 = vunpack.c.l.bf16 %v475
        %v604 = vunpack.c.l.bf16 %v476
        %v605 = vunpack.c.l.bf16 %v477
        %v606 = vunpack.c.l.bf16 %v478
        %v607 = vunpack.c.l.bf16 %v479
        %v608 = vunpack.c.l.bf16 %v480
        %v609 = vunpack.c.l.bf16 %v481
        %v610 = vunpack.c.l.bf16 %v482
        %v611 = vunpack.c.l.bf16 %v483
        %v612 = vunpack.c.l.bf16 %v484
        %v613 = vunpack.c.l.bf16 %v485
        %v614 = vunpack.c.l.bf16 %v486
        %v615 = vunpack.c.l.bf16 %v487
        %v616 = vunpack.c.l.bf16 %v488
        %v617 = vunpack.c.l.bf16 %v489
        %v618 = vunpack.c.l.bf16 %v490
        %v619 = vunpack.c.l.bf16 %v491
        %v620 = vunpack.c.l.bf16 %v492
        %v621 = vunpack.c.l.bf16 %v493
        %v622 = vunpack.c.l.bf16 %v494
        %v623 = vunpack.c.l.bf16 %v495
        %v624 = vunpack.c.l.bf16 %v496
        %v625 = vunpack.c.l.bf16 %v497
        %v626 = vunpack.c.l.bf16 %v498
        %v627 = vunpack.c.l.bf16 %v499
        %v628 = vunpack.c.l.bf16 %v500
        %v629 = vunpack.c.l.bf16 %v501
        %v630 = vunpack.c.l.bf16 %v502
        %v631 = vunpack.c.l.bf16 %v503
        %v632 = vunpack.c.l.bf16 %v504
        %v633 = vunpack.c.l.bf16 %v505
        %v634 = vunpack.c.l.bf16 %v506
        %v635 = vunpack.c.l.bf16 %v507
        %v636 = vunpack.c.l.bf16 %v508
        %v637 = vunpack.c.l.bf16 %v509
        %v638 = vunpack.c.l.bf16 %v510
        %v639 = vunpack.c.l.bf16 %v511
        %v640 = vunpack.c.l.bf16 %v512
        %v641 = vunpack.c.l.bf16 %v513
        %v642 = vunpack.c.l.bf16 %v514
        %v643 = vunpack.c.l.bf16 %v515
        %v644 = vunpack.c.l.bf16 %v516
        %v645 = vunpack.c.l.bf16 %v517
        %v646 = vunpack.c.l.bf16 %v518
        %v647 = vunpack.c.l.bf16 %v519
        %v648 = vunpack.c.l.bf16 %v520
        %v649 = vunpack.c.l.bf16 %v521
        %v650 = vunpack.c.l.bf16 %v522
        %v651 = vunpack.c.l.bf16 %v523
        %v652 = vunpack.c.l.bf16 %v524
        %v653 = vunpack.c.l.bf16 %v525
        %v654 = vunpack.c.l.bf16 %v526
        %v655 = vunpack.c.l.bf16 %v527
        %v656 = vunpack.c.l.bf16 %v528
        %v657 = vunpack.c.l.bf16 %v529
        %v658 = vunpack.c.l.bf16 %v530
        %v659 = vunpack.c.l.bf16 %v531
        %v660 = vunpack.c.l.bf16 %v532
        %v661 = vunpack.c.l.bf16 %v533
        %v662 = vunpack.c.l.bf16 %v534
        %v663 = vunpack.c.l.bf16 %v535
        %v664 = vunpack.c.l.bf16 %v536
        %v665 = vunpack.c.l.bf16 %v537
        %v666 = vunpack.c.l.bf16 %v538
        %v667 = vunpack.c.l.bf16 %v539
        %v668 = vunpack.c.l.bf16 %v540
        %v669 = vunpack.c.l.bf16 %v541
        %v670 = vunpack.c.l.bf16 %v542
        %v671 = vunpack.c.l.bf16 %v543
        %v672 = vunpack.c.l.bf16 %v544
        %v673 = vunpack.c.l.bf16 %v545
        %v674 = vunpack.c.l.bf16 %v546
        %v675 = vunpack.c.l.bf16 %v547
        %v676 = vunpack.c.l.bf16 %v548
        %v677 = vunpack.c.l.bf16 %v549
        %v678 = vunpack.c.l.bf16 %v550
        %v679 = vunpack.c.l.bf16 %v551
        %v680 = vunpack.c.l.bf16 %v552
        %v681 = vunpack.c.l.bf16 %v553
        %v682 = vunpack.c.l.bf16 %v554
        %v683 = vunpack.c.l.bf16 %v555
        %v684 = vunpack.c.l.bf16 %v556
        %v685 = vunpack.c.l.bf16 %v557
        %v686 = vunpack.c.l.bf16 %v558
        %v687 = vunpack.c.l.bf16 %v559
        %v688 = vunpack.c.l.bf16 %v560
        %v689 = vunpack.c.l.bf16 %v561
        %v690 = vunpack.c.l.bf16 %v562
        %v691 = vunpack.c.l.bf16 %v563
        %v692 = vunpack.c.l.bf16 %v564
        %v693 = vunpack.c.l.bf16 %v565
        %v694 = vunpack.c.l.bf16 %v566
        %v695 = vunpack.c.l.bf16 %v567
        %v696 = vunpack.c.l.bf16 %v568
        %v697 = vunpack.c.l.bf16 %v569
        %v698 = vunpack.c.l.bf16 %v570
        %v699 = vunpack.c.l.bf16 %v571
        %v700 = vunpack.c.l.bf16 %v572
        %v701 = vunpack.c.l.bf16 %v573
        %v702 = vunpack.c.l.bf16 %v574
        %v703 = vunpack.c.l.bf16 %v575
        %v704 = vunpack.c.l.bf16 %v576
        %v705 = vunpack.c.l.bf16 %v577
        %v706 = vunpack.c.l.bf16 %v578
        %v707 = vunpack.c.l.bf16 %v579
        %v708 = vunpack.c.l.bf16 %v580
        %v709 = vunpack.c.l.bf16 %v581
        %v710 = vunpack.c.l.bf16 %v582
        %v711 = vunpack.c.l.bf16 %v583
        %v712 = vunpack.c.l.bf16 %v584
        %v713 = vunpack.c.l.bf16 %v585
        %v714 = vunpack.c.l.bf16 %v586
        %v715 = vunpack.c.l.bf16 %v587
        %v716 = vunpack.c.l.bf16 %v588
        %v717 = vunpack.c.l.bf16 %v589
        %v718 = vunpack.c.l.bf16 %v590
        %v719 = vunpack.c.l.bf16 %v591
        %vm848 = vcmask 1046528
        %v849 = vrot.slane %v592, 1
        %v850 = vrot.slane %v593, 1
        %v851 = vsel %vm848, %v849, %v850
        %v852 = vrot.slane %v594, 1
        %v853 = vsel %vm848, %v850, %v852
        %v854 = vrot.slane %v595, 1
        %v855 = vsel %vm848, %v852, %v854
        %v856 = vrot.slane %v596, 1
        %v857 = vsel %vm848, %v854, %v856
        %v858 = vrot.slane %v597, 1
        %v859 = vsel %vm848, %v856, %v858
        %v860 = vrot.slane %v598, 1
        %v861 = vsel %vm848, %v858, %v860
        %v862 = vrot.slane %v599, 1
        %v863 = vsel %vm848, %v860, %v862
        %v864 = vrot.slane %v600, 1
        %v865 = vrot.slane %v601, 1
        %v866 = vsel %vm848, %v864, %v865
        %v867 = vrot.slane %v602, 1
        %v868 = vsel %vm848, %v865, %v867
        %v869 = vrot.slane %v603, 1
        %v870 = vsel %vm848, %v867, %v869
        %v871 = vrot.slane %v604, 1
        %v872 = vsel %vm848, %v869, %v871
        %v873 = vrot.slane %v605, 1
        %v874 = vsel %vm848, %v871, %v873
        %v875 = vrot.slane %v606, 1
        %v876 = vsel %vm848, %v873, %v875
        %v877 = vrot.slane %v607, 1
        %v878 = vsel %vm848, %v875, %v877
        %v879 = vrot.slane %v608, 1
        %v880 = vrot.slane %v609, 1
        %v881 = vsel %vm848, %v879, %v880
        %v882 = vrot.slane %v610, 1
        %v883 = vsel %vm848, %v880, %v882
        %v884 = vrot.slane %v611, 1
        %v885 = vsel %vm848, %v882, %v884
        %v886 = vrot.slane %v612, 1
        %v887 = vsel %vm848, %v884, %v886
        %v888 = vrot.slane %v613, 1
        %v889 = vsel %vm848, %v886, %v888
        %v890 = vrot.slane %v614, 1
        %v891 = vsel %vm848, %v888, %v890
        %v892 = vrot.slane %v615, 1
        %v893 = vsel %vm848, %v890, %v892
        %v894 = vrot.slane %v616, 1
        %v895 = vrot.slane %v617, 1
        %v896 = vsel %vm848, %v894, %v895
        %v897 = vrot.slane %v618, 1
        %v898 = vsel %vm848, %v895, %v897
        %v899 = vrot.slane %v619, 1
        %v900 = vsel %vm848, %v897, %v899
        %v901 = vrot.slane %v620, 1
        %v902 = vsel %vm848, %v899, %v901
        %v903 = vrot.slane %v621, 1
        %v904 = vsel %vm848, %v901, %v903
        %v905 = vrot.slane %v622, 1
        %v906 = vsel %vm848, %v903, %v905
        %v907 = vrot.slane %v623, 1
        %v908 = vsel %vm848, %v905, %v907
        %v909 = vrot.slane %v624, 1
        %v910 = vrot.slane %v625, 1
        %v911 = vsel %vm848, %v909, %v910
        %v912 = vrot.slane %v626, 1
        %v913 = vsel %vm848, %v910, %v912
        %v914 = vrot.slane %v627, 1
        %v915 = vsel %vm848, %v912, %v914
        %v916 = vrot.slane %v628, 1
        %v917 = vsel %vm848, %v914, %v916
        %v918 = vrot.slane %v629, 1
        %v919 = vsel %vm848, %v916, %v918
        %v920 = vrot.slane %v630, 1
        %v921 = vsel %vm848, %v918, %v920
        %v922 = vrot.slane %v631, 1
        %v923 = vsel %vm848, %v920, %v922
        %v924 = vrot.slane %v632, 1
        %v925 = vrot.slane %v633, 1
        %v926 = vsel %vm848, %v924, %v925
        %v927 = vrot.slane %v634, 1
        %v928 = vsel %vm848, %v925, %v927
        %v929 = vrot.slane %v635, 1
        %v930 = vsel %vm848, %v927, %v929
        %v931 = vrot.slane %v636, 1
        %v932 = vsel %vm848, %v929, %v931
        %v933 = vrot.slane %v637, 1
        %v934 = vsel %vm848, %v931, %v933
        %v935 = vrot.slane %v638, 1
        %v936 = vsel %vm848, %v933, %v935
        %v937 = vrot.slane %v639, 1
        %v938 = vsel %vm848, %v935, %v937
        %v939 = vrot.slane %v640, 1
        %v940 = vrot.slane %v641, 1
        %v941 = vsel %vm848, %v939, %v940
        %v942 = vrot.slane %v642, 1
        %v943 = vsel %vm848, %v940, %v942
        %v944 = vrot.slane %v643, 1
        %v945 = vsel %vm848, %v942, %v944
        %v946 = vrot.slane %v644, 1
        %v947 = vsel %vm848, %v944, %v946
        %v948 = vrot.slane %v645, 1
        %v949 = vsel %vm848, %v946, %v948
        %v950 = vrot.slane %v646, 1
        %v951 = vsel %vm848, %v948, %v950
        %v952 = vrot.slane %v647, 1
        %v953 = vsel %vm848, %v950, %v952
        %v954 = vrot.slane %v648, 1
        %v955 = vrot.slane %v649, 1
        %v956 = vsel %vm848, %v954, %v955
        %v957 = vrot.slane %v650, 1
        %v958 = vsel %vm848, %v955, %v957
        %v959 = vrot.slane %v651, 1
        %v960 = vsel %vm848, %v957, %v959
        %v961 = vrot.slane %v652, 1
        %v962 = vsel %vm848, %v959, %v961
        %v963 = vrot.slane %v653, 1
        %v964 = vsel %vm848, %v961, %v963
        %v965 = vrot.slane %v654, 1
        %v966 = vsel %vm848, %v963, %v965
        %v967 = vrot.slane %v655, 1
        %v968 = vsel %vm848, %v965, %v967
        %v969 = vrot.slane %v656, 1
        %v970 = vrot.slane %v657, 1
        %v971 = vsel %vm848, %v969, %v970
        %v972 = vrot.slane %v658, 1
        %v973 = vsel %vm848, %v970, %v972
        %v974 = vrot.slane %v659, 1
        %v975 = vsel %vm848, %v972, %v974
        %v976 = vrot.slane %v660, 1
        %v977 = vsel %vm848, %v974, %v976
        %v978 = vrot.slane %v661, 1
        %v979 = vsel %vm848, %v976, %v978
        %v980 = vrot.slane %v662, 1
        %v981 = vsel %vm848, %v978, %v980
        %v982 = vrot.slane %v663, 1
        %v983 = vsel %vm848, %v980, %v982
        %v984 = vrot.slane %v664, 1
        %v985 = vrot.slane %v665, 1
        %v986 = vsel %vm848, %v984, %v985
        %v987 = vrot.slane %v666, 1
        %v988 = vsel %vm848, %v985, %v987
        %v989 = vrot.slane %v667, 1
        %v990 = vsel %vm848, %v987, %v989
        %v991 = vrot.slane %v668, 1
        %v992 = vsel %vm848, %v989, %v991
        %v993 = vrot.slane %v669, 1
        %v994 = vsel %vm848, %v991, %v993
        %v995 = vrot.slane %v670, 1
        %v996 = vsel %vm848, %v993, %v995
        %v997 = vrot.slane %v671, 1
        %v998 = vsel %vm848, %v995, %v997
        %v999 = vrot.slane %v672, 1
        %v1000 = vrot.slane %v673, 1
        %v1001 = vsel %vm848, %v999, %v1000
        %v1002 = vrot.slane %v674, 1
        %v1003 = vsel %vm848, %v1000, %v1002
        %v1004 = vrot.slane %v675, 1
        %v1005 = vsel %vm848, %v1002, %v1004
        %v1006 = vrot.slane %v676, 1
        %v1007 = vsel %vm848, %v1004, %v1006
        %v1008 = vrot.slane %v677, 1
        %v1009 = vsel %vm848, %v1006, %v1008
        %v1010 = vrot.slane %v678, 1
        %v1011 = vsel %vm848, %v1008, %v1010
        %v1012 = vrot.slane %v679, 1
        %v1013 = vsel %vm848, %v1010, %v1012
        %v1014 = vrot.slane %v680, 1
        %v1015 = vrot.slane %v681, 1
        %v1016 = vsel %vm848, %v1014, %v1015
        %v1017 = vrot.slane %v682, 1
        %v1018 = vsel %vm848, %v1015, %v1017
        %v1019 = vrot.slane %v683, 1
        %v1020 = vsel %vm848, %v1017, %v1019
        %v1021 = vrot.slane %v684, 1
        %v1022 = vsel %vm848, %v1019, %v1021
        %v1023 = vrot.slane %v685, 1
        %v1024 = vsel %vm848, %v1021, %v1023
        %v1025 = vrot.slane %v686, 1
        %v1026 = vsel %vm848, %v1023, %v1025
        %v1027 = vrot.slane %v687, 1
        %v1028 = vsel %vm848, %v1025, %v1027
        %v1029 = vrot.slane %v688, 1
        %v1030 = vrot.slane %v689, 1
        %v1031 = vsel %vm848, %v1029, %v1030
        %v1032 = vrot.slane %v690, 1
        %v1033 = vsel %vm848, %v1030, %v1032
        %v1034 = vrot.slane %v691, 1
        %v1035 = vsel %vm848, %v1032, %v1034
        %v1036 = vrot.slane %v692, 1
        %v1037 = vsel %vm848, %v1034, %v1036
        %v1038 = vrot.slane %v693, 1
        %v1039 = vsel %vm848, %v1036, %v1038
        %v1040 = vrot.slane %v694, 1
        %v1041 = vsel %vm848, %v1038, %v1040
        %v1042 = vrot.slane %v695, 1
        %v1043 = vsel %vm848, %v1040, %v1042
        %v1044 = vrot.slane %v696, 1
        %v1045 = vrot.slane %v697, 1
        %v1046 = vsel %vm848, %v1044, %v1045
        %v1047 = vrot.slane %v698, 1
        %v1048 = vsel %vm848, %v1045, %v1047
        %v1049 = vrot.slane %v699, 1
        %v1050 = vsel %vm848, %v1047, %v1049
        %v1051 = vrot.slane %v700, 1
        %v1052 = vsel %vm848, %v1049, %v1051
        %v1053 = vrot.slane %v701, 1
        %v1054 = vsel %vm848, %v1051, %v1053
        %v1055 = vrot.slane %v702, 1
        %v1056 = vsel %vm848, %v1053, %v1055
        %v1057 = vrot.slane %v703, 1
        %v1058 = vsel %vm848, %v1055, %v1057
        %v1059 = vrot.slane %v704, 1
        %v1060 = vrot.slane %v705, 1
        %v1061 = vsel %vm848, %v1059, %v1060
        %v1062 = vrot.slane %v706, 1
        %v1063 = vsel %vm848, %v1060, %v1062
        %v1064 = vrot.slane %v707, 1
        %v1065 = vsel %vm848, %v1062, %v1064
        %v1066 = vrot.slane %v708, 1
        %v1067 = vsel %vm848, %v1064, %v1066
        %v1068 = vrot.slane %v709, 1
        %v1069 = vsel %vm848, %v1066, %v1068
        %v1070 = vrot.slane %v710, 1
        %v1071 = vsel %vm848, %v1068, %v1070
        %v1072 = vrot.slane %v711, 1
        %v1073 = vsel %vm848, %v1070, %v1072
        %v1074 = vrot.slane %v712, 1
        %v1075 = vrot.slane %v713, 1
        %v1076 = vsel %vm848, %v1074, %v1075
        %v1077 = vrot.slane %v714, 1
        %v1078 = vsel %vm848, %v1075, %v1077
        %v1079 = vrot.slane %v715, 1
        %v1080 = vsel %vm848, %v1077, %v1079
        %v1081 = vrot.slane %v716, 1
        %v1082 = vsel %vm848, %v1079, %v1081
        %v1083 = vrot.slane %v717, 1
        %v1084 = vsel %vm848, %v1081, %v1083
        %v1085 = vrot.slane %v718, 1
        %v1086 = vsel %vm848, %v1083, %v1085
        %v1087 = vrot.slane %v719, 1
        %v1088 = vsel %vm848, %v1085, %v1087
        %v1201 = vpack.c.bf16 %v853, %v851
        %v1202 = vpack.c.bf16 %v857, %v855
        %v1203 = vpack.c.bf16 %v861, %v859
        %v1204 = vpack.c.bf16 %v866, %v863
        %v1205 = vpack.c.bf16 %v870, %v868
        %v1206 = vpack.c.bf16 %v874, %v872
        %v1207 = vpack.c.bf16 %v878, %v876
        %v1208 = vpack.c.bf16 %v883, %v881
        %v1209 = vpack.c.bf16 %v887, %v885
        %v1210 = vpack.c.bf16 %v891, %v889
        %v1211 = vpack.c.bf16 %v896, %v893
        %v1212 = vpack.c.bf16 %v900, %v898
        %v1213 = vpack.c.bf16 %v904, %v902
        %v1214 = vpack.c.bf16 %v908, %v906
        %v1215 = vpack.c.bf16 %v913, %v911
        %v1216 = vpack.c.bf16 %v917, %v915
        %v1217 = vpack.c.bf16 %v921, %v919
        %v1218 = vpack.c.bf16 %v926, %v923
        %v1219 = vpack.c.bf16 %v930, %v928
        %v1220 = vpack.c.bf16 %v934, %v932
        %v1221 = vpack.c.bf16 %v938, %v936
        %v1222 = vpack.c.bf16 %v943, %v941
        %v1223 = vpack.c.bf16 %v947, %v945
        %v1224 = vpack.c.bf16 %v951, %v949
        %v1225 = vpack.c.bf16 %v956, %v953
        %v1226 = vpack.c.bf16 %v960, %v958
        %v1227 = vpack.c.bf16 %v964, %v962
        %v1228 = vpack.c.bf16 %v968, %v966
        %v1229 = vpack.c.bf16 %v973, %v971
        %v1230 = vpack.c.bf16 %v977, %v975
        %v1231 = vpack.c.bf16 %v981, %v979
        %v1232 = vpack.c.bf16 %v986, %v983
        %v1233 = vpack.c.bf16 %v990, %v988
        %v1234 = vpack.c.bf16 %v994, %v992
        %v1235 = vpack.c.bf16 %v998, %v996
        %v1236 = vpack.c.bf16 %v1003, %v1001
        %v1237 = vpack.c.bf16 %v1007, %v1005
        %v1238 = vpack.c.bf16 %v1011, %v1009
        %v1239 = vpack.c.bf16 %v1016, %v1013
        %v1240 = vpack.c.bf16 %v1020, %v1018
        %v1241 = vpack.c.bf16 %v1024, %v1022
        %v1242 = vpack.c.bf16 %v1028, %v1026
        %v1243 = vpack.c.bf16 %v1033, %v1031
        %v1244 = vpack.c.bf16 %v1037, %v1035
        %v1245 = vpack.c.bf16 %v1041, %v1039
        %v1246 = vpack.c.bf16 %v1046, %v1043
        %v1247 = vpack.c.bf16 %v1050, %v1048
        %v1248 = vpack.c.bf16 %v1054, %v1052
        %v1249 = vpack.c.bf16 %v1058, %v1056
        %v1250 = vpack.c.bf16 %v1063, %v1061
        %v1251 = vpack.c.bf16 %v1067, %v1065
        %v1252 = vpack.c.bf16 %v1071, %v1069
        %v1253 = vpack.c.bf16 %v1076, %v1073
        %v1254 = vpack.c.bf16 %v1080, %v1078
        %v1255 = vpack.c.bf16 %v1084, %v1082
        %v1256 = vpack.c.bf16 %v1088, %v1086
        %1257 = vst [vmem:[#allocation2 + $0x8] sm:$0xff] %v1201
        %1258 = vst [vmem:[#allocation2 + $0x20] sm:$0xff] %v1202
        %1259 = vst [vmem:[#allocation2 + $0x38] sm:$0xff] %v1203
        %1260 = vst [vmem:[#allocation2 + $0x50] sm:$0xff] %v1204
        %1261 = vst [vmem:[#allocation2 + $0x68] sm:$0xff] %v1205
        %1262 = vst [vmem:[#allocation2 + $0x80] sm:$0xff] %v1206
        %1263 = vst [vmem:[#allocation2 + $0x98] sm:$0xff] %v1207
        %1264 = vst [vmem:[#allocation2 + $0xb0] sm:$0xff] %v1208
        %1265 = vst [vmem:[#allocation2 + $0xc8] sm:$0xff] %v1209
        %1266 = vst [vmem:[#allocation2 + $0xe0] sm:$0xff] %v1210
        %1267 = vst [vmem:[#allocation2 + $0xf8] sm:$0xff] %v1211
        %1268 = vst [vmem:[#allocation2 + $0x110] sm:$0xff] %v1212
        %1269 = vst [vmem:[#allocation2 + $0x128] sm:$0xff] %v1213
        %1270 = vst [vmem:[#allocation2 + $0x140] sm:$0xff] %v1214
        %1271 = vst [vmem:[#allocation2 + $0x158] sm:$0xff] %v1215
        %1272 = vst [vmem:[#allocation2 + $0x170] sm:$0xff] %v1216
        %1273 = vst [vmem:[#allocation2 + $0x188] sm:$0xff] %v1217
        %1274 = vst [vmem:[#allocation2 + $0x1a0] sm:$0xff] %v1218
        %1275 = vst [vmem:[#allocation2 + $0x1b8] sm:$0xff] %v1219
        %1276 = vst [vmem:[#allocation2 + $0x1d0] sm:$0xff] %v1220
        %1277 = vst [vmem:[#allocation2 + $0x1e8] sm:$0xff] %v1221
        %1278 = vst [vmem:[#allocation2 + $0x200] sm:$0xff] %v1222
        %1279 = vst [vmem:[#allocation2 + $0x218] sm:$0xff] %v1223
        %1280 = vst [vmem:[#allocation2 + $0x230] sm:$0xff] %v1224
        %1281 = vst [vmem:[#allocation2 + $0x248] sm:$0xff] %v1225
        %1282 = vst [vmem:[#allocation2 + $0x260] sm:$0xff] %v1226
        %1283 = vst [vmem:[#allocation2 + $0x278] sm:$0xff] %v1227
        %1284 = vst [vmem:[#allocation2 + $0x290] sm:$0xff] %v1228
        %1285 = vst [vmem:[#allocation2 + $0x2a8] sm:$0xff] %v1229
        %1286 = vst [vmem:[#allocation2 + $0x2c0] sm:$0xff] %v1230
        %1287 = vst [vmem:[#allocation2 + $0x2d8] sm:$0xff] %v1231
        %1288 = vst [vmem:[#allocation2 + $0x2f0] sm:$0xff] %v1232
        %1289 = vst [vmem:[#allocation2 + $0x308] sm:$0xff] %v1233
        %1290 = vst [vmem:[#allocation2 + $0x320] sm:$0xff] %v1234
        %1291 = vst [vmem:[#allocation2 + $0x338] sm:$0xff] %v1235
        %1292 = vst [vmem:[#allocation2 + $0x350] sm:$0xff] %v1236
        %1293 = vst [vmem:[#allocation2 + $0x368] sm:$0xff] %v1237
        %1294 = vst [vmem:[#allocation2 + $0x380] sm:$0xff] %v1238
        %1295 = vst [vmem:[#allocation2 + $0x398] sm:$0xff] %v1239
        %1296 = vst [vmem:[#allocation2 + $0x3b0] sm:$0xff] %v1240
        %1297 = vst [vmem:[#allocation2 + $0x3c8] sm:$0xff] %v1241
        %1298 = vst [vmem:[#allocation2 + $0x3e0] sm:$0xff] %v1242
        %1299 = vst [vmem:[#allocation2 + $0x3f8] sm:$0xff] %v1243
        %1300 = vst [vmem:[#allocation2 + $0x410] sm:$0xff] %v1244
        %1301 = vst [vmem:[#allocation2 + $0x428] sm:$0xff] %v1245
        %1302 = vst [vmem:[#allocation2 + $0x440] sm:$0xff] %v1246
        %1303 = vst [vmem:[#allocation2 + $0x458] sm:$0xff] %v1247
        %1304 = vst [vmem:[#allocation2 + $0x470] sm:$0xff] %v1248
        %1305 = vst [vmem:[#allocation2 + $0x488] sm:$0xff] %v1249
        %1306 = vst [vmem:[#allocation2 + $0x4a0] sm:$0xff] %v1250
        %1307 = vst [vmem:[#allocation2 + $0x4b8] sm:$0xff] %v1251
        %1308 = vst [vmem:[#allocation2 + $0x4d0] sm:$0xff] %v1252
        %1309 = vst [vmem:[#allocation2 + $0x4e8] sm:$0xff] %v1253
        %1310 = vst [vmem:[#allocation2 + $0x500] sm:$0xff] %v1254
        %1311 = vst [vmem:[#allocation2 + $0x518] sm:$0xff] %v1255
        %1312 = vst [vmem:[#allocation2 + $0x530] sm:$0xff] %v1256
        %v1313 = vld [vmem:[%s127] sm:$0xe]
        %v1314 = vld [vmem:[%s127 + $0x4] sm:$0xf]
        %v1315 = vld [vmem:[%s127 + $0x8] sm:$0xf]
        %v1316 = vld [vmem:[%s127 + $0xc] sm:$0xf]
        %v1317 = vld [vmem:[%s127 + $0x10] sm:$0xf]
        %v1318 = vld [vmem:[%s127 + $0x14] sm:$0xf]
        %v1319 = vld [vmem:[%s127 + $0x18] sm:$0xf]
        %v1320 = vld [vmem:[%s127 + $0x1c] sm:$0x1]
        %v1321 = vld [vmem:[%s127 + $0x20] sm:$0xe]
        %v1322 = vld [vmem:[%s127 + $0x24] sm:$0xf]
        %v1323 = vld [vmem:[%s127 + $0x28] sm:$0xf]
        %v1324 = vld [vmem:[%s127 + $0x2c] sm:$0xf]
        %v1325 = vld [vmem:[%s127 + $0x30] sm:$0xf]
        %v1326 = vld [vmem:[%s127 + $0x34] sm:$0xf]
        %v1327 = vld [vmem:[%s127 + $0x38] sm:$0xf]
        %v1328 = vld [vmem:[%s127 + $0x3c] sm:$0x1]
        %v1329 = vld [vmem:[%s127 + $0x40] sm:$0xe]
        %v1330 = vld [vmem:[%s127 + $0x44] sm:$0xf]
        %v1331 = vld [vmem:[%s127 + $0x48] sm:$0xf]
        %v1332 = vld [vmem:[%s127 + $0x4c] sm:$0xf]
        %v1333 = vld [vmem:[%s127 + $0x50] sm:$0xf]
        %v1334 = vld [vmem:[%s127 + $0x54] sm:$0xf]
        %v1335 = vld [vmem:[%s127 + $0x58] sm:$0xf]
        %v1336 = vld [vmem:[%s127 + $0x5c] sm:$0x1]
        %v1337 = vld [vmem:[%s127 + $0x60] sm:$0xe]
        %v1338 = vld [vmem:[%s127 + $0x64] sm:$0xf]
        %v1339 = vld [vmem:[%s127 + $0x68] sm:$0xf]
        %v1340 = vld [vmem:[%s127 + $0x6c] sm:$0xf]
        %v1341 = vld [vmem:[%s127 + $0x70] sm:$0xf]
        %v1342 = vld [vmem:[%s127 + $0x74] sm:$0xf]
        %v1343 = vld [vmem:[%s127 + $0x78] sm:$0xf]
        %v1344 = vld [vmem:[%s127 + $0x7c] sm:$0x1]
        %v1345 = vld [vmem:[%s127 + $0x80] sm:$0xe]
        %v1346 = vld [vmem:[%s127 + $0x84] sm:$0xf]
        %v1347 = vld [vmem:[%s127 + $0x88] sm:$0xf]
        %v1348 = vld [vmem:[%s127 + $0x8c] sm:$0xf]
        %v1349 = vld [vmem:[%s127 + $0x90] sm:$0xf]
        %v1350 = vld [vmem:[%s127 + $0x94] sm:$0xf]
        %v1351 = vld [vmem:[%s127 + $0x98] sm:$0xf]
        %v1352 = vld [vmem:[%s127 + $0x9c] sm:$0x1]
        %v1353 = vld [vmem:[%s127 + $0xa0] sm:$0xe]
        %v1354 = vld [vmem:[%s127 + $0xa4] sm:$0xf]
        %v1355 = vld [vmem:[%s127 + $0xa8] sm:$0xf]
        %v1356 = vld [vmem:[%s127 + $0xac] sm:$0xf]
        %v1357 = vld [vmem:[%s127 + $0xb0] sm:$0xf]
        %v1358 = vld [vmem:[%s127 + $0xb4] sm:$0xf]
        %v1359 = vld [vmem:[%s127 + $0xb8] sm:$0xf]
        %v1360 = vld [vmem:[%s127 + $0xbc] sm:$0x1]
        %v1361 = vld [vmem:[%s127 + $0xc0] sm:$0xe]
        %v1362 = vld [vmem:[%s127 + $0xc4] sm:$0xf]
        %v1363 = vld [vmem:[%s127 + $0xc8] sm:$0xf]
        %v1364 = vld [vmem:[%s127 + $0xcc] sm:$0xf]
        %v1365 = vld [vmem:[%s127 + $0xd0] sm:$0xf]
        %v1366 = vld [vmem:[%s127 + $0xd4] sm:$0xf]
        %v1367 = vld [vmem:[%s127 + $0xd8] sm:$0xf]
        %v1368 = vld [vmem:[%s127 + $0xdc] sm:$0x1]
        %v1369 = vld [vmem:[%s127 + $0xe0] sm:$0xe]
        %v1370 = vld [vmem:[%s127 + $0xe4] sm:$0xf]
        %v1371 = vld [vmem:[%s127 + $0xe8] sm:$0xf]
        %v1372 = vld [vmem:[%s127 + $0xec] sm:$0xf]
        %v1373 = vld [vmem:[%s127 + $0xf0] sm:$0xf]
        %v1374 = vld [vmem:[%s127 + $0xf4] sm:$0xf]
        %v1375 = vld [vmem:[%s127 + $0xf8] sm:$0xf]
        %v1376 = vld [vmem:[%s127 + $0xfc] sm:$0x1]
        %v1377 = vld [vmem:[%s127 + $0x100] sm:$0xe]
        %v1378 = vld [vmem:[%s127 + $0x104] sm:$0xf]
        %v1379 = vld [vmem:[%s127 + $0x108] sm:$0xf]
        %v1380 = vld [vmem:[%s127 + $0x10c] sm:$0xf]
        %v1381 = vld [vmem:[%s127 + $0x110] sm:$0xf]
        %v1382 = vld [vmem:[%s127 + $0x114] sm:$0xf]
        %v1383 = vld [vmem:[%s127 + $0x118] sm:$0xf]
        %v1384 = vld [vmem:[%s127 + $0x11c] sm:$0x1]
        %v1385 = vld [vmem:[%s127 + $0x120] sm:$0xe]
        %v1386 = vld [vmem:[%s127 + $0x124] sm:$0xf]
        %v1387 = vld [vmem:[%s127 + $0x128] sm:$0xf]
        %v1388 = vld [vmem:[%s127 + $0x12c] sm:$0xf]
        %v1389 = vld [vmem:[%s127 + $0x130] sm:$0xf]
        %v1390 = vld [vmem:[%s127 + $0x134] sm:$0xf]
        %v1391 = vld [vmem:[%s127 + $0x138] sm:$0xf]
        %v1392 = vld [vmem:[%s127 + $0x13c] sm:$0x1]
        %v1393 = vld [vmem:[%s127 + $0x140] sm:$0xe]
        %v1394 = vld [vmem:[%s127 + $0x144] sm:$0xf]
        %v1395 = vld [vmem:[%s127 + $0x148] sm:$0xf]
        %v1396 = vld [vmem:[%s127 + $0x14c] sm:$0xf]
        %v1397 = vld [vmem:[%s127 + $0x150] sm:$0xf]
        %v1398 = vld [vmem:[%s127 + $0x154] sm:$0xf]
        %v1399 = vld [vmem:[%s127 + $0x158] sm:$0xf]
        %v1400 = vld [vmem:[%s127 + $0x15c] sm:$0x1]
        %v1401 = vld [vmem:[%s127 + $0x160] sm:$0xe]
        %v1402 = vld [vmem:[%s127 + $0x164] sm:$0xf]
        %v1403 = vld [vmem:[%s127 + $0x168] sm:$0xf]
        %v1404 = vld [vmem:[%s127 + $0x16c] sm:$0xf]
        %v1405 = vld [vmem:[%s127 + $0x170] sm:$0xf]
        %v1406 = vld [vmem:[%s127 + $0x174] sm:$0xf]
        %v1407 = vld [vmem:[%s127 + $0x178] sm:$0xf]
        %v1408 = vld [vmem:[%s127 + $0x17c] sm:$0x1]
        %v1409 = vld [vmem:[%s127 + $0x180] sm:$0xe]
        %v1410 = vld [vmem:[%s127 + $0x184] sm:$0xf]
        %v1411 = vld [vmem:[%s127 + $0x188] sm:$0xf]
        %v1412 = vld [vmem:[%s127 + $0x18c] sm:$0xf]
        %v1413 = vld [vmem:[%s127 + $0x190] sm:$0xf]
        %v1414 = vld [vmem:[%s127 + $0x194] sm:$0xf]
        %v1415 = vld [vmem:[%s127 + $0x198] sm:$0xf]
        %v1416 = vld [vmem:[%s127 + $0x19c] sm:$0x1]
        %v1417 = vld [vmem:[%s127 + $0x1a0] sm:$0xe]
        %v1418 = vld [vmem:[%s127 + $0x1a4] sm:$0xf]
        %v1419 = vld [vmem:[%s127 + $0x1a8] sm:$0xf]
        %v1420 = vld [vmem:[%s127 + $0x1ac] sm:$0xf]
        %v1421 = vld [vmem:[%s127 + $0x1b0] sm:$0xf]
        %v1422 = vld [vmem:[%s127 + $0x1b4] sm:$0xf]
        %v1423 = vld [vmem:[%s127 + $0x1b8] sm:$0xf]
        %v1424 = vld [vmem:[%s127 + $0x1bc] sm:$0x1]
        %v1425 = vld [vmem:[%s127 + $0x1c0] sm:$0xe]
        %v1426 = vld [vmem:[%s127 + $0x1c4] sm:$0xf]
        %v1427 = vld [vmem:[%s127 + $0x1c8] sm:$0xf]
        %v1428 = vld [vmem:[%s127 + $0x1cc] sm:$0xf]
        %v1429 = vld [vmem:[%s127 + $0x1d0] sm:$0xf]
        %v1430 = vld [vmem:[%s127 + $0x1d4] sm:$0xf]
        %v1431 = vld [vmem:[%s127 + $0x1d8] sm:$0xf]
        %v1432 = vld [vmem:[%s127 + $0x1dc] sm:$0x1]
        %v1433 = vld [vmem:[%s127 + $0x1e0] sm:$0xe]
        %v1434 = vld [vmem:[%s127 + $0x1e4] sm:$0xf]
        %v1435 = vld [vmem:[%s127 + $0x1e8] sm:$0xf]
        %v1436 = vld [vmem:[%s127 + $0x1ec] sm:$0xf]
        %v1437 = vld [vmem:[%s127 + $0x1f0] sm:$0xf]
        %v1438 = vld [vmem:[%s127 + $0x1f4] sm:$0xf]
        %v1439 = vld [vmem:[%s127 + $0x1f8] sm:$0xf]
        %v1440 = vld [vmem:[%s127 + $0x1fc] sm:$0x1]
        %v1441 = vunpack.c.l.bf16 %v1313
        %v1442 = vunpack.c.l.bf16 %v1314
        %v1443 = vunpack.c.l.bf16 %v1315
        %v1444 = vunpack.c.l.bf16 %v1316
        %v1445 = vunpack.c.l.bf16 %v1317
        %v1446 = vunpack.c.l.bf16 %v1318
        %v1447 = vunpack.c.l.bf16 %v1319
        %v1448 = vunpack.c.l.bf16 %v1320
        %v1449 = vunpack.c.l.bf16 %v1321
        %v1450 = vunpack.c.l.bf16 %v1322
        %v1451 = vunpack.c.l.bf16 %v1323
        %v1452 = vunpack.c.l.bf16 %v1324
        %v1453 = vunpack.c.l.bf16 %v1325
        %v1454 = vunpack.c.l.bf16 %v1326
        %v1455 = vunpack.c.l.bf16 %v1327
        %v1456 = vunpack.c.l.bf16 %v1328
        %v1457 = vunpack.c.l.bf16 %v1329
        %v1458 = vunpack.c.l.bf16 %v1330
        %v1459 = vunpack.c.l.bf16 %v1331
        %v1460 = vunpack.c.l.bf16 %v1332
        %v1461 = vunpack.c.l.bf16 %v1333
        %v1462 = vunpack.c.l.bf16 %v1334
        %v1463 = vunpack.c.l.bf16 %v1335
        %v1464 = vunpack.c.l.bf16 %v1336
        %v1465 = vunpack.c.l.bf16 %v1337
        %v1466 = vunpack.c.l.bf16 %v1338
        %v1467 = vunpack.c.l.bf16 %v1339
        %v1468 = vunpack.c.l.bf16 %v1340
        %v1469 = vunpack.c.l.bf16 %v1341
        %v1470 = vunpack.c.l.bf16 %v1342
        %v1471 = vunpack.c.l.bf16 %v1343
        %v1472 = vunpack.c.l.bf16 %v1344
        %v1473 = vunpack.c.l.bf16 %v1345
        %v1474 = vunpack.c.l.bf16 %v1346
        %v1475 = vunpack.c.l.bf16 %v1347
        %v1476 = vunpack.c.l.bf16 %v1348
        %v1477 = vunpack.c.l.bf16 %v1349
        %v1478 = vunpack.c.l.bf16 %v1350
        %v1479 = vunpack.c.l.bf16 %v1351
        %v1480 = vunpack.c.l.bf16 %v1352
        %v1481 = vunpack.c.l.bf16 %v1353
        %v1482 = vunpack.c.l.bf16 %v1354
        %v1483 = vunpack.c.l.bf16 %v1355
        %v1484 = vunpack.c.l.bf16 %v1356
        %v1485 = vunpack.c.l.bf16 %v1357
        %v1486 = vunpack.c.l.bf16 %v1358
        %v1487 = vunpack.c.l.bf16 %v1359
        %v1488 = vunpack.c.l.bf16 %v1360
        %v1489 = vunpack.c.l.bf16 %v1361
        %v1490 = vunpack.c.l.bf16 %v1362
        %v1491 = vunpack.c.l.bf16 %v1363
        %v1492 = vunpack.c.l.bf16 %v1364
        %v1493 = vunpack.c.l.bf16 %v1365
        %v1494 = vunpack.c.l.bf16 %v1366
        %v1495 = vunpack.c.l.bf16 %v1367
        %v1496 = vunpack.c.l.bf16 %v1368
        %v1497 = vunpack.c.l.bf16 %v1369
        %v1498 = vunpack.c.l.bf16 %v1370
        %v1499 = vunpack.c.l.bf16 %v1371
        %v1500 = vunpack.c.l.bf16 %v1372
        %v1501 = vunpack.c.l.bf16 %v1373
        %v1502 = vunpack.c.l.bf16 %v1374
        %v1503 = vunpack.c.l.bf16 %v1375
        %v1504 = vunpack.c.l.bf16 %v1376
        %v1505 = vunpack.c.l.bf16 %v1377
        %v1506 = vunpack.c.l.bf16 %v1378
        %v1507 = vunpack.c.l.bf16 %v1379
        %v1508 = vunpack.c.l.bf16 %v1380
        %v1509 = vunpack.c.l.bf16 %v1381
        %v1510 = vunpack.c.l.bf16 %v1382
        %v1511 = vunpack.c.l.bf16 %v1383
        %v1512 = vunpack.c.l.bf16 %v1384
        %v1513 = vunpack.c.l.bf16 %v1385
        %v1514 = vunpack.c.l.bf16 %v1386
        %v1515 = vunpack.c.l.bf16 %v1387
        %v1516 = vunpack.c.l.bf16 %v1388
        %v1517 = vunpack.c.l.bf16 %v1389
        %v1518 = vunpack.c.l.bf16 %v1390
        %v1519 = vunpack.c.l.bf16 %v1391
        %v1520 = vunpack.c.l.bf16 %v1392
        %v1521 = vunpack.c.l.bf16 %v1393
        %v1522 = vunpack.c.l.bf16 %v1394
        %v1523 = vunpack.c.l.bf16 %v1395
        %v1524 = vunpack.c.l.bf16 %v1396
        %v1525 = vunpack.c.l.bf16 %v1397
        %v1526 = vunpack.c.l.bf16 %v1398
        %v1527 = vunpack.c.l.bf16 %v1399
        %v1528 = vunpack.c.l.bf16 %v1400
        %v1529 = vunpack.c.l.bf16 %v1401
        %v1530 = vunpack.c.l.bf16 %v1402
        %v1531 = vunpack.c.l.bf16 %v1403
        %v1532 = vunpack.c.l.bf16 %v1404
        %v1533 = vunpack.c.l.bf16 %v1405
        %v1534 = vunpack.c.l.bf16 %v1406
        %v1535 = vunpack.c.l.bf16 %v1407
        %v1536 = vunpack.c.l.bf16 %v1408
        %v1537 = vunpack.c.l.bf16 %v1409
        %v1538 = vunpack.c.l.bf16 %v1410
        %v1539 = vunpack.c.l.bf16 %v1411
        %v1540 = vunpack.c.l.bf16 %v1412
        %v1541 = vunpack.c.l.bf16 %v1413
        %v1542 = vunpack.c.l.bf16 %v1414
        %v1543 = vunpack.c.l.bf16 %v1415
        %v1544 = vunpack.c.l.bf16 %v1416
        %v1545 = vunpack.c.l.bf16 %v1417
        %v1546 = vunpack.c.l.bf16 %v1418
        %v1547 = vunpack.c.l.bf16 %v1419
        %v1548 = vunpack.c.l.bf16 %v1420
        %v1549 = vunpack.c.l.bf16 %v1421
        %v1550 = vunpack.c.l.bf16 %v1422
        %v1551 = vunpack.c.l.bf16 %v1423
        %v1552 = vunpack.c.l.bf16 %v1424
        %v1553 = vunpack.c.l.bf16 %v1425
        %v1554 = vunpack.c.l.bf16 %v1426
        %v1555 = vunpack.c.l.bf16 %v1427
        %v1556 = vunpack.c.l.bf16 %v1428
        %v1557 = vunpack.c.l.bf16 %v1429
        %v1558 = vunpack.c.l.bf16 %v1430
        %v1559 = vunpack.c.l.bf16 %v1431
        %v1560 = vunpack.c.l.bf16 %v1432
        %v1561 = vunpack.c.l.bf16 %v1433
        %v1562 = vunpack.c.l.bf16 %v1434
        %v1563 = vunpack.c.l.bf16 %v1435
        %v1564 = vunpack.c.l.bf16 %v1436
        %v1565 = vunpack.c.l.bf16 %v1437
        %v1566 = vunpack.c.l.bf16 %v1438
        %v1567 = vunpack.c.l.bf16 %v1439
        %v1568 = vunpack.c.l.bf16 %v1440
        %vm1697 = vcmask 1045504
        %v1698 = vrot.slane %v1441, 2
        %v1699 = vrot.slane %v1442, 2
        %v1700 = vsel %vm1697, %v1698, %v1699
        %v1701 = vrot.slane %v1443, 2
        %v1702 = vsel %vm1697, %v1699, %v1701
        %v1703 = vrot.slane %v1444, 2
        %v1704 = vsel %vm1697, %v1701, %v1703
        %v1705 = vrot.slane %v1445, 2
        %v1706 = vsel %vm1697, %v1703, %v1705
        %v1707 = vrot.slane %v1446, 2
        %v1708 = vsel %vm1697, %v1705, %v1707
        %v1709 = vrot.slane %v1447, 2
        %v1710 = vsel %vm1697, %v1707, %v1709
        %v1711 = vrot.slane %v1448, 2
        %v1712 = vsel %vm1697, %v1709, %v1711
        %v1713 = vrot.slane %v1449, 2
        %v1714 = vrot.slane %v1450, 2
        %v1715 = vsel %vm1697, %v1713, %v1714
        %v1716 = vrot.slane %v1451, 2
        %v1717 = vsel %vm1697, %v1714, %v1716
        %v1718 = vrot.slane %v1452, 2
        %v1719 = vsel %vm1697, %v1716, %v1718
        %v1720 = vrot.slane %v1453, 2
        %v1721 = vsel %vm1697, %v1718, %v1720
        %v1722 = vrot.slane %v1454, 2
        %v1723 = vsel %vm1697, %v1720, %v1722
        %v1724 = vrot.slane %v1455, 2
        %v1725 = vsel %vm1697, %v1722, %v1724
        %v1726 = vrot.slane %v1456, 2
        %v1727 = vsel %vm1697, %v1724, %v1726
        %v1728 = vrot.slane %v1457, 2
        %v1729 = vrot.slane %v1458, 2
        %v1730 = vsel %vm1697, %v1728, %v1729
        %v1731 = vrot.slane %v1459, 2
        %v1732 = vsel %vm1697, %v1729, %v1731
        %v1733 = vrot.slane %v1460, 2
        %v1734 = vsel %vm1697, %v1731, %v1733
        %v1735 = vrot.slane %v1461, 2
        %v1736 = vsel %vm1697, %v1733, %v1735
        %v1737 = vrot.slane %v1462, 2
        %v1738 = vsel %vm1697, %v1735, %v1737
        %v1739 = vrot.slane %v1463, 2
        %v1740 = vsel %vm1697, %v1737, %v1739
        %v1741 = vrot.slane %v1464, 2
        %v1742 = vsel %vm1697, %v1739, %v1741
        %v1743 = vrot.slane %v1465, 2
        %v1744 = vrot.slane %v1466, 2
        %v1745 = vsel %vm1697, %v1743, %v1744
        %v1746 = vrot.slane %v1467, 2
        %v1747 = vsel %vm1697, %v1744, %v1746
        %v1748 = vrot.slane %v1468, 2
        %v1749 = vsel %vm1697, %v1746, %v1748
        %v1750 = vrot.slane %v1469, 2
        %v1751 = vsel %vm1697, %v1748, %v1750
        %v1752 = vrot.slane %v1470, 2
        %v1753 = vsel %vm1697, %v1750, %v1752
        %v1754 = vrot.slane %v1471, 2
        %v1755 = vsel %vm1697, %v1752, %v1754
        %v1756 = vrot.slane %v1472, 2
        %v1757 = vsel %vm1697, %v1754, %v1756
        %v1758 = vrot.slane %v1473, 2
        %v1759 = vrot.slane %v1474, 2
        %v1760 = vsel %vm1697, %v1758, %v1759
        %v1761 = vrot.slane %v1475, 2
        %v1762 = vsel %vm1697, %v1759, %v1761
        %v1763 = vrot.slane %v1476, 2
        %v1764 = vsel %vm1697, %v1761, %v1763
        %v1765 = vrot.slane %v1477, 2
        %v1766 = vsel %vm1697, %v1763, %v1765
        %v1767 = vrot.slane %v1478, 2
        %v1768 = vsel %vm1697, %v1765, %v1767
        %v1769 = vrot.slane %v1479, 2
        %v1770 = vsel %vm1697, %v1767, %v1769
        %v1771 = vrot.slane %v1480, 2
        %v1772 = vsel %vm1697, %v1769, %v1771
        %v1773 = vrot.slane %v1481, 2
        %v1774 = vrot.slane %v1482, 2
        %v1775 = vsel %vm1697, %v1773, %v1774
        %v1776 = vrot.slane %v1483, 2
        %v1777 = vsel %vm1697, %v1774, %v1776
        %v1778 = vrot.slane %v1484, 2
        %v1779 = vsel %vm1697, %v1776, %v1778
        %v1780 = vrot.slane %v1485, 2
        %v1781 = vsel %vm1697, %v1778, %v1780
        %v1782 = vrot.slane %v1486, 2
        %v1783 = vsel %vm1697, %v1780, %v1782
        %v1784 = vrot.slane %v1487, 2
        %v1785 = vsel %vm1697, %v1782, %v1784
        %v1786 = vrot.slane %v1488, 2
        %v1787 = vsel %vm1697, %v1784, %v1786
        %v1788 = vrot.slane %v1489, 2
        %v1789 = vrot.slane %v1490, 2
        %v1790 = vsel %vm1697, %v1788, %v1789
        %v1791 = vrot.slane %v1491, 2
        %v1792 = vsel %vm1697, %v1789, %v1791
        %v1793 = vrot.slane %v1492, 2
        %v1794 = vsel %vm1697, %v1791, %v1793
        %v1795 = vrot.slane %v1493, 2
        %v1796 = vsel %vm1697, %v1793, %v1795
        %v1797 = vrot.slane %v1494, 2
        %v1798 = vsel %vm1697, %v1795, %v1797
        %v1799 = vrot.slane %v1495, 2
        %v1800 = vsel %vm1697, %v1797, %v1799
        %v1801 = vrot.slane %v1496, 2
        %v1802 = vsel %vm1697, %v1799, %v1801
        %v1803 = vrot.slane %v1497, 2
        %v1804 = vrot.slane %v1498, 2
        %v1805 = vsel %vm1697, %v1803, %v1804
        %v1806 = vrot.slane %v1499, 2
        %v1807 = vsel %vm1697, %v1804, %v1806
        %v1808 = vrot.slane %v1500, 2
        %v1809 = vsel %vm1697, %v1806, %v1808
        %v1810 = vrot.slane %v1501, 2
        %v1811 = vsel %vm1697, %v1808, %v1810
        %v1812 = vrot.slane %v1502, 2
        %v1813 = vsel %vm1697, %v1810, %v1812
        %v1814 = vrot.slane %v1503, 2
        %v1815 = vsel %vm1697, %v1812, %v1814
        %v1816 = vrot.slane %v1504, 2
        %v1817 = vsel %vm1697, %v1814, %v1816
        %v1818 = vrot.slane %v1505, 2
        %v1819 = vrot.slane %v1506, 2
        %v1820 = vsel %vm1697, %v1818, %v1819
        %v1821 = vrot.slane %v1507, 2
        %v1822 = vsel %vm1697, %v1819, %v1821
        %v1823 = vrot.slane %v1508, 2
        %v1824 = vsel %vm1697, %v1821, %v1823
        %v1825 = vrot.slane %v1509, 2
        %v1826 = vsel %vm1697, %v1823, %v1825
        %v1827 = vrot.slane %v1510, 2
        %v1828 = vsel %vm1697, %v1825, %v1827
        %v1829 = vrot.slane %v1511, 2
        %v1830 = vsel %vm1697, %v1827, %v1829
        %v1831 = vrot.slane %v1512, 2
        %v1832 = vsel %vm1697, %v1829, %v1831
        %v1833 = vrot.slane %v1513, 2
        %v1834 = vrot.slane %v1514, 2
        %v1835 = vsel %vm1697, %v1833, %v1834
        %v1836 = vrot.slane %v1515, 2
        %v1837 = vsel %vm1697, %v1834, %v1836
        %v1838 = vrot.slane %v1516, 2
        %v1839 = vsel %vm1697, %v1836, %v1838
        %v1840 = vrot.slane %v1517, 2
        %v1841 = vsel %vm1697, %v1838, %v1840
        %v1842 = vrot.slane %v1518, 2
        %v1843 = vsel %vm1697, %v1840, %v1842
        %v1844 = vrot.slane %v1519, 2
        %v1845 = vsel %vm1697, %v1842, %v1844
        %v1846 = vrot.slane %v1520, 2
        %v1847 = vsel %vm1697, %v1844, %v1846
        %v1848 = vrot.slane %v1521, 2
        %v1849 = vrot.slane %v1522, 2
        %v1850 = vsel %vm1697, %v1848, %v1849
        %v1851 = vrot.slane %v1523, 2
        %v1852 = vsel %vm1697, %v1849, %v1851
        %v1853 = vrot.slane %v1524, 2
        %v1854 = vsel %vm1697, %v1851, %v1853
        %v1855 = vrot.slane %v1525, 2
        %v1856 = vsel %vm1697, %v1853, %v1855
        %v1857 = vrot.slane %v1526, 2
        %v1858 = vsel %vm1697, %v1855, %v1857
        %v1859 = vrot.slane %v1527, 2
        %v1860 = vsel %vm1697, %v1857, %v1859
        %v1861 = vrot.slane %v1528, 2
        %v1862 = vsel %vm1697, %v1859, %v1861
        %v1863 = vrot.slane %v1529, 2
        %v1864 = vrot.slane %v1530, 2
        %v1865 = vsel %vm1697, %v1863, %v1864
        %v1866 = vrot.slane %v1531, 2
        %v1867 = vsel %vm1697, %v1864, %v1866
        %v1868 = vrot.slane %v1532, 2
        %v1869 = vsel %vm1697, %v1866, %v1868
        %v1870 = vrot.slane %v1533, 2
        %v1871 = vsel %vm1697, %v1868, %v1870
        %v1872 = vrot.slane %v1534, 2
        %v1873 = vsel %vm1697, %v1870, %v1872
        %v1874 = vrot.slane %v1535, 2
        %v1875 = vsel %vm1697, %v1872, %v1874
        %v1876 = vrot.slane %v1536, 2
        %v1877 = vsel %vm1697, %v1874, %v1876
        %v1878 = vrot.slane %v1537, 2
        %v1879 = vrot.slane %v1538, 2
        %v1880 = vsel %vm1697, %v1878, %v1879
        %v1881 = vrot.slane %v1539, 2
        %v1882 = vsel %vm1697, %v1879, %v1881
        %v1883 = vrot.slane %v1540, 2
        %v1884 = vsel %vm1697, %v1881, %v1883
        %v1885 = vrot.slane %v1541, 2
        %v1886 = vsel %vm1697, %v1883, %v1885
        %v1887 = vrot.slane %v1542, 2
        %v1888 = vsel %vm1697, %v1885, %v1887
        %v1889 = vrot.slane %v1543, 2
        %v1890 = vsel %vm1697, %v1887, %v1889
        %v1891 = vrot.slane %v1544, 2
        %v1892 = vsel %vm1697, %v1889, %v1891
        %v1893 = vrot.slane %v1545, 2
        %v1894 = vrot.slane %v1546, 2
        %v1895 = vsel %vm1697, %v1893, %v1894
        %v1896 = vrot.slane %v1547, 2
        %v1897 = vsel %vm1697, %v1894, %v1896
        %v1898 = vrot.slane %v1548, 2
        %v1899 = vsel %vm1697, %v1896, %v1898
        %v1900 = vrot.slane %v1549, 2
        %v1901 = vsel %vm1697, %v1898, %v1900
        %v1902 = vrot.slane %v1550, 2
        %v1903 = vsel %vm1697, %v1900, %v1902
        %v1904 = vrot.slane %v1551, 2
        %v1905 = vsel %vm1697, %v1902, %v1904
        %v1906 = vrot.slane %v1552, 2
        %v1907 = vsel %vm1697, %v1904, %v1906
        %v1908 = vrot.slane %v1553, 2
        %v1909 = vrot.slane %v1554, 2
        %v1910 = vsel %vm1697, %v1908, %v1909
        %v1911 = vrot.slane %v1555, 2
        %v1912 = vsel %vm1697, %v1909, %v1911
        %v1913 = vrot.slane %v1556, 2
        %v1914 = vsel %vm1697, %v1911, %v1913
        %v1915 = vrot.slane %v1557, 2
        %v1916 = vsel %vm1697, %v1913, %v1915
        %v1917 = vrot.slane %v1558, 2
        %v1918 = vsel %vm1697, %v1915, %v1917
        %v1919 = vrot.slane %v1559, 2
        %v1920 = vsel %vm1697, %v1917, %v1919
        %v1921 = vrot.slane %v1560, 2
        %v1922 = vsel %vm1697, %v1919, %v1921
        %v1923 = vrot.slane %v1561, 2
        %v1924 = vrot.slane %v1562, 2
        %v1925 = vsel %vm1697, %v1923, %v1924
        %v1926 = vrot.slane %v1563, 2
        %v1927 = vsel %vm1697, %v1924, %v1926
        %v1928 = vrot.slane %v1564, 2
        %v1929 = vsel %vm1697, %v1926, %v1928
        %v1930 = vrot.slane %v1565, 2
        %v1931 = vsel %vm1697, %v1928, %v1930
        %v1932 = vrot.slane %v1566, 2
        %v1933 = vsel %vm1697, %v1930, %v1932
        %v1934 = vrot.slane %v1567, 2
        %v1935 = vsel %vm1697, %v1932, %v1934
        %v1936 = vrot.slane %v1568, 2
        %v1937 = vsel %vm1697, %v1934, %v1936
        %v2050 = vpack.c.bf16 %v1702, %v1700
        %v2051 = vpack.c.bf16 %v1706, %v1704
        %v2052 = vpack.c.bf16 %v1710, %v1708
        %v2053 = vpack.c.bf16 %v1715, %v1712
        %v2054 = vpack.c.bf16 %v1719, %v1717
        %v2055 = vpack.c.bf16 %v1723, %v1721
        %v2056 = vpack.c.bf16 %v1727, %v1725
        %v2057 = vpack.c.bf16 %v1732, %v1730
        %v2058 = vpack.c.bf16 %v1736, %v1734
        %v2059 = vpack.c.bf16 %v1740, %v1738
        %v2060 = vpack.c.bf16 %v1745, %v1742
        %v2061 = vpack.c.bf16 %v1749, %v1747
        %v2062 = vpack.c.bf16 %v1753, %v1751
        %v2063 = vpack.c.bf16 %v1757, %v1755
        %v2064 = vpack.c.bf16 %v1762, %v1760
        %v2065 = vpack.c.bf16 %v1766, %v1764
        %v2066 = vpack.c.bf16 %v1770, %v1768
        %v2067 = vpack.c.bf16 %v1775, %v1772
        %v2068 = vpack.c.bf16 %v1779, %v1777
        %v2069 = vpack.c.bf16 %v1783, %v1781
        %v2070 = vpack.c.bf16 %v1787, %v1785
        %v2071 = vpack.c.bf16 %v1792, %v1790
        %v2072 = vpack.c.bf16 %v1796, %v1794
        %v2073 = vpack.c.bf16 %v1800, %v1798
        %v2074 = vpack.c.bf16 %v1805, %v1802
        %v2075 = vpack.c.bf16 %v1809, %v1807
        %v2076 = vpack.c.bf16 %v1813, %v1811
        %v2077 = vpack.c.bf16 %v1817, %v1815
        %v2078 = vpack.c.bf16 %v1822, %v1820
        %v2079 = vpack.c.bf16 %v1826, %v1824
        %v2080 = vpack.c.bf16 %v1830, %v1828
        %v2081 = vpack.c.bf16 %v1835, %v1832
        %v2082 = vpack.c.bf16 %v1839, %v1837
        %v2083 = vpack.c.bf16 %v1843, %v1841
        %v2084 = vpack.c.bf16 %v1847, %v1845
        %v2085 = vpack.c.bf16 %v1852, %v1850
        %v2086 = vpack.c.bf16 %v1856, %v1854
        %v2087 = vpack.c.bf16 %v1860, %v1858
        %v2088 = vpack.c.bf16 %v1865, %v1862
        %v2089 = vpack.c.bf16 %v1869, %v1867
        %v2090 = vpack.c.bf16 %v1873, %v1871
        %v2091 = vpack.c.bf16 %v1877, %v1875
        %v2092 = vpack.c.bf16 %v1882, %v1880
        %v2093 = vpack.c.bf16 %v1886, %v1884
        %v2094 = vpack.c.bf16 %v1890, %v1888
        %v2095 = vpack.c.bf16 %v1895, %v1892
        %v2096 = vpack.c.bf16 %v1899, %v1897
        %v2097 = vpack.c.bf16 %v1903, %v1901
        %v2098 = vpack.c.bf16 %v1907, %v1905
        %v2099 = vpack.c.bf16 %v1912, %v1910
        %v2100 = vpack.c.bf16 %v1916, %v1914
        %v2101 = vpack.c.bf16 %v1920, %v1918
        %v2102 = vpack.c.bf16 %v1925, %v1922
        %v2103 = vpack.c.bf16 %v1929, %v1927
        %v2104 = vpack.c.bf16 %v1933, %v1931
        %v2105 = vpack.c.bf16 %v1937, %v1935
        %2106 = vst [vmem:[#allocation2 + $0x10] sm:$0xff] %v2050
        %2107 = vst [vmem:[#allocation2 + $0x28] sm:$0xff] %v2051
        %2108 = vst [vmem:[#allocation2 + $0x40] sm:$0xff] %v2052
        %2109 = vst [vmem:[#allocation2 + $0x58] sm:$0xff] %v2053
        %2110 = vst [vmem:[#allocation2 + $0x70] sm:$0xff] %v2054
        %2111 = vst [vmem:[#allocation2 + $0x88] sm:$0xff] %v2055
        %2112 = vst [vmem:[#allocation2 + $0xa0] sm:$0xff] %v2056
        %2113 = vst [vmem:[#allocation2 + $0xb8] sm:$0xff] %v2057
        %2114 = vst [vmem:[#allocation2 + $0xd0] sm:$0xff] %v2058
        %2115 = vst [vmem:[#allocation2 + $0xe8] sm:$0xff] %v2059
        %2116 = vst [vmem:[#allocation2 + $0x100] sm:$0xff] %v2060
        %2117 = vst [vmem:[#allocation2 + $0x118] sm:$0xff] %v2061
        %2118 = vst [vmem:[#allocation2 + $0x130] sm:$0xff] %v2062
        %2119 = vst [vmem:[#allocation2 + $0x148] sm:$0xff] %v2063
        %2120 = vst [vmem:[#allocation2 + $0x160] sm:$0xff] %v2064
        %2121 = vst [vmem:[#allocation2 + $0x178] sm:$0xff] %v2065
        %2122 = vst [vmem:[#allocation2 + $0x190] sm:$0xff] %v2066
        %2123 = vst [vmem:[#allocation2 + $0x1a8] sm:$0xff] %v2067
        %2124 = vst [vmem:[#allocation2 + $0x1c0] sm:$0xff] %v2068
        %2125 = vst [vmem:[#allocation2 + $0x1d8] sm:$0xff] %v2069
        %2126 = vst [vmem:[#allocation2 + $0x1f0] sm:$0xff] %v2070
        %2127 = vst [vmem:[#allocation2 + $0x208] sm:$0xff] %v2071
        %2128 = vst [vmem:[#allocation2 + $0x220] sm:$0xff] %v2072
        %2129 = vst [vmem:[#allocation2 + $0x238] sm:$0xff] %v2073
        %2130 = vst [vmem:[#allocation2 + $0x250] sm:$0xff] %v2074
        %2131 = vst [vmem:[#allocation2 + $0x268] sm:$0xff] %v2075
        %2132 = vst [vmem:[#allocation2 + $0x280] sm:$0xff] %v2076
        %2133 = vst [vmem:[#allocation2 + $0x298] sm:$0xff] %v2077
        %2134 = vst [vmem:[#allocation2 + $0x2b0] sm:$0xff] %v2078
        %2135 = vst [vmem:[#allocation2 + $0x2c8] sm:$0xff] %v2079
        %2136 = vst [vmem:[#allocation2 + $0x2e0] sm:$0xff] %v2080
        %2137 = vst [vmem:[#allocation2 + $0x2f8] sm:$0xff] %v2081
        %2138 = vst [vmem:[#allocation2 + $0x310] sm:$0xff] %v2082
        %2139 = vst [vmem:[#allocation2 + $0x328] sm:$0xff] %v2083
        %2140 = vst [vmem:[#allocation2 + $0x340] sm:$0xff] %v2084
        %2141 = vst [vmem:[#allocation2 + $0x358] sm:$0xff] %v2085
        %2142 = vst [vmem:[#allocation2 + $0x370] sm:$0xff] %v2086
        %2143 = vst [vmem:[#allocation2 + $0x388] sm:$0xff] %v2087
        %2144 = vst [vmem:[#allocation2 + $0x3a0] sm:$0xff] %v2088
        %2145 = vst [vmem:[#allocation2 + $0x3b8] sm:$0xff] %v2089
        %2146 = vst [vmem:[#allocation2 + $0x3d0] sm:$0xff] %v2090
        %2147 = vst [vmem:[#allocation2 + $0x3e8] sm:$0xff] %v2091
        %2148 = vst [vmem:[#allocation2 + $0x400] sm:$0xff] %v2092
        %2149 = vst [vmem:[#allocation2 + $0x418] sm:$0xff] %v2093
        %2150 = vst [vmem:[#allocation2 + $0x430] sm:$0xff] %v2094
        %2151 = vst [vmem:[#allocation2 + $0x448] sm:$0xff] %v2095
        %2152 = vst [vmem:[#allocation2 + $0x460] sm:$0xff] %v2096
        %2153 = vst [vmem:[#allocation2 + $0x478] sm:$0xff] %v2097
        %2154 = vst [vmem:[#allocation2 + $0x490] sm:$0xff] %v2098
        %2155 = vst [vmem:[#allocation2 + $0x4a8] sm:$0xff] %v2099
        %2156 = vst [vmem:[#allocation2 + $0x4c0] sm:$0xff] %v2100
        %2157 = vst [vmem:[#allocation2 + $0x4d8] sm:$0xff] %v2101
        %2158 = vst [vmem:[#allocation2 + $0x4f0] sm:$0xff] %v2102
        %2159 = vst [vmem:[#allocation2 + $0x508] sm:$0xff] %v2103
        %2160 = vst [vmem:[#allocation2 + $0x520] sm:$0xff] %v2104
        %2161 = vst [vmem:[#allocation2 + $0x538] sm:$0xff] %v2105
        %v2162 = vld [vmem:[#allocation2] sm:$0xff]
        %v2163 = vld [vmem:[#allocation2 + $0x8] sm:$0xff]
        %v2164 = vld [vmem:[#allocation2 + $0x10] sm:$0xff]
        %v2165 = vld [vmem:[#allocation2 + $0x18] sm:$0xff]
        %v2166 = vld [vmem:[#allocation2 + $0x20] sm:$0xff]
        %v2167 = vld [vmem:[#allocation2 + $0x28] sm:$0xff]
        %v2168 = vld [vmem:[#allocation2 + $0x30] sm:$0xff]
        %v2169 = vld [vmem:[#allocation2 + $0x38] sm:$0xff]
        %v2170 = vld [vmem:[#allocation2 + $0x40] sm:$0xff]
        %v2171 = vld [vmem:[#allocation2 + $0x48] sm:$0xff]
        %v2172 = vld [vmem:[#allocation2 + $0x50] sm:$0xff]
        %v2173 = vld [vmem:[#allocation2 + $0x58] sm:$0xff]
        %v2174 = vld [vmem:[#allocation2 + $0x60] sm:$0xff]
        %v2175 = vld [vmem:[#allocation2 + $0x68] sm:$0xff]
        %v2176 = vld [vmem:[#allocation2 + $0x70] sm:$0xff]
        %v2177 = vld [vmem:[#allocation2 + $0x78] sm:$0xff]
        %v2178 = vld [vmem:[#allocation2 + $0x80] sm:$0xff]
        %v2179 = vld [vmem:[#allocation2 + $0x88] sm:$0xff]
        %v2180 = vld [vmem:[#allocation2 + $0x90] sm:$0xff]
        %v2181 = vld [vmem:[#allocation2 + $0x98] sm:$0xff]
        %v2182 = vld [vmem:[#allocation2 + $0xa0] sm:$0xff]
        %v2183 = vld [vmem:[#allocation2 + $0xa8] sm:$0xff]
        %v2184 = vld [vmem:[#allocation2 + $0xb0] sm:$0xff]
        %v2185 = vld [vmem:[#allocation2 + $0xb8] sm:$0xff]
        %v2186 = vld [vmem:[#allocation2 + $0xc0] sm:$0xff]
        %v2187 = vld [vmem:[#allocation2 + $0xc8] sm:$0xff]
        %v2188 = vld [vmem:[#allocation2 + $0xd0] sm:$0xff]
        %v2189 = vld [vmem:[#allocation2 + $0xd8] sm:$0xff]
        %v2190 = vld [vmem:[#allocation2 + $0xe0] sm:$0xff]
        %v2191 = vld [vmem:[#allocation2 + $0xe8] sm:$0xff]
        %v2192 = vld [vmem:[#allocation2 + $0xf0] sm:$0xff]
        %v2193 = vld [vmem:[#allocation2 + $0xf8] sm:$0xff]
        %v2194 = vld [vmem:[#allocation2 + $0x100] sm:$0xff]
        %v2195 = vld [vmem:[#allocation2 + $0x108] sm:$0xff]
        %v2196 = vld [vmem:[#allocation2 + $0x110] sm:$0xff]
        %v2197 = vld [vmem:[#allocation2 + $0x118] sm:$0xff]
        %v2198 = vld [vmem:[#allocation2 + $0x120] sm:$0xff]
        %v2199 = vld [vmem:[#allocation2 + $0x128] sm:$0xff]
        %v2200 = vld [vmem:[#allocation2 + $0x130] sm:$0xff]
        %v2201 = vld [vmem:[#allocation2 + $0x138] sm:$0xff]
        %v2202 = vld [vmem:[#allocation2 + $0x140] sm:$0xff]
        %v2203 = vld [vmem:[#allocation2 + $0x148] sm:$0xff]
        %v2204 = vld [vmem:[#allocation2 + $0x150] sm:$0xff]
        %v2205 = vld [vmem:[#allocation2 + $0x158] sm:$0xff]
        %v2206 = vld [vmem:[#allocation2 + $0x160] sm:$0xff]
        %v2207 = vld [vmem:[#allocation2 + $0x168] sm:$0xff]
        %v2208 = vld [vmem:[#allocation2 + $0x170] sm:$0xff]
        %v2209 = vld [vmem:[#allocation2 + $0x178] sm:$0xff]
        %v2210 = vld [vmem:[#allocation2 + $0x180] sm:$0xff]
        %v2211 = vld [vmem:[#allocation2 + $0x188] sm:$0xff]
        %v2212 = vld [vmem:[#allocation2 + $0x190] sm:$0xff]
        %v2213 = vld [vmem:[#allocation2 + $0x198] sm:$0xff]
        %v2214 = vld [vmem:[#allocation2 + $0x1a0] sm:$0xff]
        %v2215 = vld [vmem:[#allocation2 + $0x1a8] sm:$0xff]
        %v2216 = vld [vmem:[#allocation2 + $0x1b0] sm:$0xff]
        %v2217 = vld [vmem:[#allocation2 + $0x1b8] sm:$0xff]
        %v2218 = vld [vmem:[#allocation2 + $0x1c0] sm:$0xff]
        %v2219 = vld [vmem:[#allocation2 + $0x1c8] sm:$0xff]
        %v2220 = vld [vmem:[#allocation2 + $0x1d0] sm:$0xff]
        %v2221 = vld [vmem:[#allocation2 + $0x1d8] sm:$0xff]
        %v2222 = vld [vmem:[#allocation2 + $0x1e0] sm:$0xff]
        %v2223 = vld [vmem:[#allocation2 + $0x1e8] sm:$0xff]
        %v2224 = vld [vmem:[#allocation2 + $0x1f0] sm:$0xff]
        %v2225 = vld [vmem:[#allocation2 + $0x1f8] sm:$0xff]
        %v2226 = vld [vmem:[#allocation2 + $0x200] sm:$0xff]
        %v2227 = vld [vmem:[#allocation2 + $0x208] sm:$0xff]
        %v2228 = vld [vmem:[#allocation2 + $0x210] sm:$0xff]
        %v2229 = vld [vmem:[#allocation2 + $0x218] sm:$0xff]
        %v2230 = vld [vmem:[#allocation2 + $0x220] sm:$0xff]
        %v2231 = vld [vmem:[#allocation2 + $0x228] sm:$0xff]
        %v2232 = vld [vmem:[#allocation2 + $0x230] sm:$0xff]
        %v2233 = vld [vmem:[#allocation2 + $0x238] sm:$0xff]
        %v2234 = vld [vmem:[#allocation2 + $0x240] sm:$0xff]
        %v2235 = vld [vmem:[#allocation2 + $0x248] sm:$0xff]
        %v2236 = vld [vmem:[#allocation2 + $0x250] sm:$0xff]
        %v2237 = vld [vmem:[#allocation2 + $0x258] sm:$0xff]
        %v2238 = vld [vmem:[#allocation2 + $0x260] sm:$0xff]
        %v2239 = vld [vmem:[#allocation2 + $0x268] sm:$0xff]
        %v2240 = vld [vmem:[#allocation2 + $0x270] sm:$0xff]
        %v2241 = vld [vmem:[#allocation2 + $0x278] sm:$0xff]
        %v2242 = vld [vmem:[#allocation2 + $0x280] sm:$0xff]
        %v2243 = vld [vmem:[#allocation2 + $0x288] sm:$0xff]
        %v2244 = vld [vmem:[#allocation2 + $0x290] sm:$0xff]
        %v2245 = vld [vmem:[#allocation2 + $0x298] sm:$0xff]
        %v2246 = vld [vmem:[#allocation2 + $0x2a0] sm:$0xff]
        %v2247 = vld [vmem:[#allocation2 + $0x2a8] sm:$0xff]
        %v2248 = vld [vmem:[#allocation2 + $0x2b0] sm:$0xff]
        %v2249 = vld [vmem:[#allocation2 + $0x2b8] sm:$0xff]
        %v2250 = vld [vmem:[#allocation2 + $0x2c0] sm:$0xff]
        %v2251 = vld [vmem:[#allocation2 + $0x2c8] sm:$0xff]
        %v2252 = vld [vmem:[#allocation2 + $0x2d0] sm:$0xff]
        %v2253 = vld [vmem:[#allocation2 + $0x2d8] sm:$0xff]
        %v2254 = vld [vmem:[#allocation2 + $0x2e0] sm:$0xff]
        %v2255 = vld [vmem:[#allocation2 + $0x2e8] sm:$0xff]
        %v2256 = vld [vmem:[#allocation2 + $0x2f0] sm:$0xff]
        %v2257 = vld [vmem:[#allocation2 + $0x2f8] sm:$0xff]
        %v2258 = vld [vmem:[#allocation2 + $0x300] sm:$0xff]
        %v2259 = vld [vmem:[#allocation2 + $0x308] sm:$0xff]
        %v2260 = vld [vmem:[#allocation2 + $0x310] sm:$0xff]
        %v2261 = vld [vmem:[#allocation2 + $0x318] sm:$0xff]
        %v2262 = vld [vmem:[#allocation2 + $0x320] sm:$0xff]
        %v2263 = vld [vmem:[#allocation2 + $0x328] sm:$0xff]
        %v2264 = vld [vmem:[#allocation2 + $0x330] sm:$0xff]
        %v2265 = vld [vmem:[#allocation2 + $0x338] sm:$0xff]
        %v2266 = vld [vmem:[#allocation2 + $0x340] sm:$0xff]
        %v2267 = vld [vmem:[#allocation2 + $0x348] sm:$0xff]
        %v2268 = vld [vmem:[#allocation2 + $0x350] sm:$0xff]
        %v2269 = vld [vmem:[#allocation2 + $0x358] sm:$0xff]
        %v2270 = vld [vmem:[#allocation2 + $0x360] sm:$0xff]
        %v2271 = vld [vmem:[#allocation2 + $0x368] sm:$0xff]
        %v2272 = vld [vmem:[#allocation2 + $0x370] sm:$0xff]
        %v2273 = vld [vmem:[#allocation2 + $0x378] sm:$0xff]
        %v2274 = vld [vmem:[#allocation2 + $0x380] sm:$0xff]
        %v2275 = vld [vmem:[#allocation2 + $0x388] sm:$0xff]
        %v2276 = vld [vmem:[#allocation2 + $0x390] sm:$0xff]
        %v2277 = vld [vmem:[#allocation2 + $0x398] sm:$0xff]
        %v2278 = vld [vmem:[#allocation2 + $0x3a0] sm:$0xff]
        %v2279 = vld [vmem:[#allocation2 + $0x3a8] sm:$0xff]
        %v2280 = vld [vmem:[#allocation2 + $0x3b0] sm:$0xff]
        %v2281 = vld [vmem:[#allocation2 + $0x3b8] sm:$0xff]
        %v2282 = vld [vmem:[#allocation2 + $0x3c0] sm:$0xff]
        %v2283 = vld [vmem:[#allocation2 + $0x3c8] sm:$0xff]
        %v2284 = vld [vmem:[#allocation2 + $0x3d0] sm:$0xff]
        %v2285 = vld [vmem:[#allocation2 + $0x3d8] sm:$0xff]
        %v2286 = vld [vmem:[#allocation2 + $0x3e0] sm:$0xff]
        %v2287 = vld [vmem:[#allocation2 + $0x3e8] sm:$0xff]
        %v2288 = vld [vmem:[#allocation2 + $0x3f0] sm:$0xff]
        %v2289 = vld [vmem:[#allocation2 + $0x3f8] sm:$0xff]
        %v2290 = vld [vmem:[#allocation2 + $0x400] sm:$0xff]
        %v2291 = vld [vmem:[#allocation2 + $0x408] sm:$0xff]
        %v2292 = vld [vmem:[#allocation2 + $0x410] sm:$0xff]
        %v2293 = vld [vmem:[#allocation2 + $0x418] sm:$0xff]
        %v2294 = vld [vmem:[#allocation2 + $0x420] sm:$0xff]
        %v2295 = vld [vmem:[#allocation2 + $0x428] sm:$0xff]
        %v2296 = vld [vmem:[#allocation2 + $0x430] sm:$0xff]
        %v2297 = vld [vmem:[#allocation2 + $0x438] sm:$0xff]
        %v2298 = vld [vmem:[#allocation2 + $0x440] sm:$0xff]
        %v2299 = vld [vmem:[#allocation2 + $0x448] sm:$0xff]
        %v2300 = vld [vmem:[#allocation2 + $0x450] sm:$0xff]
        %v2301 = vld [vmem:[#allocation2 + $0x458] sm:$0xff]
        %v2302 = vld [vmem:[#allocation2 + $0x460] sm:$0xff]
        %v2303 = vld [vmem:[#allocation2 + $0x468] sm:$0xff]
        %v2304 = vld [vmem:[#allocation2 + $0x470] sm:$0xff]
        %v2305 = vld [vmem:[#allocation2 + $0x478] sm:$0xff]
        %v2306 = vld [vmem:[#allocation2 + $0x480] sm:$0xff]
        %v2307 = vld [vmem:[#allocation2 + $0x488] sm:$0xff]
        %v2308 = vld [vmem:[#allocation2 + $0x490] sm:$0xff]
        %v2309 = vld [vmem:[#allocation2 + $0x498] sm:$0xff]
        %v2310 = vld [vmem:[#allocation2 + $0x4a0] sm:$0xff]
        %v2311 = vld [vmem:[#allocation2 + $0x4a8] sm:$0xff]
        %v2312 = vld [vmem:[#allocation2 + $0x4b0] sm:$0xff]
        %v2313 = vld [vmem:[#allocation2 + $0x4b8] sm:$0xff]
        %v2314 = vld [vmem:[#allocation2 + $0x4c0] sm:$0xff]
        %v2315 = vld [vmem:[#allocation2 + $0x4c8] sm:$0xff]
        %v2316 = vld [vmem:[#allocation2 + $0x4d0] sm:$0xff]
        %v2317 = vld [vmem:[#allocation2 + $0x4d8] sm:$0xff]
        %v2318 = vld [vmem:[#allocation2 + $0x4e0] sm:$0xff]
        %v2319 = vld [vmem:[#allocation2 + $0x4e8] sm:$0xff]
        %v2320 = vld [vmem:[#allocation2 + $0x4f0] sm:$0xff]
        %v2321 = vld [vmem:[#allocation2 + $0x4f8] sm:$0xff]
        %v2322 = vld [vmem:[#allocation2 + $0x500] sm:$0xff]
        %v2323 = vld [vmem:[#allocation2 + $0x508] sm:$0xff]
        %v2324 = vld [vmem:[#allocation2 + $0x510] sm:$0xff]
        %v2325 = vld [vmem:[#allocation2 + $0x518] sm:$0xff]
        %v2326 = vld [vmem:[#allocation2 + $0x520] sm:$0xff]
        %v2327 = vld [vmem:[#allocation2 + $0x528] sm:$0xff]
        %v2328 = vld [vmem:[#allocation2 + $0x530] sm:$0xff]
        %v2329 = vld [vmem:[#allocation2 + $0x538] sm:$0xff]
        %v2330 = vld [vmem:[%s1] sm:$0xff]
        %v2331 = vld [vmem:[%s1 + $0x8] sm:$0xf]
        %v2332 = vld [vmem:[%s1 + $0xc] sm:$0xff]
        %v2333 = vld [vmem:[%s1 + $0x14] sm:$0xf]
        %v2334 = vld [vmem:[%s1 + $0x18] sm:$0xff]
        %v2335 = vld [vmem:[%s1 + $0x20] sm:$0xf]
        %v2336 = vld [vmem:[%s1 + $0x24] sm:$0xff]
        %v2337 = vld [vmem:[%s1 + $0x2c] sm:$0xf]
        %v2338 = vld [vmem:[%s1 + $0x30] sm:$0xff]
        %v2339 = vld [vmem:[%s1 + $0x38] sm:$0xf]
        %v2340 = vld [vmem:[%s1 + $0x3c] sm:$0xff]
        %v2341 = vld [vmem:[%s1 + $0x44] sm:$0xf]
        %v2342 = vld [vmem:[%s1 + $0x48] sm:$0xff]
        %v2343 = vld [vmem:[%s1 + $0x50] sm:$0xf]
        %v2344 = vld [vmem:[%s1 + $0x54] sm:$0xff]
        %v2345 = vld [vmem:[%s1 + $0x5c] sm:$0xf]
        %v2346 = vld [vmem:[%s1 + $0x60] sm:$0xff]
        %v2347 = vld [vmem:[%s1 + $0x68] sm:$0xf]
        %v2348 = vld [vmem:[%s1 + $0x6c] sm:$0xff]
        %v2349 = vld [vmem:[%s1 + $0x74] sm:$0xf]
        %v2350 = vld [vmem:[%s1 + $0x78] sm:$0xff]
        %v2351 = vld [vmem:[%s1 + $0x80] sm:$0xf]
        %v2352 = vld [vmem:[%s1 + $0x84] sm:$0xff]
        %v2353 = vld [vmem:[%s1 + $0x8c] sm:$0xf]
        %v2354 = vld [vmem:[%s1 + $0x90] sm:$0xff]
        %v2355 = vld [vmem:[%s1 + $0x98] sm:$0xf]
        %v2356 = vld [vmem:[%s1 + $0x9c] sm:$0xff]
        %v2357 = vld [vmem:[%s1 + $0xa4] sm:$0xf]
        %v2358 = vld [vmem:[%s1 + $0xa8] sm:$0xff]
        %v2359 = vld [vmem:[%s1 + $0xb0] sm:$0xf]
        %v2360 = vld [vmem:[%s1 + $0xb4] sm:$0xff]
        %v2361 = vld [vmem:[%s1 + $0xbc] sm:$0xf]
        %v2362 = vld [vmem:[%s1 + $0xc0] sm:$0xff]
        %v2363 = vld [vmem:[%s1 + $0xc8] sm:$0xf]
        %v2364 = vld [vmem:[%s1 + $0xcc] sm:$0xff]
        %v2365 = vld [vmem:[%s1 + $0xd4] sm:$0xf]
        %v2366 = vld [vmem:[%s1 + $0xd8] sm:$0xff]
        %v2367 = vld [vmem:[%s1 + $0xe0] sm:$0xf]
        %v2368 = vld [vmem:[%s1 + $0xe4] sm:$0xff]
        %v2369 = vld [vmem:[%s1 + $0xec] sm:$0xf]
        %v2370 = vld [vmem:[%s1 + $0xf0] sm:$0xff]
        %v2371 = vld [vmem:[%s1 + $0xf8] sm:$0xf]
        %v2372 = vld [vmem:[%s1 + $0xfc] sm:$0xff]
        %v2373 = vld [vmem:[%s1 + $0x104] sm:$0xf]
        %v2374 = vld [vmem:[%s1 + $0x108] sm:$0xff]
        %v2375 = vld [vmem:[%s1 + $0x110] sm:$0xf]
        %v2376 = vld [vmem:[%s1 + $0x114] sm:$0xff]
        %v2377 = vld [vmem:[%s1 + $0x11c] sm:$0xf]
        %v2378 = vld [vmem:[%s1 + $0x120] sm:$0xff]
        %v2379 = vld [vmem:[%s1 + $0x128] sm:$0xf]
        %v2380 = vld [vmem:[%s1 + $0x12c] sm:$0xff]
        %v2381 = vld [vmem:[%s1 + $0x134] sm:$0xf]
        %v2382 = vld [vmem:[%s1 + $0x138] sm:$0xff]
        %v2383 = vld [vmem:[%s1 + $0x140] sm:$0xf]
        %v2384 = vld [vmem:[%s1 + $0x144] sm:$0xff]
        %v2385 = vld [vmem:[%s1 + $0x14c] sm:$0xf]
        %v2386 = vld [vmem:[%s1 + $0x150] sm:$0xff]
        %v2387 = vld [vmem:[%s1 + $0x158] sm:$0xf]
        %v2388 = vld [vmem:[%s1 + $0x15c] sm:$0xff]
        %v2389 = vld [vmem:[%s1 + $0x164] sm:$0xf]
        %v2390 = vld [vmem:[%s1 + $0x168] sm:$0xff]
        %v2391 = vld [vmem:[%s1 + $0x170] sm:$0xf]
        %v2392 = vld [vmem:[%s1 + $0x174] sm:$0xff]
        %v2393 = vld [vmem:[%s1 + $0x17c] sm:$0xf]
        %v2394 = vld [vmem:[%s1 + $0x180] sm:$0xff]
        %v2395 = vld [vmem:[%s1 + $0x188] sm:$0xf]
        %v2396 = vld [vmem:[%s1 + $0x18c] sm:$0xff]
        %v2397 = vld [vmem:[%s1 + $0x194] sm:$0xf]
        %v2398 = vld [vmem:[%s1 + $0x198] sm:$0xff]
        %v2399 = vld [vmem:[%s1 + $0x1a0] sm:$0xf]
        %v2400 = vld [vmem:[%s1 + $0x1a4] sm:$0xff]
        %v2401 = vld [vmem:[%s1 + $0x1ac] sm:$0xf]
        %v2402 = vld [vmem:[%s1 + $0x1b0] sm:$0xff]
        %v2403 = vld [vmem:[%s1 + $0x1b8] sm:$0xf]
        %v2404 = vld [vmem:[%s1 + $0x1bc] sm:$0xff]
        %v2405 = vld [vmem:[%s1 + $0x1c4] sm:$0xf]
        %v2406 = vld [vmem:[%s1 + $0x1c8] sm:$0xff]
        %v2407 = vld [vmem:[%s1 + $0x1d0] sm:$0xf]
        %v2408 = vld [vmem:[%s1 + $0x1d4] sm:$0xff]
        %v2409 = vld [vmem:[%s1 + $0x1dc] sm:$0xf]
        %v2410 = vld [vmem:[%s1 + $0x1e0] sm:$0xff]
        %v2411 = vld [vmem:[%s1 + $0x1e8] sm:$0xf]
        %v2412 = vld [vmem:[%s1 + $0x1ec] sm:$0xff]
        %v2413 = vld [vmem:[%s1 + $0x1f4] sm:$0xf]
        %v2414 = vld [vmem:[%s1 + $0x1f8] sm:$0xff]
        %v2415 = vld [vmem:[%s1 + $0x200] sm:$0xf]
        %v2416 = vld [vmem:[%s1 + $0x204] sm:$0xff]
        %v2417 = vld [vmem:[%s1 + $0x20c] sm:$0xf]
        %v2418 = vld [vmem:[%s1 + $0x210] sm:$0xff]
        %v2419 = vld [vmem:[%s1 + $0x218] sm:$0xf]
        %v2420 = vld [vmem:[%s1 + $0x21c] sm:$0xff]
        %v2421 = vld [vmem:[%s1 + $0x224] sm:$0xf]
        %v2422 = vld [vmem:[%s1 + $0x228] sm:$0xff]
        %v2423 = vld [vmem:[%s1 + $0x230] sm:$0xf]
        %v2424 = vld [vmem:[%s1 + $0x234] sm:$0xff]
        %v2425 = vld [vmem:[%s1 + $0x23c] sm:$0xf]
        %v2522 = vunpack.c.l.b16 %v2330
        %v2523 = vunpack.c.h.b16 %v2330
        %v2524 = vunpack.c.l.b16 %v2331
        %v2525 = vunpack.c.l.b16 %v2332
        %v2526 = vunpack.c.h.b16 %v2332
        %v2527 = vunpack.c.l.b16 %v2333
        %v2528 = vunpack.c.l.b16 %v2334
        %v2529 = vunpack.c.h.b16 %v2334
        %v2530 = vunpack.c.l.b16 %v2335
        %v2531 = vunpack.c.l.b16 %v2336
        %v2532 = vunpack.c.h.b16 %v2336
        %v2533 = vunpack.c.l.b16 %v2337
        %v2534 = vunpack.c.l.b16 %v2338
        %v2535 = vunpack.c.h.b16 %v2338
        %v2536 = vunpack.c.l.b16 %v2339
        %v2537 = vunpack.c.l.b16 %v2340
        %v2538 = vunpack.c.h.b16 %v2340
        %v2539 = vunpack.c.l.b16 %v2341
        %v2540 = vunpack.c.l.b16 %v2342
        %v2541 = vunpack.c.h.b16 %v2342
        %v2542 = vunpack.c.l.b16 %v2343
        %v2543 = vunpack.c.l.b16 %v2344
        %v2544 = vunpack.c.h.b16 %v2344
        %v2545 = vunpack.c.l.b16 %v2345
        %v2546 = vunpack.c.l.b16 %v2346
        %v2547 = vunpack.c.h.b16 %v2346
        %v2548 = vunpack.c.l.b16 %v2347
        %v2549 = vunpack.c.l.b16 %v2348
        %v2550 = vunpack.c.h.b16 %v2348
        %v2551 = vunpack.c.l.b16 %v2349
        %v2552 = vunpack.c.l.b16 %v2350
        %v2553 = vunpack.c.h.b16 %v2350
        %v2554 = vunpack.c.l.b16 %v2351
        %v2555 = vunpack.c.l.b16 %v2352
        %v2556 = vunpack.c.h.b16 %v2352
        %v2557 = vunpack.c.l.b16 %v2353
        %v2558 = vunpack.c.l.b16 %v2354
        %v2559 = vunpack.c.h.b16 %v2354
        %v2560 = vunpack.c.l.b16 %v2355
        %v2561 = vunpack.c.l.b16 %v2356
        %v2562 = vunpack.c.h.b16 %v2356
        %v2563 = vunpack.c.l.b16 %v2357
        %v2564 = vunpack.c.l.b16 %v2358
        %v2565 = vunpack.c.h.b16 %v2358
        %v2566 = vunpack.c.l.b16 %v2359
        %v2567 = vunpack.c.l.b16 %v2360
        %v2568 = vunpack.c.h.b16 %v2360
        %v2569 = vunpack.c.l.b16 %v2361
        %v2570 = vunpack.c.l.b16 %v2362
        %v2571 = vunpack.c.h.b16 %v2362
        %v2572 = vunpack.c.l.b16 %v2363
        %v2573 = vunpack.c.l.b16 %v2364
        %v2574 = vunpack.c.h.b16 %v2364
        %v2575 = vunpack.c.l.b16 %v2365
        %v2576 = vunpack.c.l.b16 %v2366
        %v2577 = vunpack.c.h.b16 %v2366
        %v2578 = vunpack.c.l.b16 %v2367
        %v2579 = vunpack.c.l.b16 %v2368
        %v2580 = vunpack.c.h.b16 %v2368
        %v2581 = vunpack.c.l.b16 %v2369
        %v2582 = vunpack.c.l.b16 %v2370
        %v2583 = vunpack.c.h.b16 %v2370
        %v2584 = vunpack.c.l.b16 %v2371
        %v2585 = vunpack.c.l.b16 %v2372
        %v2586 = vunpack.c.h.b16 %v2372
        %v2587 = vunpack.c.l.b16 %v2373
        %v2588 = vunpack.c.l.b16 %v2374
        %v2589 = vunpack.c.h.b16 %v2374
        %v2590 = vunpack.c.l.b16 %v2375
        %v2591 = vunpack.c.l.b16 %v2376
        %v2592 = vunpack.c.h.b16 %v2376
        %v2593 = vunpack.c.l.b16 %v2377
        %v2594 = vunpack.c.l.b16 %v2378
        %v2595 = vunpack.c.h.b16 %v2378
        %v2596 = vunpack.c.l.b16 %v2379
        %v2597 = vunpack.c.l.b16 %v2380
        %v2598 = vunpack.c.h.b16 %v2380
        %v2599 = vunpack.c.l.b16 %v2381
        %v2600 = vunpack.c.l.b16 %v2382
        %v2601 = vunpack.c.h.b16 %v2382
        %v2602 = vunpack.c.l.b16 %v2383
        %v2603 = vunpack.c.l.b16 %v2384
        %v2604 = vunpack.c.h.b16 %v2384
        %v2605 = vunpack.c.l.b16 %v2385
        %v2606 = vunpack.c.l.b16 %v2386
        %v2607 = vunpack.c.h.b16 %v2386
        %v2608 = vunpack.c.l.b16 %v2387
        %v2609 = vunpack.c.l.b16 %v2388
        %v2610 = vunpack.c.h.b16 %v2388
        %v2611 = vunpack.c.l.b16 %v2389
        %v2612 = vunpack.c.l.b16 %v2390
        %v2613 = vunpack.c.h.b16 %v2390
        %v2614 = vunpack.c.l.b16 %v2391
        %v2615 = vunpack.c.l.b16 %v2392
        %v2616 = vunpack.c.h.b16 %v2392
        %v2617 = vunpack.c.l.b16 %v2393
        %v2618 = vunpack.c.l.b16 %v2394
        %v2619 = vunpack.c.h.b16 %v2394
        %v2620 = vunpack.c.l.b16 %v2395
        %v2621 = vunpack.c.l.b16 %v2396
        %v2622 = vunpack.c.h.b16 %v2396
        %v2623 = vunpack.c.l.b16 %v2397
        %v2624 = vunpack.c.l.b16 %v2398
        %v2625 = vunpack.c.h.b16 %v2398
        %v2626 = vunpack.c.l.b16 %v2399
        %v2627 = vunpack.c.l.b16 %v2400
        %v2628 = vunpack.c.h.b16 %v2400
        %v2629 = vunpack.c.l.b16 %v2401
        %v2630 = vunpack.c.l.b16 %v2402
        %v2631 = vunpack.c.h.b16 %v2402
        %v2632 = vunpack.c.l.b16 %v2403
        %v2633 = vunpack.c.l.b16 %v2404
        %v2634 = vunpack.c.h.b16 %v2404
        %v2635 = vunpack.c.l.b16 %v2405
        %v2636 = vunpack.c.l.b16 %v2406
        %v2637 = vunpack.c.h.b16 %v2406
        %v2638 = vunpack.c.l.b16 %v2407
        %v2639 = vunpack.c.l.b16 %v2408
        %v2640 = vunpack.c.h.b16 %v2408
        %v2641 = vunpack.c.l.b16 %v2409
        %v2642 = vunpack.c.l.b16 %v2410
        %v2643 = vunpack.c.h.b16 %v2410
        %v2644 = vunpack.c.l.b16 %v2411
        %v2645 = vunpack.c.l.b16 %v2412
        %v2646 = vunpack.c.h.b16 %v2412
        %v2647 = vunpack.c.l.b16 %v2413
        %v2648 = vunpack.c.l.b16 %v2414
        %v2649 = vunpack.c.h.b16 %v2414
        %v2650 = vunpack.c.l.b16 %v2415
        %v2651 = vunpack.c.l.b16 %v2416
        %v2652 = vunpack.c.h.b16 %v2416
        %v2653 = vunpack.c.l.b16 %v2417
        %v2654 = vunpack.c.l.b16 %v2418
        %v2655 = vunpack.c.h.b16 %v2418
        %v2656 = vunpack.c.l.b16 %v2419
        %v2657 = vunpack.c.l.b16 %v2420
        %v2658 = vunpack.c.h.b16 %v2420
        %v2659 = vunpack.c.l.b16 %v2421
        %v2660 = vunpack.c.l.b16 %v2422
        %v2661 = vunpack.c.h.b16 %v2422
        %v2662 = vunpack.c.l.b16 %v2423
        %v2663 = vunpack.c.l.b16 %v2424
        %v2664 = vunpack.c.h.b16 %v2424
        %v2665 = vunpack.c.l.b16 %v2425
        %v2666 = vpack.c.b16 %v2525, %v2522
        %v2667 = vpack.c.b16 %v2526, %v2523
        %v2668 = vpack.c.b16 %v2527, %v2524
        %v2669 = vpack.c.b16 %v2531, %v2528
        %v2670 = vpack.c.b16 %v2532, %v2529
        %v2671 = vpack.c.b16 %v2533, %v2530
        %v2672 = vpack.c.b16 %v2537, %v2534
        %v2673 = vpack.c.b16 %v2538, %v2535
        %v2674 = vpack.c.b16 %v2539, %v2536
        %v2675 = vpack.c.b16 %v2543, %v2540
        %v2676 = vpack.c.b16 %v2544, %v2541
        %v2677 = vpack.c.b16 %v2545, %v2542
        %v2678 = vpack.c.b16 %v2549, %v2546
        %v2679 = vpack.c.b16 %v2550, %v2547
        %v2680 = vpack.c.b16 %v2551, %v2548
        %v2681 = vpack.c.b16 %v2555, %v2552
        %v2682 = vpack.c.b16 %v2556, %v2553
        %v2683 = vpack.c.b16 %v2557, %v2554
        %v2684 = vpack.c.b16 %v2561, %v2558
        %v2685 = vpack.c.b16 %v2562, %v2559
        %v2686 = vpack.c.b16 %v2563, %v2560
        %v2687 = vpack.c.b16 %v2567, %v2564
        %v2688 = vpack.c.b16 %v2568, %v2565
        %v2689 = vpack.c.b16 %v2569, %v2566
        %v2690 = vpack.c.b16 %v2573, %v2570
        %v2691 = vpack.c.b16 %v2574, %v2571
        %v2692 = vpack.c.b16 %v2575, %v2572
        %v2693 = vpack.c.b16 %v2579, %v2576
        %v2694 = vpack.c.b16 %v2580, %v2577
        %v2695 = vpack.c.b16 %v2581, %v2578
        %v2696 = vpack.c.b16 %v2585, %v2582
        %v2697 = vpack.c.b16 %v2586, %v2583
        %v2698 = vpack.c.b16 %v2587, %v2584
        %v2699 = vpack.c.b16 %v2591, %v2588
        %v2700 = vpack.c.b16 %v2592, %v2589
        %v2701 = vpack.c.b16 %v2593, %v2590
        %v2702 = vpack.c.b16 %v2597, %v2594
        %v2703 = vpack.c.b16 %v2598, %v2595
        %v2704 = vpack.c.b16 %v2599, %v2596
        %v2705 = vpack.c.b16 %v2603, %v2600
        %v2706 = vpack.c.b16 %v2604, %v2601
        %v2707 = vpack.c.b16 %v2605, %v2602
        %v2708 = vpack.c.b16 %v2609, %v2606
        %v2709 = vpack.c.b16 %v2610, %v2607
        %v2710 = vpack.c.b16 %v2611, %v2608
        %v2711 = vpack.c.b16 %v2615, %v2612
        %v2712 = vpack.c.b16 %v2616, %v2613
        %v2713 = vpack.c.b16 %v2617, %v2614
        %v2714 = vpack.c.b16 %v2621, %v2618
        %v2715 = vpack.c.b16 %v2622, %v2619
        %v2716 = vpack.c.b16 %v2623, %v2620
        %v2717 = vpack.c.b16 %v2627, %v2624
        %v2718 = vpack.c.b16 %v2628, %v2625
        %v2719 = vpack.c.b16 %v2629, %v2626
        %v2720 = vpack.c.b16 %v2633, %v2630
        %v2721 = vpack.c.b16 %v2634, %v2631
        %v2722 = vpack.c.b16 %v2635, %v2632
        %v2723 = vpack.c.b16 %v2639, %v2636
        %v2724 = vpack.c.b16 %v2640, %v2637
        %v2725 = vpack.c.b16 %v2641, %v2638
        %v2726 = vpack.c.b16 %v2645, %v2642
        %v2727 = vpack.c.b16 %v2646, %v2643
        %v2728 = vpack.c.b16 %v2647, %v2644
        %v2729 = vpack.c.b16 %v2651, %v2648
        %v2730 = vpack.c.b16 %v2652, %v2649
        %v2731 = vpack.c.b16 %v2653, %v2650
        %v2732 = vpack.c.b16 %v2657, %v2654
        %v2733 = vpack.c.b16 %v2658, %v2655
        %v2734 = vpack.c.b16 %v2659, %v2656
        %v2735 = vpack.c.b16 %v2663, %v2660
        %v2736 = vpack.c.b16 %v2664, %v2661
        %v2737 = vpack.c.b16 %v2665, %v2662
        %2810 = vmatprep.subr.bf16.mxu0 %v2667
        %2811 = vmatpush1.bf16.msra.mxu0 %v2666
        %2812 = vmatprep.subr.bf16.mxu0 %v2670
        %2813 = vmatpush1.bf16.msra.mxu0 %v2669
        %2814 = vmatprep.subr.bf16.mxu0 %v2673
        %2815 = vmatpush1.bf16.msra.mxu0 %v2672
        %2816 = vmatprep.subr.bf16.mxu0 %v2676
        %2817 = vmatpush1.bf16.msra.mxu0 %v2675
        %2818 = vmatprep.subr.bf16.mxu0 %v2679
        %2819 = vmatpush1.bf16.msra.mxu0 %v2678
        %2820 = vmatprep.subr.bf16.mxu0 %v2682
        %2821 = vmatpush1.bf16.msra.mxu0 %v2681
        %2822 = vmatprep.subr.bf16.mxu0 %v2685
        %2823 = vmatpush1.bf16.msra.mxu0 %v2684
        %2824 = vmatprep.subr.bf16.mxu0 %v2688
        %2825 = vmatpush1.bf16.msra.mxu0 %v2687
        %2826 = vmatprep.subr.bf16.mxu0 %v2691
        %2827 = vmatpush1.bf16.msra.mxu0 %v2690
        %2828 = vmatprep.subr.bf16.mxu0 %v2694
        %2829 = vmatpush1.bf16.msra.mxu0 %v2693
        %2830 = vmatprep.subr.bf16.mxu0 %v2697
        %2831 = vmatpush1.bf16.msra.mxu0 %v2696
        %2832 = vmatprep.subr.bf16.mxu0 %v2700
        %2833 = vmatpush1.bf16.msra.mxu0 %v2699
        %2834 = vmatprep.subr.bf16.mxu0 %v2703
        %2835 = vmatpush1.bf16.msra.mxu0 %v2702
        %2836 = vmatprep.subr.bf16.mxu0 %v2706
        %2837 = vmatpush1.bf16.msra.mxu0 %v2705
        %2838 = vmatprep.subr.bf16.mxu0 %v2709
        %2839 = vmatpush1.bf16.msra.mxu0 %v2708
        %2840 = vmatprep.subr.bf16.mxu0 %v2712
        %2841 = vmatpush1.bf16.msra.mxu0 %v2711
        %2842 = vmatprep.mubr.bf16.mxu0 %v2163
        %2843 = vmatmul.mubr.bf16.gmra.mrb[0].mxu0 %v2162
        %v2844 = vpop.f32.mrb[0].mxu0
        %v2845 = vadd.f32 0.0, %v2844
        %v2846 = vpop.f32.mrb[0].mxu0
        %v2847 = vpop.f32.mrb[0].mxu0
        %v2848 = vadd.f32 0.0, %v2847
        %v2849 = vpop.f32.mrb[0].mxu0
        %2850 = vmatprep.mubr.bf16.mxu0 %v2166
        %2851 = vmatmul.mubr.bf16.gmra.mrb[0].mxu0 %v2165
        %v2852 = vpop.f32.mrb[0].mxu0
        %v2853 = vadd.f32 0.0, %v2852
        %v2854 = vpop.f32.mrb[0].mxu0
        %v2855 = vpop.f32.mrb[0].mxu0
        %v2856 = vadd.f32 0.0, %v2855
        %v2857 = vpop.f32.mrb[0].mxu0
        %2858 = vmatprep.mubr.bf16.mxu0 %v2169
        %2859 = vmatmul.mubr.bf16.gmra.mrb[0].mxu0 %v2168
        %v2860 = vpop.f32.mrb[0].mxu0
        %v2861 = vadd.f32 0.0, %v2860
        %v2862 = vpop.f32.mrb[0].mxu0
        %v2863 = vpop.f32.mrb[0].mxu0
        %v2864 = vadd.f32 0.0, %v2863
        %v2865 = vpop.f32.mrb[0].mxu0
        %2866 = vmatprep.mubr.bf16.mxu0 %v2172
        %2867 = vmatmul.mubr.bf16.gmra.mrb[0].mxu0 %v2171
        %v2868 = vpop.f32.mrb[0].mxu0
        %v2869 = vadd.f32 0.0, %v2868
        %v2870 = vpop.f32.mrb[0].mxu0
        %v2871 = vpop.f32.mrb[0].mxu0
        %v2872 = vadd.f32 0.0, %v2871
        %v2873 = vpop.f32.mrb[0].mxu0
        %v2874 = vadd.f32 0.0, %v2873
        %2875 = vmatprep.mubr.bf16.mxu0 %v2175
        %2876 = vmatmul.mubr.bf16.gmra.mrb[0].mxu0 %v2174
        %v2877 = vpop.f32.mrb[0].mxu0
        %v2878 = vadd.f32 0.0, %v2877
        %v2879 = vpop.f32.mrb[0].mxu0
        %v2880 = vadd.f32 0.0, %v2879
        %v2881 = vpop.f32.mrb[0].mxu0
        %v2882 = vadd.f32 0.0, %v2881
        %v2883 = vpop.f32.mrb[0].mxu0
        %v2884 = vadd.f32 0.0, %v2883
        %2885 = vmatprep.mubr.bf16.mxu0 %v2178
        %2886 = vmatmul.mubr.bf16.gmra.mrb[0].mxu0 %v2177
        %v2887 = vpop.f32.mrb[0].mxu0
        %v2888 = vadd.f32 0.0, %v2887
        %v2889 = vpop.f32.mrb[0].mxu0
        %v2890 = vadd.f32 0.0, %v2889
        %v2891 = vpop.f32.mrb[0].mxu0
        %v2892 = vadd.f32 0.0, %v2891
        %v2893 = vpop.f32.mrb[0].mxu0
        %v2894 = vadd.f32 0.0, %v2893
        %2895 = vmatprep.mubr.bf16.mxu0 %v2181
        %2896 = vmatmul.mubr.bf16.gmra.mrb[0].mxu0 %v2180
        %v2897 = vpop.f32.mrb[0].mxu0
        %v2898 = vadd.f32 0.0, %v2897
        %v2899 = vpop.f32.mrb[0].mxu0
        %v2900 = vadd.f32 0.0, %v2899
        %v2901 = vpop.f32.mrb[0].mxu0
        %v2902 = vadd.f32 0.0, %v2901
        %v2903 = vpop.f32.mrb[0].mxu0
        %v2904 = vadd.f32 0.0, %v2903
        %2905 = vmatprep.mubr.bf16.mxu0 %v2184
        %2906 = vmatmul.mubr.bf16.gmra.mrb[0].mxu0 %v2183
        %v2907 = vpop.f32.mrb[0].mxu0
        %v2908 = vadd.f32 0.0, %v2907
        %v2909 = vpop.f32.mrb[0].mxu0
        %v2910 = vadd.f32 0.0, %v2909
        %v2911 = vpop.f32.mrb[0].mxu0
        %v2912 = vadd.f32 0.0, %v2911
        %v2913 = vpop.f32.mrb[0].mxu0
        %v2914 = vadd.f32 0.0, %v2913
        %2915 = vmatprep.mubr.bf16.mxu0 %v2187
        %2916 = vmatmul.mubr.bf16.gmra.mrb[0].mxu0 %v2186
        %v2917 = vpop.f32.mrb[0].mxu0
        %v2918 = vadd.f32 0.0, %v2917
        %v2919 = vpop.f32.mrb[0].mxu0
        %v2920 = vadd.f32 0.0, %v2919
        %v2921 = vpop.f32.mrb[0].mxu0
        %v2922 = vadd.f32 0.0, %v2921
        %v2923 = vpop.f32.mrb[0].mxu0
        %v2924 = vadd.f32 0.0, %v2923
        %2925 = vmatprep.mubr.bf16.mxu0 %v2190
        %2926 = vmatmul.mubr.bf16.gmra.mrb[0].mxu0 %v2189
        %v2927 = vpop.f32.mrb[0].mxu0
        %v2928 = vadd.f32 0.0, %v2927
        %v2929 = vpop.f32.mrb[0].mxu0
        %v2930 = vadd.f32 0.0, %v2929
        %v2931 = vpop.f32.mrb[0].mxu0
        %v2932 = vadd.f32 0.0, %v2931
        %v2933 = vpop.f32.mrb[0].mxu0
        %v2934 = vadd.f32 0.0, %v2933
        %2935 = vmatprep.mubr.bf16.mxu0 %v2193
        %2936 = vmatmul.mubr.bf16.gmra.mrb[0].mxu0 %v2192
        %v2937 = vpop.f32.mrb[0].mxu0
        %v2938 = vadd.f32 0.0, %v2937
        %v2939 = vpop.f32.mrb[0].mxu0
        %v2940 = vadd.f32 0.0, %v2939
        %v2941 = vpop.f32.mrb[0].mxu0
        %v2942 = vadd.f32 0.0, %v2941
        %v2943 = vpop.f32.mrb[0].mxu0
        %v2944 = vadd.f32 0.0, %v2943
        %2945 = vmatprep.mubr.bf16.mxu0 %v2196
        %2946 = vmatmul.mubr.bf16.gmra.mrb[0].mxu0 %v2195
        %v2947 = vpop.f32.mrb[0].mxu0
        %v2948 = vadd.f32 0.0, %v2947
        %v2949 = vpop.f32.mrb[0].mxu0
        %v2950 = vadd.f32 0.0, %v2949
        %v2951 = vpop.f32.mrb[0].mxu0
        %v2952 = vadd.f32 0.0, %v2951
        %v2953 = vpop.f32.mrb[0].mxu0
        %v2954 = vadd.f32 0.0, %v2953
        %2955 = vmatprep.mubr.bf16.mxu0 %v2199
        %2956 = vmatmul.mubr.bf16.gmra.mrb[0].mxu0 %v2198
        %v2957 = vpop.f32.mrb[0].mxu0
        %v2958 = vadd.f32 0.0, %v2957
        %v2959 = vpop.f32.mrb[0].mxu0
        %v2960 = vadd.f32 0.0, %v2959
        %v2961 = vpop.f32.mrb[0].mxu0
        %v2962 = vadd.f32 0.0, %v2961
        %v2963 = vpop.f32.mrb[0].mxu0
        %v2964 = vadd.f32 0.0, %v2963
        %2965 = vmatprep.mubr.bf16.mxu0 %v2202
        %2966 = vmatmul.mubr.bf16.gmra.mrb[0].mxu0 %v2201
        %v2967 = vpop.f32.mrb[0].mxu0
        %v2968 = vadd.f32 0.0, %v2967
        %v2969 = vpop.f32.mrb[0].mxu0
        %v2970 = vadd.f32 0.0, %v2969
        %v2971 = vpop.f32.mrb[0].mxu0
        %v2972 = vadd.f32 0.0, %v2971
        %v2973 = vpop.f32.mrb[0].mxu0
        %v2974 = vadd.f32 0.0, %v2973
        %2975 = vmatprep.mubr.bf16.mxu0 %v2205
        %2976 = vmatmul.mubr.bf16.gmra.mrb[0].mxu0 %v2204
        %v2977 = vpop.f32.mrb[0].mxu0
        %v2978 = vadd.f32 0.0, %v2977
        %v2979 = vpop.f32.mrb[0].mxu0
        %v2980 = vadd.f32 0.0, %v2979
        %v2981 = vpop.f32.mrb[0].mxu0
        %v2982 = vadd.f32 0.0, %v2981
        %v2983 = vpop.f32.mrb[0].mxu0
        %v2984 = vadd.f32 0.0, %v2983
        %2985 = vmatprep.mubr.bf16.mxu0 %v2208
        %2986 = vmatmul.mubr.bf16.gmra.mrb[0].mxu0 %v2207
        %v2987 = vpop.f32.mrb[0].mxu0
        %v2988 = vadd.f32 0.0, %v2987
        %v2989 = vpop.f32.mrb[0].mxu0
        %v2990 = vadd.f32 0.0, %v2989
        %v2991 = vpop.f32.mrb[0].mxu0
        %v2992 = vadd.f32 0.0, %v2991
        %v2993 = vpop.f32.mrb[0].mxu0
        %v2994 = vadd.f32 0.0, %v2993
        %2995 = vmatprep.mubr.bf16.mxu0 %v2211
        %2996 = vmatmul.mubr.bf16.gmra.mrb[0].mxu0 %v2210
        %v2997 = vpop.f32.mrb[0].mxu0
        %v2998 = vadd.f32 0.0, %v2997
        %v2999 = vpop.f32.mrb[0].mxu0
        %v3000 = vadd.f32 0.0, %v2999
        %v3001 = vpop.f32.mrb[0].mxu0
        %v3002 = vadd.f32 0.0, %v3001
        %v3003 = vpop.f32.mrb[0].mxu0
        %v3004 = vadd.f32 0.0, %v3003
        %3005 = vmatprep.mubr.bf16.mxu0 %v2214
        %3006 = vmatmul.mubr.bf16.gmra.mrb[0].mxu0 %v2213
        %v3007 = vpop.f32.mrb[0].mxu0
        %v3008 = vadd.f32 0.0, %v3007
        %v3009 = vpop.f32.mrb[0].mxu0
        %v3010 = vadd.f32 0.0, %v3009
        %v3011 = vpop.f32.mrb[0].mxu0
        %v3012 = vadd.f32 0.0, %v3011
        %v3013 = vpop.f32.mrb[0].mxu0
        %v3014 = vadd.f32 0.0, %v3013
        %3015 = vmatprep.mubr.bf16.mxu0 %v2217
        %3016 = vmatmul.mubr.bf16.gmra.mrb[0].mxu0 %v2216
        %v3017 = vpop.f32.mrb[0].mxu0
        %v3018 = vadd.f32 0.0, %v3017
        %v3019 = vpop.f32.mrb[0].mxu0
        %v3020 = vadd.f32 0.0, %v3019
        %v3021 = vpop.f32.mrb[0].mxu0
        %v3022 = vadd.f32 0.0, %v3021
        %v3023 = vpop.f32.mrb[0].mxu0
        %v3024 = vadd.f32 0.0, %v3023
        %3025 = vmatprep.mubr.bf16.mxu0 %v2220
        %3026 = vmatmul.mubr.bf16.gmra.mrb[0].mxu0 %v2219
        %v3027 = vpop.f32.mrb[0].mxu0
        %v3028 = vadd.f32 0.0, %v3027
        %v3029 = vpop.f32.mrb[0].mxu0
        %v3030 = vadd.f32 0.0, %v3029
        %v3031 = vpop.f32.mrb[0].mxu0
        %v3032 = vadd.f32 0.0, %v3031
        %v3033 = vpop.f32.mrb[0].mxu0
        %v3034 = vadd.f32 0.0, %v3033
        %3035 = vmatprep.mubr.bf16.mxu0 %v2223
        %3036 = vmatmul.mubr.bf16.gmra.mrb[0].mxu0 %v2222
        %v3037 = vpop.f32.mrb[0].mxu0
        %v3038 = vadd.f32 0.0, %v3037
        %v3039 = vpop.f32.mrb[0].mxu0
        %v3040 = vadd.f32 0.0, %v3039
        %v3041 = vpop.f32.mrb[0].mxu0
        %v3042 = vadd.f32 0.0, %v3041
        %v3043 = vpop.f32.mrb[0].mxu0
        %v3044 = vadd.f32 0.0, %v3043
        %3045 = vmatprep.mubr.bf16.mxu0 %v2226
        %3046 = vmatmul.mubr.bf16.gmra.mrb[0].mxu0 %v2225
        %v3047 = vpop.f32.mrb[0].mxu0
        %v3048 = vadd.f32 0.0, %v3047
        %v3049 = vpop.f32.mrb[0].mxu0
        %v3050 = vadd.f32 0.0, %v3049
        %v3051 = vpop.f32.mrb[0].mxu0
        %v3052 = vadd.f32 0.0, %v3051
        %v3053 = vpop.f32.mrb[0].mxu0
        %v3054 = vadd.f32 0.0, %v3053
        %3055 = vmatprep.mubr.bf16.mxu0 %v2229
        %3056 = vmatmul.mubr.bf16.gmra.mrb[0].mxu0 %v2228
        %v3057 = vpop.f32.mrb[0].mxu0
        %v3058 = vadd.f32 0.0, %v3057
        %v3059 = vpop.f32.mrb[0].mxu0
        %v3060 = vadd.f32 0.0, %v3059
        %v3061 = vpop.f32.mrb[0].mxu0
        %v3062 = vadd.f32 0.0, %v3061
        %v3063 = vpop.f32.mrb[0].mxu0
        %v3064 = vadd.f32 0.0, %v3063
        %3065 = vmatprep.mubr.bf16.mxu0 %v2232
        %3066 = vmatmul.mubr.bf16.gmra.mrb[0].mxu0 %v2231
        %v3067 = vpop.f32.mrb[0].mxu0
        %v3068 = vadd.f32 0.0, %v3067
        %v3069 = vpop.f32.mrb[0].mxu0
        %v3070 = vadd.f32 0.0, %v3069
        %v3071 = vpop.f32.mrb[0].mxu0
        %v3072 = vadd.f32 0.0, %v3071
        %v3073 = vpop.f32.mrb[0].mxu0
        %v3074 = vadd.f32 0.0, %v3073
        %3075 = vmatprep.mubr.bf16.mxu0 %v2235
        %3076 = vmatmul.mubr.bf16.gmra.mrb[0].mxu0 %v2234
        %v3077 = vpop.f32.mrb[0].mxu0
        %v3078 = vadd.f32 0.0, %v3077
        %v3079 = vpop.f32.mrb[0].mxu0
        %v3080 = vadd.f32 0.0, %v3079
        %v3081 = vpop.f32.mrb[0].mxu0
        %v3082 = vadd.f32 0.0, %v3081
        %v3083 = vpop.f32.mrb[0].mxu0
        %v3084 = vadd.f32 0.0, %v3083
        %3085 = vmatprep.mubr.bf16.mxu0 %v2238
        %3086 = vmatmul.mubr.bf16.gmra.mrb[0].mxu0 %v2237
        %v3087 = vpop.f32.mrb[0].mxu0
        %v3088 = vadd.f32 0.0, %v3087
        %v3089 = vpop.f32.mrb[0].mxu0
        %v3090 = vadd.f32 0.0, %v3089
        %v3091 = vpop.f32.mrb[0].mxu0
        %v3092 = vadd.f32 0.0, %v3091
        %v3093 = vpop.f32.mrb[0].mxu0
        %v3094 = vadd.f32 0.0, %v3093
        %3095 = vmatprep.mubr.bf16.mxu0 %v2241
        %3096 = vmatmul.mubr.bf16.gmra.mrb[0].mxu0 %v2240
        %v3097 = vpop.f32.mrb[0].mxu0
        %v3098 = vadd.f32 0.0, %v3097
        %v3099 = vpop.f32.mrb[0].mxu0
        %v3100 = vadd.f32 0.0, %v3099
        %v3101 = vpop.f32.mrb[0].mxu0
        %v3102 = vadd.f32 0.0, %v3101
        %v3103 = vpop.f32.mrb[0].mxu0
        %v3104 = vadd.f32 0.0, %v3103
        %3105 = vmatprep.mubr.bf16.mxu0 %v2244
        %3106 = vmatmul.mubr.bf16.gmra.mrb[0].mxu0 %v2243
        %v3107 = vpop.f32.mrb[0].mxu0
        %v3108 = vadd.f32 0.0, %v3107
        %v3109 = vpop.f32.mrb[0].mxu0
        %v3110 = vadd.f32 0.0, %v3109
        %v3111 = vpop.f32.mrb[0].mxu0
        %v3112 = vadd.f32 0.0, %v3111
        %v3113 = vpop.f32.mrb[0].mxu0
        %v3114 = vadd.f32 0.0, %v3113
        %3115 = vmatprep.mubr.bf16.mxu0 %v2247
        %3116 = vmatmul.mubr.bf16.gmra.mrb[0].mxu0 %v2246
        %v3117 = vpop.f32.mrb[0].mxu0
        %v3118 = vadd.f32 0.0, %v3117
        %v3119 = vpop.f32.mrb[0].mxu0
        %v3120 = vadd.f32 0.0, %v3119
        %v3121 = vpop.f32.mrb[0].mxu0
        %v3122 = vadd.f32 0.0, %v3121
        %v3123 = vpop.f32.mrb[0].mxu0
        %v3124 = vadd.f32 0.0, %v3123
        %3125 = vmatprep.mubr.bf16.mxu0 %v2250
        %3126 = vmatmul.mubr.bf16.gmra.mrb[0].mxu0 %v2249
        %v3127 = vpop.f32.mrb[0].mxu0
        %v3128 = vadd.f32 0.0, %v3127
        %v3129 = vpop.f32.mrb[0].mxu0
        %v3130 = vadd.f32 0.0, %v3129
        %v3131 = vpop.f32.mrb[0].mxu0
        %v3132 = vadd.f32 0.0, %v3131
        %v3133 = vpop.f32.mrb[0].mxu0
        %v3134 = vadd.f32 0.0, %v3133
        %3135 = vmatprep.mubr.bf16.mxu0 %v2253
        %3136 = vmatmul.mubr.bf16.gmra.mrb[0].mxu0 %v2252
        %v3137 = vpop.f32.mrb[0].mxu0
        %v3138 = vadd.f32 0.0, %v3137
        %v3139 = vpop.f32.mrb[0].mxu0
        %v3140 = vadd.f32 0.0, %v3139
        %v3141 = vpop.f32.mrb[0].mxu0
        %v3142 = vadd.f32 0.0, %v3141
        %v3143 = vpop.f32.mrb[0].mxu0
        %v3144 = vadd.f32 0.0, %v3143
        %3145 = vmatprep.mubr.bf16.mxu0 %v2256
        %3146 = vmatmul.mubr.bf16.gmra.mrb[0].mxu0 %v2255
        %v3147 = vpop.f32.mrb[0].mxu0
        %v3148 = vadd.f32 0.0, %v3147
        %v3149 = vpop.f32.mrb[0].mxu0
        %v3150 = vadd.f32 0.0, %v3149
        %v3151 = vpop.f32.mrb[0].mxu0
        %v3152 = vadd.f32 0.0, %v3151
        %v3153 = vpop.f32.mrb[0].mxu0
        %v3154 = vadd.f32 0.0, %v3153
        %3155 = vmatprep.mubr.bf16.mxu0 %v2259
        %3156 = vmatmul.mubr.bf16.gmra.mrb[0].mxu0 %v2258
        %v3157 = vpop.f32.mrb[0].mxu0
        %v3158 = vadd.f32 0.0, %v3157
        %v3159 = vpop.f32.mrb[0].mxu0
        %v3160 = vadd.f32 0.0, %v3159
        %v3161 = vpop.f32.mrb[0].mxu0
        %v3162 = vadd.f32 0.0, %v3161
        %v3163 = vpop.f32.mrb[0].mxu0
        %v3164 = vadd.f32 0.0, %v3163
        %3165 = vmatprep.mubr.bf16.mxu0 %v2262
        %3166 = vmatmul.mubr.bf16.gmra.mrb[0].mxu0 %v2261
        %v3167 = vpop.f32.mrb[0].mxu0
        %v3168 = vadd.f32 0.0, %v3167
        %v3169 = vpop.f32.mrb[0].mxu0
        %v3170 = vadd.f32 0.0, %v3169
        %v3171 = vpop.f32.mrb[0].mxu0
        %v3172 = vadd.f32 0.0, %v3171
        %v3173 = vpop.f32.mrb[0].mxu0
        %v3174 = vadd.f32 0.0, %v3173
        %3175 = vmatprep.mubr.bf16.mxu0 %v2265
        %3176 = vmatmul.mubr.bf16.gmra.mrb[0].mxu0 %v2264
        %v3177 = vpop.f32.mrb[0].mxu0
        %v3178 = vadd.f32 0.0, %v3177
        %v3179 = vpop.f32.mrb[0].mxu0
        %v3180 = vadd.f32 0.0, %v3179
        %v3181 = vpop.f32.mrb[0].mxu0
        %v3182 = vadd.f32 0.0, %v3181
        %v3183 = vpop.f32.mrb[0].mxu0
        %v3184 = vadd.f32 0.0, %v3183
        %3185 = vmatprep.mubr.bf16.mxu0 %v2268
        %3186 = vmatmul.mubr.bf16.gmra.mrb[0].mxu0 %v2267
        %v3187 = vpop.f32.mrb[0].mxu0
        %v3188 = vadd.f32 0.0, %v3187
        %v3189 = vpop.f32.mrb[0].mxu0
        %v3190 = vadd.f32 0.0, %v3189
        %v3191 = vpop.f32.mrb[0].mxu0
        %v3192 = vadd.f32 0.0, %v3191
        %v3193 = vpop.f32.mrb[0].mxu0
        %v3194 = vadd.f32 0.0, %v3193
        %3195 = vmatprep.mubr.bf16.mxu0 %v2271
        %3196 = vmatmul.mubr.bf16.gmra.mrb[0].mxu0 %v2270
        %v3197 = vpop.f32.mrb[0].mxu0
        %v3198 = vadd.f32 0.0, %v3197
        %v3199 = vpop.f32.mrb[0].mxu0
        %v3200 = vadd.f32 0.0, %v3199
        %v3201 = vpop.f32.mrb[0].mxu0
        %v3202 = vadd.f32 0.0, %v3201
        %v3203 = vpop.f32.mrb[0].mxu0
        %v3204 = vadd.f32 0.0, %v3203
        %3205 = vmatprep.mubr.bf16.mxu0 %v2274
        %3206 = vmatmul.mubr.bf16.gmra.mrb[0].mxu0 %v2273
        %v3207 = vpop.f32.mrb[0].mxu0
        %v3208 = vadd.f32 0.0, %v3207
        %v3209 = vpop.f32.mrb[0].mxu0
        %v3210 = vadd.f32 0.0, %v3209
        %v3211 = vpop.f32.mrb[0].mxu0
        %v3212 = vadd.f32 0.0, %v3211
        %v3213 = vpop.f32.mrb[0].mxu0
        %v3214 = vadd.f32 0.0, %v3213
        %3215 = vmatprep.mubr.bf16.mxu0 %v2277
        %3216 = vmatmul.mubr.bf16.gmra.mrb[0].mxu0 %v2276
        %v3217 = vpop.f32.mrb[0].mxu0
        %v3218 = vadd.f32 0.0, %v3217
        %v3219 = vpop.f32.mrb[0].mxu0
        %v3220 = vadd.f32 0.0, %v3219
        %v3221 = vpop.f32.mrb[0].mxu0
        %v3222 = vadd.f32 0.0, %v3221
        %v3223 = vpop.f32.mrb[0].mxu0
        %v3224 = vadd.f32 0.0, %v3223
        %3225 = vmatprep.mubr.bf16.mxu0 %v2280
        %3226 = vmatmul.mubr.bf16.gmra.mrb[0].mxu0 %v2279
        %v3227 = vpop.f32.mrb[0].mxu0
        %v3228 = vadd.f32 0.0, %v3227
        %v3229 = vpop.f32.mrb[0].mxu0
        %v3230 = vadd.f32 0.0, %v3229
        %v3231 = vpop.f32.mrb[0].mxu0
        %v3232 = vadd.f32 0.0, %v3231
        %v3233 = vpop.f32.mrb[0].mxu0
        %v3234 = vadd.f32 0.0, %v3233
        %3235 = vmatprep.mubr.bf16.mxu0 %v2283
        %3236 = vmatmul.mubr.bf16.gmra.mrb[0].mxu0 %v2282
        %v3237 = vpop.f32.mrb[0].mxu0
        %v3238 = vadd.f32 0.0, %v3237
        %v3239 = vpop.f32.mrb[0].mxu0
        %v3240 = vadd.f32 0.0, %v3239
        %v3241 = vpop.f32.mrb[0].mxu0
        %v3242 = vadd.f32 0.0, %v3241
        %v3243 = vpop.f32.mrb[0].mxu0
        %v3244 = vadd.f32 0.0, %v3243
        %3245 = vmatprep.mubr.bf16.mxu0 %v2286
        %3246 = vmatmul.mubr.bf16.gmra.mrb[0].mxu0 %v2285
        %v3247 = vpop.f32.mrb[0].mxu0
        %v3248 = vadd.f32 0.0, %v3247
        %v3249 = vpop.f32.mrb[0].mxu0
        %v3250 = vadd.f32 0.0, %v3249
        %v3251 = vpop.f32.mrb[0].mxu0
        %v3252 = vadd.f32 0.0, %v3251
        %v3253 = vpop.f32.mrb[0].mxu0
        %v3254 = vadd.f32 0.0, %v3253
        %3255 = vmatprep.mubr.bf16.mxu0 %v2289
        %3256 = vmatmul.mubr.bf16.gmra.mrb[0].mxu0 %v2288
        %v3257 = vpop.f32.mrb[0].mxu0
        %v3258 = vadd.f32 0.0, %v3257
        %v3259 = vpop.f32.mrb[0].mxu0
        %v3260 = vadd.f32 0.0, %v3259
        %v3261 = vpop.f32.mrb[0].mxu0
        %v3262 = vadd.f32 0.0, %v3261
        %v3263 = vpop.f32.mrb[0].mxu0
        %v3264 = vadd.f32 0.0, %v3263
        %3265 = vmatprep.mubr.bf16.mxu0 %v2292
        %3266 = vmatmul.mubr.bf16.gmra.mrb[0].mxu0 %v2291
        %v3267 = vpop.f32.mrb[0].mxu0
        %v3268 = vadd.f32 0.0, %v3267
        %v3269 = vpop.f32.mrb[0].mxu0
        %v3270 = vadd.f32 0.0, %v3269
        %v3271 = vpop.f32.mrb[0].mxu0
        %v3272 = vadd.f32 0.0, %v3271
        %v3273 = vpop.f32.mrb[0].mxu0
        %v3274 = vadd.f32 0.0, %v3273
        %3275 = vmatprep.mubr.bf16.mxu0 %v2295
        %3276 = vmatmul.mubr.bf16.gmra.mrb[0].mxu0 %v2294
        %v3277 = vpop.f32.mrb[0].mxu0
        %v3278 = vadd.f32 0.0, %v3277
        %v3279 = vpop.f32.mrb[0].mxu0
        %v3280 = vadd.f32 0.0, %v3279
        %v3281 = vpop.f32.mrb[0].mxu0
        %v3282 = vadd.f32 0.0, %v3281
        %v3283 = vpop.f32.mrb[0].mxu0
        %v3284 = vadd.f32 0.0, %v3283
        %3285 = vmatprep.mubr.bf16.mxu0 %v2298
        %3286 = vmatmul.mubr.bf16.gmra.mrb[0].mxu0 %v2297
        %v3287 = vpop.f32.mrb[0].mxu0
        %v3288 = vadd.f32 0.0, %v3287
        %v3289 = vpop.f32.mrb[0].mxu0
        %v3290 = vadd.f32 0.0, %v3289
        %v3291 = vpop.f32.mrb[0].mxu0
        %v3292 = vadd.f32 0.0, %v3291
        %v3293 = vpop.f32.mrb[0].mxu0
        %v3294 = vadd.f32 0.0, %v3293
        %3295 = vmatprep.mubr.bf16.mxu0 %v2301
        %3296 = vmatmul.mubr.bf16.gmra.mrb[0].mxu0 %v2300
        %v3297 = vpop.f32.mrb[0].mxu0
        %v3298 = vadd.f32 0.0, %v3297
        %v3299 = vpop.f32.mrb[0].mxu0
        %v3300 = vadd.f32 0.0, %v3299
        %v3301 = vpop.f32.mrb[0].mxu0
        %v3302 = vadd.f32 0.0, %v3301
        %v3303 = vpop.f32.mrb[0].mxu0
        %v3304 = vadd.f32 0.0, %v3303
        %3305 = vmatprep.mubr.bf16.mxu0 %v2304
        %3306 = vmatmul.mubr.bf16.gmra.mrb[0].mxu0 %v2303
        %v3307 = vpop.f32.mrb[0].mxu0
        %v3308 = vadd.f32 0.0, %v3307
        %v3309 = vpop.f32.mrb[0].mxu0
        %v3310 = vadd.f32 0.0, %v3309
        %v3311 = vpop.f32.mrb[0].mxu0
        %v3312 = vadd.f32 0.0, %v3311
        %v3313 = vpop.f32.mrb[0].mxu0
        %v3314 = vadd.f32 0.0, %v3313
        %3315 = vmatprep.mubr.bf16.mxu0 %v2307
        %3316 = vmatmul.mubr.bf16.gmra.mrb[0].mxu0 %v2306
        %v3317 = vpop.f32.mrb[0].mxu0
        %v3318 = vadd.f32 0.0, %v3317
        %v3319 = vpop.f32.mrb[0].mxu0
        %v3320 = vadd.f32 0.0, %v3319
        %v3321 = vpop.f32.mrb[0].mxu0
        %v3322 = vadd.f32 0.0, %v3321
        %v3323 = vpop.f32.mrb[0].mxu0
        %v3324 = vadd.f32 0.0, %v3323
        %3325 = vmatprep.mubr.bf16.mxu0 %v2310
        %3326 = vmatmul.mubr.bf16.gmra.mrb[0].mxu0 %v2309
        %v3327 = vpop.f32.mrb[0].mxu0
        %v3328 = vpop.f32.mrb[0].mxu0
        %v3329 = vadd.f32 0.0, %v3328
        %v3330 = vpop.f32.mrb[0].mxu0
        %v3331 = vpop.f32.mrb[0].mxu0
        %v3332 = vadd.f32 0.0, %v3331
        %3333 = vmatprep.mubr.bf16.mxu0 %v2313
        %3334 = vmatmul.mubr.bf16.gmra.mrb[0].mxu0 %v2312
        %v3335 = vpop.f32.mrb[0].mxu0
        %v3336 = vpop.f32.mrb[0].mxu0
        %v3337 = vadd.f32 0.0, %v3336
        %v3338 = vpop.f32.mrb[0].mxu0
        %v3339 = vpop.f32.mrb[0].mxu0
        %v3340 = vadd.f32 0.0, %v3339
        %3341 = vmatprep.mubr.bf16.mxu0 %v2316
        %3342 = vmatmul.mubr.bf16.gmra.mrb[0].mxu0 %v2315
        %v3343 = vpop.f32.mrb[0].mxu0
        %v3344 = vpop.f32.mrb[0].mxu0
        %v3345 = vadd.f32 0.0, %v3344
        %v3346 = vpop.f32.mrb[0].mxu0
        %v3347 = vpop.f32.mrb[0].mxu0
        %v3348 = vadd.f32 0.0, %v3347
        %3349 = vmatprep.mubr.bf16.mxu0 %v2319
        %3350 = vmatmul.mubr.bf16.gmra.mrb[0].mxu0 %v2318
        %v3351 = vpop.f32.mrb[0].mxu0
        %v3352 = vpop.f32.mrb[0].mxu0
        %v3353 = vadd.f32 0.0, %v3352
        %v3354 = vpop.f32.mrb[0].mxu0
        %v3355 = vpop.f32.mrb[0].mxu0
        %3356 = vmatprep.mubr.bf16.mxu0 %v2322
        %3357 = vmatmul.mubr.bf16.gmra.mrb[0].mxu0 %v2321
        %v3358 = vpop.f32.mrb[0].mxu0
        %v3359 = vpop.f32.mrb[0].mxu0
        %v3360 = vpop.f32.mrb[0].mxu0
        %v3361 = vpop.f32.mrb[0].mxu0
        %3362 = vmatprep.mubr.bf16.mxu0 %v2325
        %3363 = vmatmul.mubr.bf16.gmra.mrb[0].mxu0 %v2324
        %v3364 = vpop.f32.mrb[0].mxu0
        %v3365 = vpop.f32.mrb[0].mxu0
        %v3366 = vpop.f32.mrb[0].mxu0
        %v3367 = vpop.f32.mrb[0].mxu0
        %3368 = vmatprep.mubr.bf16.mxu0 %v2328
        %3369 = vmatmul.mubr.bf16.gmra.mrb[0].mxu0 %v2327
        %v3370 = vpop.f32.mrb[0].mxu0
        %v3371 = vpop.f32.mrb[0].mxu0
        %v3372 = vpop.f32.mrb[0].mxu0
        %v3373 = vpop.f32.mrb[0].mxu0
        %3374 = vdwg.mxu0
        %3375 = vmatprep.subr.bf16.mxu0 %v2715
        %3376 = vmatpush1.bf16.msra.mxu0 %v2714
        %3377 = vmatprep.subr.bf16.mxu0 %v2718
        %3378 = vmatpush1.bf16.msra.mxu0 %v2717
        %3379 = vmatprep.subr.bf16.mxu0 %v2721
        %3380 = vmatpush1.bf16.msra.mxu0 %v2720
        %3381 = vmatprep.subr.bf16.mxu0 %v2724
        %3382 = vmatpush1.bf16.msra.mxu0 %v2723
        %3383 = vmatprep.subr.bf16.mxu0 %v2727
        %3384 = vmatpush1.bf16.msra.mxu0 %v2726
        %3385 = vmatprep.subr.bf16.mxu0 %v2730
        %3386 = vmatpush1.bf16.msra.mxu0 %v2729
        %3387 = vmatprep.subr.bf16.mxu0 %v2733
        %3388 = vmatpush1.bf16.msra.mxu0 %v2732
        %3389 = vmatprep.subr.bf16.mxu0 %v2736
        %3390 = vmatpush1.bf16.msra.mxu0 %v2735
        %3391 = vmatprep.subr.bf16.mxu0 0
        %3392 = vmatpush1.bf16.msra.mxu0 0
        %3393 = vmatprep.subr.bf16.mxu0 0
        %3394 = vmatpush1.bf16.msra.mxu0 0
        %3395 = vmatprep.subr.bf16.mxu0 0
        %3396 = vmatpush1.bf16.msra.mxu0 0
        %3397 = vmatprep.subr.bf16.mxu0 0
        %3398 = vmatpush1.bf16.msra.mxu0 0
        %3399 = vmatprep.subr.bf16.mxu0 0
        %3400 = vmatpush1.bf16.msra.mxu0 0
        %3401 = vmatprep.subr.bf16.mxu0 0
        %3402 = vmatpush1.bf16.msra.mxu0 0
        %3403 = vmatprep.subr.bf16.mxu0 0
        %3404 = vmatpush1.bf16.msra.mxu0 0
        %3405 = vmatprep.subr.bf16.mxu0 0
        %3406 = vmatpush1.bf16.msra.mxu0 0
        %3407 = vmatprep.mubr.bf16.mxu0 0
        %3408 = vmatmul.mubr.bf16.gmra.mrb[0].mxu0 %v2164
        %v3409 = vpop.f32.mrb[0].mxu0
        %v3410 = vadd.f32 %v2845, %v3409
        %v3411 = vpop.f32.mrb[0].mxu0
        %v3412 = vpop.f32.mrb[0].mxu0
        %v3413 = vadd.f32 %v2848, %v3412
        %v3414 = vpop.f32.mrb[0].mxu0
        %3415 = vmatprep.mubr.bf16.mxu0 0
        %3416 = vmatmul.mubr.bf16.gmra.mrb[0].mxu0 %v2167
        %v3417 = vpop.f32.mrb[0].mxu0
        %v3418 = vadd.f32 %v2853, %v3417
        %v3419 = vpop.f32.mrb[0].mxu0
        %v3420 = vpop.f32.mrb[0].mxu0
        %v3421 = vadd.f32 %v2856, %v3420
        %v3422 = vpop.f32.mrb[0].mxu0
        %3423 = vmatprep.mubr.bf16.mxu0 0
        %3424 = vmatmul.mubr.bf16.gmra.mrb[0].mxu0 %v2170
        %v3425 = vpop.f32.mrb[0].mxu0
        %v3426 = vadd.f32 %v2861, %v3425
        %v3427 = vpop.f32.mrb[0].mxu0
        %v3428 = vpop.f32.mrb[0].mxu0
        %v3429 = vadd.f32 %v2864, %v3428
        %v3430 = vpop.f32.mrb[0].mxu0
        %3431 = vmatprep.mubr.bf16.mxu0 0
        %3432 = vmatmul.mubr.bf16.gmra.mrb[0].mxu0 %v2173
        %v3433 = vpop.f32.mrb[0].mxu0
        %v3434 = vadd.f32 %v2869, %v3433
        %v3435 = vpop.f32.mrb[0].mxu0
        %v3436 = vpop.f32.mrb[0].mxu0
        %v3437 = vadd.f32 %v2872, %v3436
        %v3438 = vpop.f32.mrb[0].mxu0
        %v3439 = vadd.f32 %v2874, %v3438
        %3440 = vmatprep.mubr.bf16.mxu0 0
        %3441 = vmatmul.mubr.bf16.gmra.mrb[0].mxu0 %v2176
        %v3442 = vpop.f32.mrb[0].mxu0
        %v3443 = vadd.f32 %v2878, %v3442
        %v3444 = vpop.f32.mrb[0].mxu0
        %v3445 = vadd.f32 %v2880, %v3444
        %v3446 = vpop.f32.mrb[0].mxu0
        %v3447 = vadd.f32 %v2882, %v3446
        %v3448 = vpop.f32.mrb[0].mxu0
        %v3449 = vadd.f32 %v2884, %v3448
        %3450 = vmatprep.mubr.bf16.mxu0 0
        %3451 = vmatmul.mubr.bf16.gmra.mrb[0].mxu0 %v2179
        %v3452 = vpop.f32.mrb[0].mxu0
        %v3453 = vadd.f32 %v2888, %v3452
        %v3454 = vpop.f32.mrb[0].mxu0
        %v3455 = vadd.f32 %v2890, %v3454
        %v3456 = vpop.f32.mrb[0].mxu0
        %v3457 = vadd.f32 %v2892, %v3456
        %v3458 = vpop.f32.mrb[0].mxu0
        %v3459 = vadd.f32 %v2894, %v3458
        %3460 = vmatprep.mubr.bf16.mxu0 0
        %3461 = vmatmul.mubr.bf16.gmra.mrb[0].mxu0 %v2182
        %v3462 = vpop.f32.mrb[0].mxu0
        %v3463 = vadd.f32 %v2898, %v3462
        %v3464 = vpop.f32.mrb[0].mxu0
        %v3465 = vadd.f32 %v2900, %v3464
        %v3466 = vpop.f32.mrb[0].mxu0
        %v3467 = vadd.f32 %v2902, %v3466
        %v3468 = vpop.f32.mrb[0].mxu0
        %v3469 = vadd.f32 %v2904, %v3468
        %3470 = vmatprep.mubr.bf16.mxu0 0
        %3471 = vmatmul.mubr.bf16.gmra.mrb[0].mxu0 %v2185
        %v3472 = vpop.f32.mrb[0].mxu0
        %v3473 = vadd.f32 %v2908, %v3472
        %v3474 = vpop.f32.mrb[0].mxu0
        %v3475 = vadd.f32 %v2910, %v3474
        %v3476 = vpop.f32.mrb[0].mxu0
        %v3477 = vadd.f32 %v2912, %v3476
        %v3478 = vpop.f32.mrb[0].mxu0
        %v3479 = vadd.f32 %v2914, %v3478
        %3480 = vmatprep.mubr.bf16.mxu0 0
        %3481 = vmatmul.mubr.bf16.gmra.mrb[0].mxu0 %v2188
        %v3482 = vpop.f32.mrb[0].mxu0
        %v3483 = vadd.f32 %v2918, %v3482
        %v3484 = vpop.f32.mrb[0].mxu0
        %v3485 = vadd.f32 %v2920, %v3484
        %v3486 = vpop.f32.mrb[0].mxu0
        %v3487 = vadd.f32 %v2922, %v3486
        %v3488 = vpop.f32.mrb[0].mxu0
        %v3489 = vadd.f32 %v2924, %v3488
        %3490 = vmatprep.mubr.bf16.mxu0 0
        %3491 = vmatmul.mubr.bf16.gmra.mrb[0].mxu0 %v2191
        %v3492 = vpop.f32.mrb[0].mxu0
        %v3493 = vadd.f32 %v2928, %v3492
        %v3494 = vpop.f32.mrb[0].mxu0
        %v3495 = vadd.f32 %v2930, %v3494
        %v3496 = vpop.f32.mrb[0].mxu0
        %v3497 = vadd.f32 %v2932, %v3496
        %v3498 = vpop.f32.mrb[0].mxu0
        %v3499 = vadd.f32 %v2934, %v3498
        %3500 = vmatprep.mubr.bf16.mxu0 0
        %3501 = vmatmul.mubr.bf16.gmra.mrb[0].mxu0 %v2194
        %v3502 = vpop.f32.mrb[0].mxu0
        %v3503 = vadd.f32 %v2938, %v3502
        %v3504 = vpop.f32.mrb[0].mxu0
        %v3505 = vadd.f32 %v2940, %v3504
        %v3506 = vpop.f32.mrb[0].mxu0
        %v3507 = vadd.f32 %v2942, %v3506
        %v3508 = vpop.f32.mrb[0].mxu0
        %v3509 = vadd.f32 %v2944, %v3508
        %3510 = vmatprep.mubr.bf16.mxu0 0
        %3511 = vmatmul.mubr.bf16.gmra.mrb[0].mxu0 %v2197
        %v3512 = vpop.f32.mrb[0].mxu0
        %v3513 = vadd.f32 %v2948, %v3512
        %v3514 = vpop.f32.mrb[0].mxu0
        %v3515 = vadd.f32 %v2950, %v3514
        %v3516 = vpop.f32.mrb[0].mxu0
        %v3517 = vadd.f32 %v2952, %v3516
        %v3518 = vpop.f32.mrb[0].mxu0
        %v3519 = vadd.f32 %v2954, %v3518
        %3520 = vmatprep.mubr.bf16.mxu0 0
        %3521 = vmatmul.mubr.bf16.gmra.mrb[0].mxu0 %v2200
        %v3522 = vpop.f32.mrb[0].mxu0
        %v3523 = vadd.f32 %v2958, %v3522
        %v3524 = vpop.f32.mrb[0].mxu0
        %v3525 = vadd.f32 %v2960, %v3524
        %v3526 = vpop.f32.mrb[0].mxu0
        %v3527 = vadd.f32 %v2962, %v3526
        %v3528 = vpop.f32.mrb[0].mxu0
        %v3529 = vadd.f32 %v2964, %v3528
        %3530 = vmatprep.mubr.bf16.mxu0 0
        %3531 = vmatmul.mubr.bf16.gmra.mrb[0].mxu0 %v2203
        %v3532 = vpop.f32.mrb[0].mxu0
        %v3533 = vadd.f32 %v2968, %v3532
        %v3534 = vpop.f32.mrb[0].mxu0
        %v3535 = vadd.f32 %v2970, %v3534
        %v3536 = vpop.f32.mrb[0].mxu0
        %v3537 = vadd.f32 %v2972, %v3536
        %v3538 = vpop.f32.mrb[0].mxu0
        %v3539 = vadd.f32 %v2974, %v3538
        %3540 = vmatprep.mubr.bf16.mxu0 0
        %3541 = vmatmul.mubr.bf16.gmra.mrb[0].mxu0 %v2206
        %v3542 = vpop.f32.mrb[0].mxu0
        %v3543 = vadd.f32 %v2978, %v3542
        %v3544 = vpop.f32.mrb[0].mxu0
        %v3545 = vadd.f32 %v2980, %v3544
        %v3546 = vpop.f32.mrb[0].mxu0
        %v3547 = vadd.f32 %v2982, %v3546
        %v3548 = vpop.f32.mrb[0].mxu0
        %v3549 = vadd.f32 %v2984, %v3548
        %3550 = vmatprep.mubr.bf16.mxu0 0
        %3551 = vmatmul.mubr.bf16.gmra.mrb[0].mxu0 %v2209
        %v3552 = vpop.f32.mrb[0].mxu0
        %v3553 = vadd.f32 %v2988, %v3552
        %v3554 = vpop.f32.mrb[0].mxu0
        %v3555 = vadd.f32 %v2990, %v3554
        %v3556 = vpop.f32.mrb[0].mxu0
        %v3557 = vadd.f32 %v2992, %v3556
        %v3558 = vpop.f32.mrb[0].mxu0
        %v3559 = vadd.f32 %v2994, %v3558
        %3560 = vmatprep.mubr.bf16.mxu0 0
        %3561 = vmatmul.mubr.bf16.gmra.mrb[0].mxu0 %v2212
        %v3562 = vpop.f32.mrb[0].mxu0
        %v3563 = vadd.f32 %v2998, %v3562
        %v3564 = vpop.f32.mrb[0].mxu0
        %v3565 = vadd.f32 %v3000, %v3564
        %v3566 = vpop.f32.mrb[0].mxu0
        %v3567 = vadd.f32 %v3002, %v3566
        %v3568 = vpop.f32.mrb[0].mxu0
        %v3569 = vadd.f32 %v3004, %v3568
        %3570 = vmatprep.mubr.bf16.mxu0 0
        %3571 = vmatmul.mubr.bf16.gmra.mrb[0].mxu0 %v2215
        %v3572 = vpop.f32.mrb[0].mxu0
        %v3573 = vadd.f32 %v3008, %v3572
        %v3574 = vpop.f32.mrb[0].mxu0
        %v3575 = vadd.f32 %v3010, %v3574
        %v3576 = vpop.f32.mrb[0].mxu0
        %v3577 = vadd.f32 %v3012, %v3576
        %v3578 = vpop.f32.mrb[0].mxu0
        %v3579 = vadd.f32 %v3014, %v3578
        %3580 = vmatprep.mubr.bf16.mxu0 0
        %3581 = vmatmul.mubr.bf16.gmra.mrb[0].mxu0 %v2218
        %v3582 = vpop.f32.mrb[0].mxu0
        %v3583 = vadd.f32 %v3018, %v3582
        %v3584 = vpop.f32.mrb[0].mxu0
        %v3585 = vadd.f32 %v3020, %v3584
        %v3586 = vpop.f32.mrb[0].mxu0
        %v3587 = vadd.f32 %v3022, %v3586
        %v3588 = vpop.f32.mrb[0].mxu0
        %v3589 = vadd.f32 %v3024, %v3588
        %3590 = vmatprep.mubr.bf16.mxu0 0
        %3591 = vmatmul.mubr.bf16.gmra.mrb[0].mxu0 %v2221
        %v3592 = vpop.f32.mrb[0].mxu0
        %v3593 = vadd.f32 %v3028, %v3592
        %v3594 = vpop.f32.mrb[0].mxu0
        %v3595 = vadd.f32 %v3030, %v3594
        %v3596 = vpop.f32.mrb[0].mxu0
        %v3597 = vadd.f32 %v3032, %v3596
        %v3598 = vpop.f32.mrb[0].mxu0
        %v3599 = vadd.f32 %v3034, %v3598
        %3600 = vmatprep.mubr.bf16.mxu0 0
        %3601 = vmatmul.mubr.bf16.gmra.mrb[0].mxu0 %v2224
        %v3602 = vpop.f32.mrb[0].mxu0
        %v3603 = vadd.f32 %v3038, %v3602
        %v3604 = vpop.f32.mrb[0].mxu0
        %v3605 = vadd.f32 %v3040, %v3604
        %v3606 = vpop.f32.mrb[0].mxu0
        %v3607 = vadd.f32 %v3042, %v3606
        %v3608 = vpop.f32.mrb[0].mxu0
        %v3609 = vadd.f32 %v3044, %v3608
        %3610 = vmatprep.mubr.bf16.mxu0 0
        %3611 = vmatmul.mubr.bf16.gmra.mrb[0].mxu0 %v2227
        %v3612 = vpop.f32.mrb[0].mxu0
        %v3613 = vadd.f32 %v3048, %v3612
        %v3614 = vpop.f32.mrb[0].mxu0
        %v3615 = vadd.f32 %v3050, %v3614
        %v3616 = vpop.f32.mrb[0].mxu0
        %v3617 = vadd.f32 %v3052, %v3616
        %v3618 = vpop.f32.mrb[0].mxu0
        %v3619 = vadd.f32 %v3054, %v3618
        %3620 = vmatprep.mubr.bf16.mxu0 0
        %3621 = vmatmul.mubr.bf16.gmra.mrb[0].mxu0 %v2230
        %v3622 = vpop.f32.mrb[0].mxu0
        %v3623 = vadd.f32 %v3058, %v3622
        %v3624 = vpop.f32.mrb[0].mxu0
        %v3625 = vadd.f32 %v3060, %v3624
        %v3626 = vpop.f32.mrb[0].mxu0
        %v3627 = vadd.f32 %v3062, %v3626
        %v3628 = vpop.f32.mrb[0].mxu0
        %v3629 = vadd.f32 %v3064, %v3628
        %3630 = vmatprep.mubr.bf16.mxu0 0
        %3631 = vmatmul.mubr.bf16.gmra.mrb[0].mxu0 %v2233
        %v3632 = vpop.f32.mrb[0].mxu0
        %v3633 = vadd.f32 %v3068, %v3632
        %v3634 = vpop.f32.mrb[0].mxu0
        %v3635 = vadd.f32 %v3070, %v3634
        %v3636 = vpop.f32.mrb[0].mxu0
        %v3637 = vadd.f32 %v3072, %v3636
        %v3638 = vpop.f32.mrb[0].mxu0
        %v3639 = vadd.f32 %v3074, %v3638
        %3640 = vmatprep.mubr.bf16.mxu0 0
        %3641 = vmatmul.mubr.bf16.gmra.mrb[0].mxu0 %v2236
        %v3642 = vpop.f32.mrb[0].mxu0
        %v3643 = vadd.f32 %v3078, %v3642
        %v3644 = vpop.f32.mrb[0].mxu0
        %v3645 = vadd.f32 %v3080, %v3644
        %v3646 = vpop.f32.mrb[0].mxu0
        %v3647 = vadd.f32 %v3082, %v3646
        %v3648 = vpop.f32.mrb[0].mxu0
        %v3649 = vadd.f32 %v3084, %v3648
        %3650 = vmatprep.mubr.bf16.mxu0 0
        %3651 = vmatmul.mubr.bf16.gmra.mrb[0].mxu0 %v2239
        %v3652 = vpop.f32.mrb[0].mxu0
        %v3653 = vadd.f32 %v3088, %v3652
        %v3654 = vpop.f32.mrb[0].mxu0
        %v3655 = vadd.f32 %v3090, %v3654
        %v3656 = vpop.f32.mrb[0].mxu0
        %v3657 = vadd.f32 %v3092, %v3656
        %v3658 = vpop.f32.mrb[0].mxu0
        %v3659 = vadd.f32 %v3094, %v3658
        %3660 = vmatprep.mubr.bf16.mxu0 0
        %3661 = vmatmul.mubr.bf16.gmra.mrb[0].mxu0 %v2242
        %v3662 = vpop.f32.mrb[0].mxu0
        %v3663 = vadd.f32 %v3098, %v3662
        %v3664 = vpop.f32.mrb[0].mxu0
        %v3665 = vadd.f32 %v3100, %v3664
        %v3666 = vpop.f32.mrb[0].mxu0
        %v3667 = vadd.f32 %v3102, %v3666
        %v3668 = vpop.f32.mrb[0].mxu0
        %v3669 = vadd.f32 %v3104, %v3668
        %3670 = vmatprep.mubr.bf16.mxu0 0
        %3671 = vmatmul.mubr.bf16.gmra.mrb[0].mxu0 %v2245
        %v3672 = vpop.f32.mrb[0].mxu0
        %v3673 = vadd.f32 %v3108, %v3672
        %v3674 = vpop.f32.mrb[0].mxu0
        %v3675 = vadd.f32 %v3110, %v3674
        %v3676 = vpop.f32.mrb[0].mxu0
        %v3677 = vadd.f32 %v3112, %v3676
        %v3678 = vpop.f32.mrb[0].mxu0
        %v3679 = vadd.f32 %v3114, %v3678
        %3680 = vmatprep.mubr.bf16.mxu0 0
        %3681 = vmatmul.mubr.bf16.gmra.mrb[0].mxu0 %v2248
        %v3682 = vpop.f32.mrb[0].mxu0
        %v3683 = vadd.f32 %v3118, %v3682
        %v3684 = vpop.f32.mrb[0].mxu0
        %v3685 = vadd.f32 %v3120, %v3684
        %v3686 = vpop.f32.mrb[0].mxu0
        %v3687 = vadd.f32 %v3122, %v3686
        %v3688 = vpop.f32.mrb[0].mxu0
        %v3689 = vadd.f32 %v3124, %v3688
        %3690 = vmatprep.mubr.bf16.mxu0 0
        %3691 = vmatmul.mubr.bf16.gmra.mrb[0].mxu0 %v2251
        %v3692 = vpop.f32.mrb[0].mxu0
        %v3693 = vadd.f32 %v3128, %v3692
        %v3694 = vpop.f32.mrb[0].mxu0
        %v3695 = vadd.f32 %v3130, %v3694
        %v3696 = vpop.f32.mrb[0].mxu0
        %v3697 = vadd.f32 %v3132, %v3696
        %v3698 = vpop.f32.mrb[0].mxu0
        %v3699 = vadd.f32 %v3134, %v3698
        %3700 = vmatprep.mubr.bf16.mxu0 0
        %3701 = vmatmul.mubr.bf16.gmra.mrb[0].mxu0 %v2254
        %v3702 = vpop.f32.mrb[0].mxu0
        %v3703 = vadd.f32 %v3138, %v3702
        %v3704 = vpop.f32.mrb[0].mxu0
        %v3705 = vadd.f32 %v3140, %v3704
        %v3706 = vpop.f32.mrb[0].mxu0
        %v3707 = vadd.f32 %v3142, %v3706
        %v3708 = vpop.f32.mrb[0].mxu0
        %v3709 = vadd.f32 %v3144, %v3708
        %3710 = vmatprep.mubr.bf16.mxu0 0
        %3711 = vmatmul.mubr.bf16.gmra.mrb[0].mxu0 %v2257
        %v3712 = vpop.f32.mrb[0].mxu0
        %v3713 = vadd.f32 %v3148, %v3712
        %v3714 = vpop.f32.mrb[0].mxu0
        %v3715 = vadd.f32 %v3150, %v3714
        %v3716 = vpop.f32.mrb[0].mxu0
        %v3717 = vadd.f32 %v3152, %v3716
        %v3718 = vpop.f32.mrb[0].mxu0
        %v3719 = vadd.f32 %v3154, %v3718
        %3720 = vmatprep.mubr.bf16.mxu0 0
        %3721 = vmatmul.mubr.bf16.gmra.mrb[0].mxu0 %v2260
        %v3722 = vpop.f32.mrb[0].mxu0
        %v3723 = vadd.f32 %v3158, %v3722
        %v3724 = vpop.f32.mrb[0].mxu0
        %v3725 = vadd.f32 %v3160, %v3724
        %v3726 = vpop.f32.mrb[0].mxu0
        %v3727 = vadd.f32 %v3162, %v3726
        %v3728 = vpop.f32.mrb[0].mxu0
        %v3729 = vadd.f32 %v3164, %v3728
        %3730 = vmatprep.mubr.bf16.mxu0 0
        %3731 = vmatmul.mubr.bf16.gmra.mrb[0].mxu0 %v2263
        %v3732 = vpop.f32.mrb[0].mxu0
        %v3733 = vadd.f32 %v3168, %v3732
        %v3734 = vpop.f32.mrb[0].mxu0
        %v3735 = vadd.f32 %v3170, %v3734
        %v3736 = vpop.f32.mrb[0].mxu0
        %v3737 = vadd.f32 %v3172, %v3736
        %v3738 = vpop.f32.mrb[0].mxu0
        %v3739 = vadd.f32 %v3174, %v3738
        %3740 = vmatprep.mubr.bf16.mxu0 0
        %3741 = vmatmul.mubr.bf16.gmra.mrb[0].mxu0 %v2266
        %v3742 = vpop.f32.mrb[0].mxu0
        %v3743 = vadd.f32 %v3178, %v3742
        %v3744 = vpop.f32.mrb[0].mxu0
        %v3745 = vadd.f32 %v3180, %v3744
        %v3746 = vpop.f32.mrb[0].mxu0
        %v3747 = vadd.f32 %v3182, %v3746
        %v3748 = vpop.f32.mrb[0].mxu0
        %v3749 = vadd.f32 %v3184, %v3748
        %3750 = vmatprep.mubr.bf16.mxu0 0
        %3751 = vmatmul.mubr.bf16.gmra.mrb[0].mxu0 %v2269
        %v3752 = vpop.f32.mrb[0].mxu0
        %v3753 = vadd.f32 %v3188, %v3752
        %v3754 = vpop.f32.mrb[0].mxu0
        %v3755 = vadd.f32 %v3190, %v3754
        %v3756 = vpop.f32.mrb[0].mxu0
        %v3757 = vadd.f32 %v3192, %v3756
        %v3758 = vpop.f32.mrb[0].mxu0
        %v3759 = vadd.f32 %v3194, %v3758
        %3760 = vmatprep.mubr.bf16.mxu0 0
        %3761 = vmatmul.mubr.bf16.gmra.mrb[0].mxu0 %v2272
        %v3762 = vpop.f32.mrb[0].mxu0
        %v3763 = vadd.f32 %v3198, %v3762
        %v3764 = vpop.f32.mrb[0].mxu0
        %v3765 = vadd.f32 %v3200, %v3764
        %v3766 = vpop.f32.mrb[0].mxu0
        %v3767 = vadd.f32 %v3202, %v3766
        %v3768 = vpop.f32.mrb[0].mxu0
        %v3769 = vadd.f32 %v3204, %v3768
        %3770 = vmatprep.mubr.bf16.mxu0 0
        %3771 = vmatmul.mubr.bf16.gmra.mrb[0].mxu0 %v2275
        %v3772 = vpop.f32.mrb[0].mxu0
        %v3773 = vadd.f32 %v3208, %v3772
        %v3774 = vpop.f32.mrb[0].mxu0
        %v3775 = vadd.f32 %v3210, %v3774
        %v3776 = vpop.f32.mrb[0].mxu0
        %v3777 = vadd.f32 %v3212, %v3776
        %v3778 = vpop.f32.mrb[0].mxu0
        %v3779 = vadd.f32 %v3214, %v3778
        %3780 = vmatprep.mubr.bf16.mxu0 0
        %3781 = vmatmul.mubr.bf16.gmra.mrb[0].mxu0 %v2278
        %v3782 = vpop.f32.mrb[0].mxu0
        %v3783 = vadd.f32 %v3218, %v3782
        %v3784 = vpop.f32.mrb[0].mxu0
        %v3785 = vadd.f32 %v3220, %v3784
        %v3786 = vpop.f32.mrb[0].mxu0
        %v3787 = vadd.f32 %v3222, %v3786
        %v3788 = vpop.f32.mrb[0].mxu0
        %v3789 = vadd.f32 %v3224, %v3788
        %3790 = vmatprep.mubr.bf16.mxu0 0
        %3791 = vmatmul.mubr.bf16.gmra.mrb[0].mxu0 %v2281
        %v3792 = vpop.f32.mrb[0].mxu0
        %v3793 = vadd.f32 %v3228, %v3792
        %v3794 = vpop.f32.mrb[0].mxu0
        %v3795 = vadd.f32 %v3230, %v3794
        %v3796 = vpop.f32.mrb[0].mxu0
        %v3797 = vadd.f32 %v3232, %v3796
        %v3798 = vpop.f32.mrb[0].mxu0
        %v3799 = vadd.f32 %v3234, %v3798
        %3800 = vmatprep.mubr.bf16.mxu0 0
        %3801 = vmatmul.mubr.bf16.gmra.mrb[0].mxu0 %v2284
        %v3802 = vpop.f32.mrb[0].mxu0
        %v3803 = vadd.f32 %v3238, %v3802
        %v3804 = vpop.f32.mrb[0].mxu0
        %v3805 = vadd.f32 %v3240, %v3804
        %v3806 = vpop.f32.mrb[0].mxu0
        %v3807 = vadd.f32 %v3242, %v3806
        %v3808 = vpop.f32.mrb[0].mxu0
        %v3809 = vadd.f32 %v3244, %v3808
        %3810 = vmatprep.mubr.bf16.mxu0 0
        %3811 = vmatmul.mubr.bf16.gmra.mrb[0].mxu0 %v2287
        %v3812 = vpop.f32.mrb[0].mxu0
        %v3813 = vadd.f32 %v3248, %v3812
        %v3814 = vpop.f32.mrb[0].mxu0
        %v3815 = vadd.f32 %v3250, %v3814
        %v3816 = vpop.f32.mrb[0].mxu0
        %v3817 = vadd.f32 %v3252, %v3816
        %v3818 = vpop.f32.mrb[0].mxu0
        %v3819 = vadd.f32 %v3254, %v3818
        %3820 = vmatprep.mubr.bf16.mxu0 0
        %3821 = vmatmul.mubr.bf16.gmra.mrb[0].mxu0 %v2290
        %v3822 = vpop.f32.mrb[0].mxu0
        %v3823 = vadd.f32 %v3258, %v3822
        %v3824 = vpop.f32.mrb[0].mxu0
        %v3825 = vadd.f32 %v3260, %v3824
        %v3826 = vpop.f32.mrb[0].mxu0
        %v3827 = vadd.f32 %v3262, %v3826
        %v3828 = vpop.f32.mrb[0].mxu0
        %v3829 = vadd.f32 %v3264, %v3828
        %3830 = vmatprep.mubr.bf16.mxu0 0
        %3831 = vmatmul.mubr.bf16.gmra.mrb[0].mxu0 %v2293
        %v3832 = vpop.f32.mrb[0].mxu0
        %v3833 = vadd.f32 %v3268, %v3832
        %v3834 = vpop.f32.mrb[0].mxu0
        %v3835 = vadd.f32 %v3270, %v3834
        %v3836 = vpop.f32.mrb[0].mxu0
        %v3837 = vadd.f32 %v3272, %v3836
        %v3838 = vpop.f32.mrb[0].mxu0
        %v3839 = vadd.f32 %v3274, %v3838
        %3840 = vmatprep.mubr.bf16.mxu0 0
        %3841 = vmatmul.mubr.bf16.gmra.mrb[0].mxu0 %v2296
        %v3842 = vpop.f32.mrb[0].mxu0
        %v3843 = vadd.f32 %v3278, %v3842
        %v3844 = vpop.f32.mrb[0].mxu0
        %v3845 = vadd.f32 %v3280, %v3844
        %v3846 = vpop.f32.mrb[0].mxu0
        %v3847 = vadd.f32 %v3282, %v3846
        %v3848 = vpop.f32.mrb[0].mxu0
        %v3849 = vadd.f32 %v3284, %v3848
        %3850 = vmatprep.mubr.bf16.mxu0 0
        %3851 = vmatmul.mubr.bf16.gmra.mrb[0].mxu0 %v2299
        %v3852 = vpop.f32.mrb[0].mxu0
        %v3853 = vadd.f32 %v3288, %v3852
        %v3854 = vpop.f32.mrb[0].mxu0
        %v3855 = vadd.f32 %v3290, %v3854
        %v3856 = vpop.f32.mrb[0].mxu0
        %v3857 = vadd.f32 %v3292, %v3856
        %v3858 = vpop.f32.mrb[0].mxu0
        %v3859 = vadd.f32 %v3294, %v3858
        %3860 = vmatprep.mubr.bf16.mxu0 0
        %3861 = vmatmul.mubr.bf16.gmra.mrb[0].mxu0 %v2302
        %v3862 = vpop.f32.mrb[0].mxu0
        %v3863 = vadd.f32 %v3298, %v3862
        %v3864 = vpop.f32.mrb[0].mxu0
        %v3865 = vadd.f32 %v3300, %v3864
        %v3866 = vpop.f32.mrb[0].mxu0
        %v3867 = vadd.f32 %v3302, %v3866
        %v3868 = vpop.f32.mrb[0].mxu0
        %v3869 = vadd.f32 %v3304, %v3868
        %3870 = vmatprep.mubr.bf16.mxu0 0
        %3871 = vmatmul.mubr.bf16.gmra.mrb[0].mxu0 %v2305
        %v3872 = vpop.f32.mrb[0].mxu0
        %v3873 = vadd.f32 %v3308, %v3872
        %v3874 = vpop.f32.mrb[0].mxu0
        %v3875 = vadd.f32 %v3310, %v3874
        %v3876 = vpop.f32.mrb[0].mxu0
        %v3877 = vadd.f32 %v3312, %v3876
        %v3878 = vpop.f32.mrb[0].mxu0
        %v3879 = vadd.f32 %v3314, %v3878
        %3880 = vmatprep.mubr.bf16.mxu0 0
        %3881 = vmatmul.mubr.bf16.gmra.mrb[0].mxu0 %v2308
        %v3882 = vpop.f32.mrb[0].mxu0
        %v3883 = vadd.f32 %v3318, %v3882
        %v3884 = vpop.f32.mrb[0].mxu0
        %v3885 = vadd.f32 %v3320, %v3884
        %v3886 = vpop.f32.mrb[0].mxu0
        %v3887 = vadd.f32 %v3322, %v3886
        %v3888 = vpop.f32.mrb[0].mxu0
        %v3889 = vadd.f32 %v3324, %v3888
        %3890 = vmatprep.mubr.bf16.mxu0 0
        %3891 = vmatmul.mubr.bf16.gmra.mrb[0].mxu0 %v2311
        %v3892 = vpop.f32.mrb[0].mxu0
        %v3893 = vpop.f32.mrb[0].mxu0
        %v3894 = vadd.f32 %v3329, %v3893
        %v3895 = vpop.f32.mrb[0].mxu0
        %v3896 = vpop.f32.mrb[0].mxu0
        %v3897 = vadd.f32 %v3332, %v3896
        %3898 = vmatprep.mubr.bf16.mxu0 0
        %3899 = vmatmul.mubr.bf16.gmra.mrb[0].mxu0 %v2314
        %v3900 = vpop.f32.mrb[0].mxu0
        %v3901 = vpop.f32.mrb[0].mxu0
        %v3902 = vadd.f32 %v3337, %v3901
        %v3903 = vpop.f32.mrb[0].mxu0
        %v3904 = vpop.f32.mrb[0].mxu0
        %v3905 = vadd.f32 %v3340, %v3904
        %3906 = vmatprep.mubr.bf16.mxu0 0
        %3907 = vmatmul.mubr.bf16.gmra.mrb[0].mxu0 %v2317
        %v3908 = vpop.f32.mrb[0].mxu0
        %v3909 = vpop.f32.mrb[0].mxu0
        %v3910 = vadd.f32 %v3345, %v3909
        %v3911 = vpop.f32.mrb[0].mxu0
        %v3912 = vpop.f32.mrb[0].mxu0
        %v3913 = vadd.f32 %v3348, %v3912
        %3914 = vmatprep.mubr.bf16.mxu0 0
        %3915 = vmatmul.mubr.bf16.gmra.mrb[0].mxu0 %v2320
        %v3916 = vpop.f32.mrb[0].mxu0
        %v3917 = vpop.f32.mrb[0].mxu0
        %v3918 = vadd.f32 %v3353, %v3917
        %v3919 = vpop.f32.mrb[0].mxu0
        %v3920 = vpop.f32.mrb[0].mxu0
        %3921 = vmatprep.mubr.bf16.mxu0 0
        %3922 = vmatmul.mubr.bf16.gmra.mrb[0].mxu0 %v2323
        %v3923 = vpop.f32.mrb[0].mxu0
        %v3924 = vpop.f32.mrb[0].mxu0
        %v3925 = vpop.f32.mrb[0].mxu0
        %v3926 = vpop.f32.mrb[0].mxu0
        %3927 = vmatprep.mubr.bf16.mxu0 0
        %3928 = vmatmul.mubr.bf16.gmra.mrb[0].mxu0 %v2326
        %v3929 = vpop.f32.mrb[0].mxu0
        %v3930 = vpop.f32.mrb[0].mxu0
        %v3931 = vpop.f32.mrb[0].mxu0
        %v3932 = vpop.f32.mrb[0].mxu0
        %3933 = vmatprep.mubr.bf16.mxu0 0
        %3934 = vmatmul.mubr.bf16.gmra.mrb[0].mxu0 %v2329
        %v3935 = vpop.f32.mrb[0].mxu0
        %v3936 = vpop.f32.mrb[0].mxu0
        %v3937 = vpop.f32.mrb[0].mxu0
        %v3938 = vpop.f32.mrb[0].mxu0
        %3939 = vdwg.mxu0
        %3940 = vmatprep.subr.bf16.mxu0 0
        %3941 = vmatpush1.bf16.msra.mxu0 %v2668
        %3942 = vmatprep.subr.bf16.mxu0 0
        %3943 = vmatpush1.bf16.msra.mxu0 %v2671
        %3944 = vmatprep.subr.bf16.mxu0 0
        %3945 = vmatpush1.bf16.msra.mxu0 %v2674
        %3946 = vmatprep.subr.bf16.mxu0 0
        %3947 = vmatpush1.bf16.msra.mxu0 %v2677
        %3948 = vmatprep.subr.bf16.mxu0 0
        %3949 = vmatpush1.bf16.msra.mxu0 %v2680
        %3950 = vmatprep.subr.bf16.mxu0 0
        %3951 = vmatpush1.bf16.msra.mxu0 %v2683
        %3952 = vmatprep.subr.bf16.mxu0 0
        %3953 = vmatpush1.bf16.msra.mxu0 %v2686
        %3954 = vmatprep.subr.bf16.mxu0 0
        %3955 = vmatpush1.bf16.msra.mxu0 %v2689
        %3956 = vmatprep.subr.bf16.mxu0 0
        %3957 = vmatpush1.bf16.msra.mxu0 %v2692
        %3958 = vmatprep.subr.bf16.mxu0 0
        %3959 = vmatpush1.bf16.msra.mxu0 %v2695
        %3960 = vmatprep.subr.bf16.mxu0 0
        %3961 = vmatpush1.bf16.msra.mxu0 %v2698
        %3962 = vmatprep.subr.bf16.mxu0 0
        %3963 = vmatpush1.bf16.msra.mxu0 %v2701
        %3964 = vmatprep.subr.bf16.mxu0 0
        %3965 = vmatpush1.bf16.msra.mxu0 %v2704
        %3966 = vmatprep.subr.bf16.mxu0 0
        %3967 = vmatpush1.bf16.msra.mxu0 %v2707
        %3968 = vmatprep.subr.bf16.mxu0 0
        %3969 = vmatpush1.bf16.msra.mxu0 %v2710
        %3970 = vmatprep.subr.bf16.mxu0 0
        %3971 = vmatpush1.bf16.msra.mxu0 %v2713
        %3972 = vmatprep.mubr.bf16.mxu0 %v2163
        %3973 = vmatmul.mubr.bf16.gmra.mrb[0].mxu0 %v2162
        %v3974 = vpop.f32.mrb[0].mxu0
        %v3975 = vpop.f32.mrb[0].mxu0
        %v3976 = vpop.f32.mrb[0].mxu0
        %v3977 = vpop.f32.mrb[0].mxu0
        %3978 = vmatprep.mubr.bf16.mxu0 %v2166
        %3979 = vmatmul.mubr.bf16.gmra.mrb[0].mxu0 %v2165
        %v3980 = vpop.f32.mrb[0].mxu0
        %v3981 = vpop.f32.mrb[0].mxu0
        %v3982 = vpop.f32.mrb[0].mxu0
        %v3983 = vpop.f32.mrb[0].mxu0
        %3984 = vmatprep.mubr.bf16.mxu0 %v2169
        %3985 = vmatmul.mubr.bf16.gmra.mrb[0].mxu0 %v2168
        %v3986 = vpop.f32.mrb[0].mxu0
        %v3987 = vpop.f32.mrb[0].mxu0
        %v3988 = vpop.f32.mrb[0].mxu0
        %v3989 = vpop.f32.mrb[0].mxu0
        %3990 = vmatprep.mubr.bf16.mxu0 %v2172
        %3991 = vmatmul.mubr.bf16.gmra.mrb[0].mxu0 %v2171
        %v3992 = vpop.f32.mrb[0].mxu0
        %v3993 = vpop.f32.mrb[0].mxu0
        %v3994 = vpop.f32.mrb[0].mxu0
        %v3995 = vpop.f32.mrb[0].mxu0
        %3996 = vmatprep.mubr.bf16.mxu0 %v2175
        %3997 = vmatmul.mubr.bf16.gmra.mrb[0].mxu0 %v2174
        %v3998 = vpop.f32.mrb[0].mxu0
        %v3999 = vpop.f32.mrb[0].mxu0
        %v4000 = vpop.f32.mrb[0].mxu0
        %v4001 = vpop.f32.mrb[0].mxu0
        %4002 = vmatprep.mubr.bf16.mxu0 %v2178
        %4003 = vmatmul.mubr.bf16.gmra.mrb[0].mxu0 %v2177
        %v4004 = vpop.f32.mrb[0].mxu0
        %v4005 = vpop.f32.mrb[0].mxu0
        %v4006 = vpop.f32.mrb[0].mxu0
        %v4007 = vpop.f32.mrb[0].mxu0
        %4008 = vmatprep.mubr.bf16.mxu0 %v2181
        %4009 = vmatmul.mubr.bf16.gmra.mrb[0].mxu0 %v2180
        %v4010 = vpop.f32.mrb[0].mxu0
        %v4011 = vpop.f32.mrb[0].mxu0
        %v4012 = vpop.f32.mrb[0].mxu0
        %v4013 = vpop.f32.mrb[0].mxu0
        %4014 = vmatprep.mubr.bf16.mxu0 %v2184
        %4015 = vmatmul.mubr.bf16.gmra.mrb[0].mxu0 %v2183
        %v4016 = vpop.f32.mrb[0].mxu0
        %v4017 = vadd.f32 0.0, %v4016
        %v4018 = vpop.f32.mrb[0].mxu0
        %v4019 = vpop.f32.mrb[0].mxu0
        %v4020 = vadd.f32 0.0, %v4019
        %v4021 = vpop.f32.mrb[0].mxu0
        %4022 = vmatprep.mubr.bf16.mxu0 %v2187
        %4023 = vmatmul.mubr.bf16.gmra.mrb[0].mxu0 %v2186
        %v4024 = vpop.f32.mrb[0].mxu0
        %v4025 = vadd.f32 0.0, %v4024
        %v4026 = vpop.f32.mrb[0].mxu0
        %v4027 = vpop.f32.mrb[0].mxu0
        %v4028 = vadd.f32 0.0, %v4027
        %v4029 = vpop.f32.mrb[0].mxu0
        %4030 = vmatprep.mubr.bf16.mxu0 %v2190
        %4031 = vmatmul.mubr.bf16.gmra.mrb[0].mxu0 %v2189
        %v4032 = vpop.f32.mrb[0].mxu0
        %v4033 = vadd.f32 0.0, %v4032
        %v4034 = vpop.f32.mrb[0].mxu0
        %v4035 = vpop.f32.mrb[0].mxu0
        %v4036 = vadd.f32 0.0, %v4035
        %v4037 = vpop.f32.mrb[0].mxu0
        %4038 = vmatprep.mubr.bf16.mxu0 %v2193
        %4039 = vmatmul.mubr.bf16.gmra.mrb[0].mxu0 %v2192
        %v4040 = vpop.f32.mrb[0].mxu0
        %v4041 = vadd.f32 0.0, %v4040
        %v4042 = vpop.f32.mrb[0].mxu0
        %v4043 = vpop.f32.mrb[0].mxu0
        %v4044 = vadd.f32 0.0, %v4043
        %v4045 = vpop.f32.mrb[0].mxu0
        %4046 = vmatprep.mubr.bf16.mxu0 %v2196
        %4047 = vmatmul.mubr.bf16.gmra.mrb[0].mxu0 %v2195
        %v4048 = vpop.f32.mrb[0].mxu0
        %v4049 = vadd.f32 0.0, %v4048
        %v4050 = vpop.f32.mrb[0].mxu0
        %v4051 = vpop.f32.mrb[0].mxu0
        %v4052 = vadd.f32 0.0, %v4051
        %v4053 = vpop.f32.mrb[0].mxu0
        %4054 = vmatprep.mubr.bf16.mxu0 %v2199
        %4055 = vmatmul.mubr.bf16.gmra.mrb[0].mxu0 %v2198
        %v4056 = vpop.f32.mrb[0].mxu0
        %v4057 = vadd.f32 0.0, %v4056
        %v4058 = vpop.f32.mrb[0].mxu0
        %v4059 = vpop.f32.mrb[0].mxu0
        %v4060 = vadd.f32 0.0, %v4059
        %v4061 = vpop.f32.mrb[0].mxu0
        %4062 = vmatprep.mubr.bf16.mxu0 %v2202
        %4063 = vmatmul.mubr.bf16.gmra.mrb[0].mxu0 %v2201
        %v4064 = vpop.f32.mrb[0].mxu0
        %v4065 = vadd.f32 0.0, %v4064
        %v4066 = vpop.f32.mrb[0].mxu0
        %v4067 = vpop.f32.mrb[0].mxu0
        %v4068 = vadd.f32 0.0, %v4067
        %v4069 = vpop.f32.mrb[0].mxu0
        %4070 = vmatprep.mubr.bf16.mxu0 %v2205
        %4071 = vmatmul.mubr.bf16.gmra.mrb[0].mxu0 %v2204
        %v4072 = vpop.f32.mrb[0].mxu0
        %v4073 = vadd.f32 0.0, %v4072
        %v4074 = vpop.f32.mrb[0].mxu0
        %v4075 = vpop.f32.mrb[0].mxu0
        %v4076 = vadd.f32 0.0, %v4075
        %v4077 = vpop.f32.mrb[0].mxu0
        %4078 = vmatprep.mubr.bf16.mxu0 %v2208
        %4079 = vmatmul.mubr.bf16.gmra.mrb[0].mxu0 %v2207
        %v4080 = vpop.f32.mrb[0].mxu0
        %v4081 = vadd.f32 0.0, %v4080
        %v4082 = vpop.f32.mrb[0].mxu0
        %v4083 = vpop.f32.mrb[0].mxu0
        %v4084 = vadd.f32 0.0, %v4083
        %v4085 = vpop.f32.mrb[0].mxu0
        %4086 = vmatprep.mubr.bf16.mxu0 %v2211
        %4087 = vmatmul.mubr.bf16.gmra.mrb[0].mxu0 %v2210
        %v4088 = vpop.f32.mrb[0].mxu0
        %v4089 = vadd.f32 0.0, %v4088
        %v4090 = vpop.f32.mrb[0].mxu0
        %v4091 = vpop.f32.mrb[0].mxu0
        %v4092 = vadd.f32 0.0, %v4091
        %v4093 = vpop.f32.mrb[0].mxu0
        %4094 = vmatprep.mubr.bf16.mxu0 %v2214
        %4095 = vmatmul.mubr.bf16.gmra.mrb[0].mxu0 %v2213
        %v4096 = vpop.f32.mrb[0].mxu0
        %v4097 = vadd.f32 0.0, %v4096
        %v4098 = vpop.f32.mrb[0].mxu0
        %v4099 = vpop.f32.mrb[0].mxu0
        %v4100 = vadd.f32 0.0, %v4099
        %v4101 = vpop.f32.mrb[0].mxu0
        %4102 = vmatprep.mubr.bf16.mxu0 %v2217
        %4103 = vmatmul.mubr.bf16.gmra.mrb[0].mxu0 %v2216
        %v4104 = vpop.f32.mrb[0].mxu0
        %v4105 = vadd.f32 0.0, %v4104
        %v4106 = vpop.f32.mrb[0].mxu0
        %v4107 = vpop.f32.mrb[0].mxu0
        %v4108 = vadd.f32 0.0, %v4107
        %v4109 = vpop.f32.mrb[0].mxu0
        %4110 = vmatprep.mubr.bf16.mxu0 %v2220
        %4111 = vmatmul.mubr.bf16.gmra.mrb[0].mxu0 %v2219
        %v4112 = vpop.f32.mrb[0].mxu0
        %v4113 = vadd.f32 0.0, %v4112
        %v4114 = vpop.f32.mrb[0].mxu0
        %v4115 = vpop.f32.mrb[0].mxu0
        %v4116 = vadd.f32 0.0, %v4115
        %v4117 = vpop.f32.mrb[0].mxu0
        %4118 = vmatprep.mubr.bf16.mxu0 %v2223
        %4119 = vmatmul.mubr.bf16.gmra.mrb[0].mxu0 %v2222
        %v4120 = vpop.f32.mrb[0].mxu0
        %v4121 = vadd.f32 0.0, %v4120
        %v4122 = vpop.f32.mrb[0].mxu0
        %v4123 = vpop.f32.mrb[0].mxu0
        %v4124 = vadd.f32 0.0, %v4123
        %v4125 = vpop.f32.mrb[0].mxu0
        %4126 = vmatprep.mubr.bf16.mxu0 %v2226
        %4127 = vmatmul.mubr.bf16.gmra.mrb[0].mxu0 %v2225
        %v4128 = vpop.f32.mrb[0].mxu0
        %v4129 = vadd.f32 0.0, %v4128
        %v4130 = vpop.f32.mrb[0].mxu0
        %v4131 = vpop.f32.mrb[0].mxu0
        %v4132 = vadd.f32 0.0, %v4131
        %v4133 = vpop.f32.mrb[0].mxu0
        %4134 = vmatprep.mubr.bf16.mxu0 %v2229
        %4135 = vmatmul.mubr.bf16.gmra.mrb[0].mxu0 %v2228
        %v4136 = vpop.f32.mrb[0].mxu0
        %v4137 = vadd.f32 0.0, %v4136
        %v4138 = vpop.f32.mrb[0].mxu0
        %v4139 = vpop.f32.mrb[0].mxu0
        %v4140 = vadd.f32 0.0, %v4139
        %v4141 = vpop.f32.mrb[0].mxu0
        %4142 = vmatprep.mubr.bf16.mxu0 %v2232
        %4143 = vmatmul.mubr.bf16.gmra.mrb[0].mxu0 %v2231
        %v4144 = vpop.f32.mrb[0].mxu0
        %v4145 = vadd.f32 0.0, %v4144
        %v4146 = vpop.f32.mrb[0].mxu0
        %v4147 = vpop.f32.mrb[0].mxu0
        %v4148 = vadd.f32 0.0, %v4147
        %v4149 = vpop.f32.mrb[0].mxu0
        %4150 = vmatprep.mubr.bf16.mxu0 %v2235
        %4151 = vmatmul.mubr.bf16.gmra.mrb[0].mxu0 %v2234
        %v4152 = vpop.f32.mrb[0].mxu0
        %v4153 = vadd.f32 0.0, %v4152
        %v4154 = vpop.f32.mrb[0].mxu0
        %v4155 = vpop.f32.mrb[0].mxu0
        %v4156 = vadd.f32 0.0, %v4155
        %v4157 = vpop.f32.mrb[0].mxu0
        %4158 = vmatprep.mubr.bf16.mxu0 %v2238
        %4159 = vmatmul.mubr.bf16.gmra.mrb[0].mxu0 %v2237
        %v4160 = vpop.f32.mrb[0].mxu0
        %v4161 = vadd.f32 0.0, %v4160
        %v4162 = vpop.f32.mrb[0].mxu0
        %v4163 = vpop.f32.mrb[0].mxu0
        %v4164 = vadd.f32 0.0, %v4163
        %v4165 = vpop.f32.mrb[0].mxu0
        %4166 = vmatprep.mubr.bf16.mxu0 %v2241
        %4167 = vmatmul.mubr.bf16.gmra.mrb[0].mxu0 %v2240
        %v4168 = vpop.f32.mrb[0].mxu0
        %v4169 = vadd.f32 0.0, %v4168
        %v4170 = vpop.f32.mrb[0].mxu0
        %v4171 = vpop.f32.mrb[0].mxu0
        %v4172 = vadd.f32 0.0, %v4171
        %v4173 = vpop.f32.mrb[0].mxu0
        %4174 = vmatprep.mubr.bf16.mxu0 %v2244
        %4175 = vmatmul.mubr.bf16.gmra.mrb[0].mxu0 %v2243
        %v4176 = vpop.f32.mrb[0].mxu0
        %v4177 = vadd.f32 0.0, %v4176
        %v4178 = vpop.f32.mrb[0].mxu0
        %v4179 = vpop.f32.mrb[0].mxu0
        %v4180 = vadd.f32 0.0, %v4179
        %v4181 = vpop.f32.mrb[0].mxu0
        %4182 = vmatprep.mubr.bf16.mxu0 %v2247
        %4183 = vmatmul.mubr.bf16.gmra.mrb[0].mxu0 %v2246
        %v4184 = vpop.f32.mrb[0].mxu0
        %v4185 = vadd.f32 0.0, %v4184
        %v4186 = vpop.f32.mrb[0].mxu0
        %v4187 = vpop.f32.mrb[0].mxu0
        %v4188 = vadd.f32 0.0, %v4187
        %v4189 = vpop.f32.mrb[0].mxu0
        %4190 = vmatprep.mubr.bf16.mxu0 %v2250
        %4191 = vmatmul.mubr.bf16.gmra.mrb[0].mxu0 %v2249
        %v4192 = vpop.f32.mrb[0].mxu0
        %v4193 = vadd.f32 0.0, %v4192
        %v4194 = vpop.f32.mrb[0].mxu0
        %v4195 = vpop.f32.mrb[0].mxu0
        %v4196 = vadd.f32 0.0, %v4195
        %v4197 = vpop.f32.mrb[0].mxu0
        %4198 = vmatprep.mubr.bf16.mxu0 %v2253
        %4199 = vmatmul.mubr.bf16.gmra.mrb[0].mxu0 %v2252
        %v4200 = vpop.f32.mrb[0].mxu0
        %v4201 = vadd.f32 0.0, %v4200
        %v4202 = vpop.f32.mrb[0].mxu0
        %v4203 = vpop.f32.mrb[0].mxu0
        %v4204 = vadd.f32 0.0, %v4203
        %v4205 = vpop.f32.mrb[0].mxu0
        %4206 = vmatprep.mubr.bf16.mxu0 %v2256
        %4207 = vmatmul.mubr.bf16.gmra.mrb[0].mxu0 %v2255
        %v4208 = vpop.f32.mrb[0].mxu0
        %v4209 = vadd.f32 0.0, %v4208
        %v4210 = vpop.f32.mrb[0].mxu0
        %v4211 = vpop.f32.mrb[0].mxu0
        %v4212 = vadd.f32 0.0, %v4211
        %v4213 = vpop.f32.mrb[0].mxu0
        %4214 = vmatprep.mubr.bf16.mxu0 %v2259
        %4215 = vmatmul.mubr.bf16.gmra.mrb[0].mxu0 %v2258
        %v4216 = vpop.f32.mrb[0].mxu0
        %v4217 = vadd.f32 0.0, %v4216
        %v4218 = vpop.f32.mrb[0].mxu0
        %v4219 = vpop.f32.mrb[0].mxu0
        %v4220 = vadd.f32 0.0, %v4219
        %v4221 = vpop.f32.mrb[0].mxu0
        %4222 = vmatprep.mubr.bf16.mxu0 %v2262
        %4223 = vmatmul.mubr.bf16.gmra.mrb[0].mxu0 %v2261
        %v4224 = vpop.f32.mrb[0].mxu0
        %v4225 = vadd.f32 0.0, %v4224
        %v4226 = vpop.f32.mrb[0].mxu0
        %v4227 = vpop.f32.mrb[0].mxu0
        %v4228 = vadd.f32 0.0, %v4227
        %v4229 = vpop.f32.mrb[0].mxu0
        %4230 = vmatprep.mubr.bf16.mxu0 %v2265
        %4231 = vmatmul.mubr.bf16.gmra.mrb[0].mxu0 %v2264
        %v4232 = vpop.f32.mrb[0].mxu0
        %v4233 = vadd.f32 0.0, %v4232
        %v4234 = vpop.f32.mrb[0].mxu0
        %v4235 = vpop.f32.mrb[0].mxu0
        %v4236 = vadd.f32 0.0, %v4235
        %v4237 = vpop.f32.mrb[0].mxu0
        %4238 = vmatprep.mubr.bf16.mxu0 %v2268
        %4239 = vmatmul.mubr.bf16.gmra.mrb[0].mxu0 %v2267
        %v4240 = vpop.f32.mrb[0].mxu0
        %v4241 = vadd.f32 0.0, %v4240
        %v4242 = vpop.f32.mrb[0].mxu0
        %v4243 = vpop.f32.mrb[0].mxu0
        %v4244 = vadd.f32 0.0, %v4243
        %v4245 = vpop.f32.mrb[0].mxu0
        %4246 = vmatprep.mubr.bf16.mxu0 %v2271
        %4247 = vmatmul.mubr.bf16.gmra.mrb[0].mxu0 %v2270
        %v4248 = vpop.f32.mrb[0].mxu0
        %v4249 = vadd.f32 0.0, %v4248
        %v4250 = vpop.f32.mrb[0].mxu0
        %v4251 = vpop.f32.mrb[0].mxu0
        %v4252 = vadd.f32 0.0, %v4251
        %v4253 = vpop.f32.mrb[0].mxu0
        %4254 = vmatprep.mubr.bf16.mxu0 %v2274
        %4255 = vmatmul.mubr.bf16.gmra.mrb[0].mxu0 %v2273
        %v4256 = vpop.f32.mrb[0].mxu0
        %v4257 = vadd.f32 0.0, %v4256
        %v4258 = vpop.f32.mrb[0].mxu0
        %v4259 = vpop.f32.mrb[0].mxu0
        %v4260 = vadd.f32 0.0, %v4259
        %v4261 = vpop.f32.mrb[0].mxu0
        %4262 = vmatprep.mubr.bf16.mxu0 %v2277
        %4263 = vmatmul.mubr.bf16.gmra.mrb[0].mxu0 %v2276
        %v4264 = vpop.f32.mrb[0].mxu0
        %v4265 = vadd.f32 0.0, %v4264
        %v4266 = vpop.f32.mrb[0].mxu0
        %v4267 = vpop.f32.mrb[0].mxu0
        %v4268 = vadd.f32 0.0, %v4267
        %v4269 = vpop.f32.mrb[0].mxu0
        %4270 = vmatprep.mubr.bf16.mxu0 %v2280
        %4271 = vmatmul.mubr.bf16.gmra.mrb[0].mxu0 %v2279
        %v4272 = vpop.f32.mrb[0].mxu0
        %v4273 = vadd.f32 0.0, %v4272
        %v4274 = vpop.f32.mrb[0].mxu0
        %v4275 = vpop.f32.mrb[0].mxu0
        %v4276 = vadd.f32 0.0, %v4275
        %v4277 = vpop.f32.mrb[0].mxu0
        %4278 = vmatprep.mubr.bf16.mxu0 %v2283
        %4279 = vmatmul.mubr.bf16.gmra.mrb[0].mxu0 %v2282
        %v4280 = vpop.f32.mrb[0].mxu0
        %v4281 = vadd.f32 0.0, %v4280
        %v4282 = vpop.f32.mrb[0].mxu0
        %v4283 = vpop.f32.mrb[0].mxu0
        %v4284 = vadd.f32 0.0, %v4283
        %v4285 = vpop.f32.mrb[0].mxu0
        %4286 = vmatprep.mubr.bf16.mxu0 %v2286
        %4287 = vmatmul.mubr.bf16.gmra.mrb[0].mxu0 %v2285
        %v4288 = vpop.f32.mrb[0].mxu0
        %v4289 = vadd.f32 0.0, %v4288
        %v4290 = vpop.f32.mrb[0].mxu0
        %v4291 = vpop.f32.mrb[0].mxu0
        %v4292 = vadd.f32 0.0, %v4291
        %v4293 = vpop.f32.mrb[0].mxu0
        %4294 = vmatprep.mubr.bf16.mxu0 %v2289
        %4295 = vmatmul.mubr.bf16.gmra.mrb[0].mxu0 %v2288
        %v4296 = vpop.f32.mrb[0].mxu0
        %v4297 = vadd.f32 0.0, %v4296
        %v4298 = vpop.f32.mrb[0].mxu0
        %v4299 = vpop.f32.mrb[0].mxu0
        %v4300 = vadd.f32 0.0, %v4299
        %v4301 = vpop.f32.mrb[0].mxu0
        %4302 = vmatprep.mubr.bf16.mxu0 %v2292
        %4303 = vmatmul.mubr.bf16.gmra.mrb[0].mxu0 %v2291
        %v4304 = vpop.f32.mrb[0].mxu0
        %v4305 = vadd.f32 0.0, %v4304
        %v4306 = vpop.f32.mrb[0].mxu0
        %v4307 = vpop.f32.mrb[0].mxu0
        %v4308 = vadd.f32 0.0, %v4307
        %v4309 = vpop.f32.mrb[0].mxu0
        %4310 = vmatprep.mubr.bf16.mxu0 %v2295
        %4311 = vmatmul.mubr.bf16.gmra.mrb[0].mxu0 %v2294
        %v4312 = vpop.f32.mrb[0].mxu0
        %v4313 = vadd.f32 0.0, %v4312
        %v4314 = vpop.f32.mrb[0].mxu0
        %v4315 = vpop.f32.mrb[0].mxu0
        %v4316 = vadd.f32 0.0, %v4315
        %v4317 = vpop.f32.mrb[0].mxu0
        %4318 = vmatprep.mubr.bf16.mxu0 %v2298
        %4319 = vmatmul.mubr.bf16.gmra.mrb[0].mxu0 %v2297
        %v4320 = vpop.f32.mrb[0].mxu0
        %v4321 = vadd.f32 0.0, %v4320
        %v4322 = vpop.f32.mrb[0].mxu0
        %v4323 = vpop.f32.mrb[0].mxu0
        %v4324 = vadd.f32 0.0, %v4323
        %v4325 = vpop.f32.mrb[0].mxu0
        %4326 = vmatprep.mubr.bf16.mxu0 %v2301
        %4327 = vmatmul.mubr.bf16.gmra.mrb[0].mxu0 %v2300
        %v4328 = vpop.f32.mrb[0].mxu0
        %v4329 = vadd.f32 0.0, %v4328
        %v4330 = vpop.f32.mrb[0].mxu0
        %v4331 = vpop.f32.mrb[0].mxu0
        %v4332 = vadd.f32 0.0, %v4331
        %v4333 = vpop.f32.mrb[0].mxu0
        %4334 = vmatprep.mubr.bf16.mxu0 %v2304
        %4335 = vmatmul.mubr.bf16.gmra.mrb[0].mxu0 %v2303
        %v4336 = vpop.f32.mrb[0].mxu0
        %v4337 = vadd.f32 0.0, %v4336
        %v4338 = vpop.f32.mrb[0].mxu0
        %v4339 = vpop.f32.mrb[0].mxu0
        %v4340 = vadd.f32 0.0, %v4339
        %v4341 = vpop.f32.mrb[0].mxu0
        %4342 = vmatprep.mubr.bf16.mxu0 %v2307
        %4343 = vmatmul.mubr.bf16.gmra.mrb[0].mxu0 %v2306
        %v4344 = vpop.f32.mrb[0].mxu0
        %v4345 = vadd.f32 0.0, %v4344
        %v4346 = vpop.f32.mrb[0].mxu0
        %v4347 = vpop.f32.mrb[0].mxu0
        %v4348 = vadd.f32 0.0, %v4347
        %v4349 = vpop.f32.mrb[0].mxu0
        %4350 = vmatprep.mubr.bf16.mxu0 %v2310
        %4351 = vmatmul.mubr.bf16.gmra.mrb[0].mxu0 %v2309
        %v4352 = vpop.f32.mrb[0].mxu0
        %v4353 = vadd.f32 0.0, %v4352
        %v4354 = vpop.f32.mrb[0].mxu0
        %v4355 = vpop.f32.mrb[0].mxu0
        %v4356 = vadd.f32 0.0, %v4355
        %v4357 = vpop.f32.mrb[0].mxu0
        %4358 = vmatprep.mubr.bf16.mxu0 %v2313
        %4359 = vmatmul.mubr.bf16.gmra.mrb[0].mxu0 %v2312
        %v4360 = vpop.f32.mrb[0].mxu0
        %v4361 = vadd.f32 0.0, %v4360
        %v4362 = vpop.f32.mrb[0].mxu0
        %v4363 = vpop.f32.mrb[0].mxu0
        %v4364 = vadd.f32 0.0, %v4363
        %v4365 = vpop.f32.mrb[0].mxu0
        %4366 = vmatprep.mubr.bf16.mxu0 %v2316
        %4367 = vmatmul.mubr.bf16.gmra.mrb[0].mxu0 %v2315
        %v4368 = vpop.f32.mrb[0].mxu0
        %v4369 = vadd.f32 0.0, %v4368
        %v4370 = vpop.f32.mrb[0].mxu0
        %v4371 = vpop.f32.mrb[0].mxu0
        %v4372 = vadd.f32 0.0, %v4371
        %v4373 = vpop.f32.mrb[0].mxu0
        %4374 = vmatprep.mubr.bf16.mxu0 %v2319
        %4375 = vmatmul.mubr.bf16.gmra.mrb[0].mxu0 %v2318
        %v4376 = vpop.f32.mrb[0].mxu0
        %v4377 = vadd.f32 0.0, %v4376
        %v4378 = vpop.f32.mrb[0].mxu0
        %v4379 = vpop.f32.mrb[0].mxu0
        %v4380 = vadd.f32 0.0, %v4379
        %v4381 = vpop.f32.mrb[0].mxu0
        %4382 = vmatprep.mubr.bf16.mxu0 %v2322
        %4383 = vmatmul.mubr.bf16.gmra.mrb[0].mxu0 %v2321
        %v4384 = vpop.f32.mrb[0].mxu0
        %v4385 = vadd.f32 0.0, %v4384
        %v4386 = vpop.f32.mrb[0].mxu0
        %v4387 = vpop.f32.mrb[0].mxu0
        %v4388 = vadd.f32 0.0, %v4387
        %v4389 = vpop.f32.mrb[0].mxu0
        %4390 = vmatprep.mubr.bf16.mxu0 %v2325
        %4391 = vmatmul.mubr.bf16.gmra.mrb[0].mxu0 %v2324
        %v4392 = vpop.f32.mrb[0].mxu0
        %v4393 = vadd.f32 0.0, %v4392
        %v4394 = vpop.f32.mrb[0].mxu0
        %v4395 = vpop.f32.mrb[0].mxu0
        %v4396 = vadd.f32 0.0, %v4395
        %v4397 = vpop.f32.mrb[0].mxu0
        %4398 = vmatprep.mubr.bf16.mxu0 %v2328
        %4399 = vmatmul.mubr.bf16.gmra.mrb[0].mxu0 %v2327
        %v4400 = vpop.f32.mrb[0].mxu0
        %v4401 = vadd.f32 0.0, %v4400
        %v4402 = vpop.f32.mrb[0].mxu0
        %v4403 = vpop.f32.mrb[0].mxu0
        %v4404 = vadd.f32 0.0, %v4403
        %v4405 = vpop.f32.mrb[0].mxu0
        %4406 = vdwg.mxu0
        %4407 = vmatprep.subr.bf16.mxu0 0
        %4408 = vmatpush1.bf16.msra.mxu0 %v2716
        %4409 = vmatprep.subr.bf16.mxu0 0
        %4410 = vmatpush1.bf16.msra.mxu0 %v2719
        %4411 = vmatprep.subr.bf16.mxu0 0
        %4412 = vmatpush1.bf16.msra.mxu0 %v2722
        %4413 = vmatprep.subr.bf16.mxu0 0
        %4414 = vmatpush1.bf16.msra.mxu0 %v2725
        %4415 = vmatprep.subr.bf16.mxu0 0
        %4416 = vmatpush1.bf16.msra.mxu0 %v2728
        %4417 = vmatprep.subr.bf16.mxu0 0
        %4418 = vmatpush1.bf16.msra.mxu0 %v2731
        %4419 = vmatprep.subr.bf16.mxu0 0
        %4420 = vmatpush1.bf16.msra.mxu0 %v2734
        %4421 = vmatprep.subr.bf16.mxu0 0
        %4422 = vmatpush1.bf16.msra.mxu0 %v2737
        %4423 = vmatprep.subr.bf16.mxu0 0
        %4424 = vmatpush1.bf16.msra.mxu0 0
        %4425 = vmatprep.subr.bf16.mxu0 0
        %4426 = vmatpush1.bf16.msra.mxu0 0
        %4427 = vmatprep.subr.bf16.mxu0 0
        %4428 = vmatpush1.bf16.msra.mxu0 0
        %4429 = vmatprep.subr.bf16.mxu0 0
        %4430 = vmatpush1.bf16.msra.mxu0 0
        %4431 = vmatprep.subr.bf16.mxu0 0
        %4432 = vmatpush1.bf16.msra.mxu0 0
        %4433 = vmatprep.subr.bf16.mxu0 0
        %4434 = vmatpush1.bf16.msra.mxu0 0
        %4435 = vmatprep.subr.bf16.mxu0 0
        %4436 = vmatpush1.bf16.msra.mxu0 0
        %4437 = vmatprep.subr.bf16.mxu0 0
        %4438 = vmatpush1.bf16.msra.mxu0 0
        %4439 = vmatprep.mubr.bf16.mxu0 0
        %4440 = vmatmul.mubr.bf16.gmra.mrb[0].mxu0 %v2164
        %v4441 = vpop.f32.mrb[0].mxu0
        %v4442 = vpop.f32.mrb[0].mxu0
        %v4443 = vpop.f32.mrb[0].mxu0
        %v4444 = vpop.f32.mrb[0].mxu0
        %4445 = vmatprep.mubr.bf16.mxu0 0
        %4446 = vmatmul.mubr.bf16.gmra.mrb[0].mxu0 %v2167
        %v4447 = vpop.f32.mrb[0].mxu0
        %v4448 = vpop.f32.mrb[0].mxu0
        %v4449 = vpop.f32.mrb[0].mxu0
        %v4450 = vpop.f32.mrb[0].mxu0
        %4451 = vmatprep.mubr.bf16.mxu0 0
        %4452 = vmatmul.mubr.bf16.gmra.mrb[0].mxu0 %v2170
        %v4453 = vpop.f32.mrb[0].mxu0
        %v4454 = vpop.f32.mrb[0].mxu0
        %v4455 = vpop.f32.mrb[0].mxu0
        %v4456 = vpop.f32.mrb[0].mxu0
        %4457 = vmatprep.mubr.bf16.mxu0 0
        %4458 = vmatmul.mubr.bf16.gmra.mrb[0].mxu0 %v2173
        %v4459 = vpop.f32.mrb[0].mxu0
        %v4460 = vpop.f32.mrb[0].mxu0
        %v4461 = vpop.f32.mrb[0].mxu0
        %v4462 = vpop.f32.mrb[0].mxu0
        %4463 = vmatprep.mubr.bf16.mxu0 0
        %4464 = vmatmul.mubr.bf16.gmra.mrb[0].mxu0 %v2176
        %v4465 = vpop.f32.mrb[0].mxu0
        %v4466 = vpop.f32.mrb[0].mxu0
        %v4467 = vpop.f32.mrb[0].mxu0
        %v4468 = vpop.f32.mrb[0].mxu0
        %4469 = vmatprep.mubr.bf16.mxu0 0
        %4470 = vmatmul.mubr.bf16.gmra.mrb[0].mxu0 %v2179
        %v4471 = vpop.f32.mrb[0].mxu0
        %v4472 = vpop.f32.mrb[0].mxu0
        %v4473 = vpop.f32.mrb[0].mxu0
        %v4474 = vpop.f32.mrb[0].mxu0
        %4475 = vmatprep.mubr.bf16.mxu0 0
        %4476 = vmatmul.mubr.bf16.gmra.mrb[0].mxu0 %v2182
        %v4477 = vpop.f32.mrb[0].mxu0
        %v4478 = vpop.f32.mrb[0].mxu0
        %v4479 = vpop.f32.mrb[0].mxu0
        %v4480 = vpop.f32.mrb[0].mxu0
        %4481 = vmatprep.mubr.bf16.mxu0 0
        %4482 = vmatmul.mubr.bf16.gmra.mrb[0].mxu0 %v2185
        %v4483 = vpop.f32.mrb[0].mxu0
        %v4484 = vadd.f32 %v4017, %v4483
        %v4485 = vpop.f32.mrb[0].mxu0
        %v4486 = vpop.f32.mrb[0].mxu0
        %v4487 = vadd.f32 %v4020, %v4486
        %v4488 = vpop.f32.mrb[0].mxu0
        %4489 = vmatprep.mubr.bf16.mxu0 0
        %4490 = vmatmul.mubr.bf16.gmra.mrb[0].mxu0 %v2188
        %v4491 = vpop.f32.mrb[0].mxu0
        %v4492 = vadd.f32 %v4025, %v4491
        %v4493 = vpop.f32.mrb[0].mxu0
        %v4494 = vpop.f32.mrb[0].mxu0
        %v4495 = vadd.f32 %v4028, %v4494
        %v4496 = vpop.f32.mrb[0].mxu0
        %4497 = vmatprep.mubr.bf16.mxu0 0
        %4498 = vmatmul.mubr.bf16.gmra.mrb[0].mxu0 %v2191
        %v4499 = vpop.f32.mrb[0].mxu0
        %v4500 = vadd.f32 %v4033, %v4499
        %v4501 = vpop.f32.mrb[0].mxu0
        %v4502 = vpop.f32.mrb[0].mxu0
        %v4503 = vadd.f32 %v4036, %v4502
        %v4504 = vpop.f32.mrb[0].mxu0
        %4505 = vmatprep.mubr.bf16.mxu0 0
        %4506 = vmatmul.mubr.bf16.gmra.mrb[0].mxu0 %v2194
        %v4507 = vpop.f32.mrb[0].mxu0
        %v4508 = vadd.f32 %v4041, %v4507
        %v4509 = vpop.f32.mrb[0].mxu0
        %v4510 = vpop.f32.mrb[0].mxu0
        %v4511 = vadd.f32 %v4044, %v4510
        %v4512 = vpop.f32.mrb[0].mxu0
        %4513 = vmatprep.mubr.bf16.mxu0 0
        %4514 = vmatmul.mubr.bf16.gmra.mrb[0].mxu0 %v2197
        %v4515 = vpop.f32.mrb[0].mxu0
        %v4516 = vadd.f32 %v4049, %v4515
        %v4517 = vpop.f32.mrb[0].mxu0
        %v4518 = vpop.f32.mrb[0].mxu0
        %v4519 = vadd.f32 %v4052, %v4518
        %v4520 = vpop.f32.mrb[0].mxu0
        %4521 = vmatprep.mubr.bf16.mxu0 0
        %4522 = vmatmul.mubr.bf16.gmra.mrb[0].mxu0 %v2200
        %v4523 = vpop.f32.mrb[0].mxu0
        %v4524 = vadd.f32 %v4057, %v4523
        %v4525 = vpop.f32.mrb[0].mxu0
        %v4526 = vpop.f32.mrb[0].mxu0
        %v4527 = vadd.f32 %v4060, %v4526
        %v4528 = vpop.f32.mrb[0].mxu0
        %4529 = vmatprep.mubr.bf16.mxu0 0
        %4530 = vmatmul.mubr.bf16.gmra.mrb[0].mxu0 %v2203
        %v4531 = vpop.f32.mrb[0].mxu0
        %v4532 = vadd.f32 %v4065, %v4531
        %v4533 = vpop.f32.mrb[0].mxu0
        %v4534 = vpop.f32.mrb[0].mxu0
        %v4535 = vadd.f32 %v4068, %v4534
        %v4536 = vpop.f32.mrb[0].mxu0
        %4537 = vmatprep.mubr.bf16.mxu0 0
        %4538 = vmatmul.mubr.bf16.gmra.mrb[0].mxu0 %v2206
        %v4539 = vpop.f32.mrb[0].mxu0
        %v4540 = vadd.f32 %v4073, %v4539
        %v4541 = vpop.f32.mrb[0].mxu0
        %v4542 = vpop.f32.mrb[0].mxu0
        %v4543 = vadd.f32 %v4076, %v4542
        %v4544 = vpop.f32.mrb[0].mxu0
        %4545 = vmatprep.mubr.bf16.mxu0 0
        %4546 = vmatmul.mubr.bf16.gmra.mrb[0].mxu0 %v2209
        %v4547 = vpop.f32.mrb[0].mxu0
        %v4548 = vadd.f32 %v4081, %v4547
        %v4549 = vpop.f32.mrb[0].mxu0
        %v4550 = vpop.f32.mrb[0].mxu0
        %v4551 = vadd.f32 %v4084, %v4550
        %v4552 = vpop.f32.mrb[0].mxu0
        %4553 = vmatprep.mubr.bf16.mxu0 0
        %4554 = vmatmul.mubr.bf16.gmra.mrb[0].mxu0 %v2212
        %v4555 = vpop.f32.mrb[0].mxu0
        %v4556 = vadd.f32 %v4089, %v4555
        %v4557 = vpop.f32.mrb[0].mxu0
        %v4558 = vpop.f32.mrb[0].mxu0
        %v4559 = vadd.f32 %v4092, %v4558
        %v4560 = vpop.f32.mrb[0].mxu0
        %4561 = vmatprep.mubr.bf16.mxu0 0
        %4562 = vmatmul.mubr.bf16.gmra.mrb[0].mxu0 %v2215
        %v4563 = vpop.f32.mrb[0].mxu0
        %v4564 = vadd.f32 %v4097, %v4563
        %v4565 = vpop.f32.mrb[0].mxu0
        %v4566 = vpop.f32.mrb[0].mxu0
        %v4567 = vadd.f32 %v4100, %v4566
        %v4568 = vpop.f32.mrb[0].mxu0
        %4569 = vmatprep.mubr.bf16.mxu0 0
        %4570 = vmatmul.mubr.bf16.gmra.mrb[0].mxu0 %v2218
        %v4571 = vpop.f32.mrb[0].mxu0
        %v4572 = vadd.f32 %v4105, %v4571
        %v4573 = vpop.f32.mrb[0].mxu0
        %v4574 = vpop.f32.mrb[0].mxu0
        %v4575 = vadd.f32 %v4108, %v4574
        %v4576 = vpop.f32.mrb[0].mxu0
        %4577 = vmatprep.mubr.bf16.mxu0 0
        %4578 = vmatmul.mubr.bf16.gmra.mrb[0].mxu0 %v2221
        %v4579 = vpop.f32.mrb[0].mxu0
        %v4580 = vadd.f32 %v4113, %v4579
        %v4581 = vpop.f32.mrb[0].mxu0
        %v4582 = vpop.f32.mrb[0].mxu0
        %v4583 = vadd.f32 %v4116, %v4582
        %v4584 = vpop.f32.mrb[0].mxu0
        %4585 = vmatprep.mubr.bf16.mxu0 0
        %4586 = vmatmul.mubr.bf16.gmra.mrb[0].mxu0 %v2224
        %v4587 = vpop.f32.mrb[0].mxu0
        %v4588 = vadd.f32 %v4121, %v4587
        %v4589 = vpop.f32.mrb[0].mxu0
        %v4590 = vpop.f32.mrb[0].mxu0
        %v4591 = vadd.f32 %v4124, %v4590
        %v4592 = vpop.f32.mrb[0].mxu0
        %4593 = vmatprep.mubr.bf16.mxu0 0
        %4594 = vmatmul.mubr.bf16.gmra.mrb[0].mxu0 %v2227
        %v4595 = vpop.f32.mrb[0].mxu0
        %v4596 = vadd.f32 %v4129, %v4595
        %v4597 = vpop.f32.mrb[0].mxu0
        %v4598 = vpop.f32.mrb[0].mxu0
        %v4599 = vadd.f32 %v4132, %v4598
        %v4600 = vpop.f32.mrb[0].mxu0
        %4601 = vmatprep.mubr.bf16.mxu0 0
        %4602 = vmatmul.mubr.bf16.gmra.mrb[0].mxu0 %v2230
        %v4603 = vpop.f32.mrb[0].mxu0
        %v4604 = vadd.f32 %v4137, %v4603
        %v4605 = vpop.f32.mrb[0].mxu0
        %v4606 = vpop.f32.mrb[0].mxu0
        %v4607 = vadd.f32 %v4140, %v4606
        %v4608 = vpop.f32.mrb[0].mxu0
        %4609 = vmatprep.mubr.bf16.mxu0 0
        %4610 = vmatmul.mubr.bf16.gmra.mrb[0].mxu0 %v2233
        %v4611 = vpop.f32.mrb[0].mxu0
        %v4612 = vadd.f32 %v4145, %v4611
        %v4613 = vpop.f32.mrb[0].mxu0
        %v4614 = vpop.f32.mrb[0].mxu0
        %v4615 = vadd.f32 %v4148, %v4614
        %v4616 = vpop.f32.mrb[0].mxu0
        %4617 = vmatprep.mubr.bf16.mxu0 0
        %4618 = vmatmul.mubr.bf16.gmra.mrb[0].mxu0 %v2236
        %v4619 = vpop.f32.mrb[0].mxu0
        %v4620 = vadd.f32 %v4153, %v4619
        %v4621 = vpop.f32.mrb[0].mxu0
        %v4622 = vpop.f32.mrb[0].mxu0
        %v4623 = vadd.f32 %v4156, %v4622
        %v4624 = vpop.f32.mrb[0].mxu0
        %4625 = vmatprep.mubr.bf16.mxu0 0
        %4626 = vmatmul.mubr.bf16.gmra.mrb[0].mxu0 %v2239
        %v4627 = vpop.f32.mrb[0].mxu0
        %v4628 = vadd.f32 %v4161, %v4627
        %v4629 = vpop.f32.mrb[0].mxu0
        %v4630 = vpop.f32.mrb[0].mxu0
        %v4631 = vadd.f32 %v4164, %v4630
        %v4632 = vpop.f32.mrb[0].mxu0
        %4633 = vmatprep.mubr.bf16.mxu0 0
        %4634 = vmatmul.mubr.bf16.gmra.mrb[0].mxu0 %v2242
        %v4635 = vpop.f32.mrb[0].mxu0
        %v4636 = vadd.f32 %v4169, %v4635
        %v4637 = vpop.f32.mrb[0].mxu0
        %v4638 = vpop.f32.mrb[0].mxu0
        %v4639 = vadd.f32 %v4172, %v4638
        %v4640 = vpop.f32.mrb[0].mxu0
        %4641 = vmatprep.mubr.bf16.mxu0 0
        %4642 = vmatmul.mubr.bf16.gmra.mrb[0].mxu0 %v2245
        %v4643 = vpop.f32.mrb[0].mxu0
        %v4644 = vadd.f32 %v4177, %v4643
        %v4645 = vpop.f32.mrb[0].mxu0
        %v4646 = vpop.f32.mrb[0].mxu0
        %v4647 = vadd.f32 %v4180, %v4646
        %v4648 = vpop.f32.mrb[0].mxu0
        %4649 = vmatprep.mubr.bf16.mxu0 0
        %4650 = vmatmul.mubr.bf16.gmra.mrb[0].mxu0 %v2248
        %v4651 = vpop.f32.mrb[0].mxu0
        %v4652 = vadd.f32 %v4185, %v4651
        %v4653 = vpop.f32.mrb[0].mxu0
        %v4654 = vpop.f32.mrb[0].mxu0
        %v4655 = vadd.f32 %v4188, %v4654
        %v4656 = vpop.f32.mrb[0].mxu0
        %4657 = vmatprep.mubr.bf16.mxu0 0
        %4658 = vmatmul.mubr.bf16.gmra.mrb[0].mxu0 %v2251
        %v4659 = vpop.f32.mrb[0].mxu0
        %v4660 = vadd.f32 %v4193, %v4659
        %v4661 = vpop.f32.mrb[0].mxu0
        %v4662 = vpop.f32.mrb[0].mxu0
        %v4663 = vadd.f32 %v4196, %v4662
        %v4664 = vpop.f32.mrb[0].mxu0
        %4665 = vmatprep.mubr.bf16.mxu0 0
        %4666 = vmatmul.mubr.bf16.gmra.mrb[0].mxu0 %v2254
        %v4667 = vpop.f32.mrb[0].mxu0
        %v4668 = vadd.f32 %v4201, %v4667
        %v4669 = vpop.f32.mrb[0].mxu0
        %v4670 = vpop.f32.mrb[0].mxu0
        %v4671 = vadd.f32 %v4204, %v4670
        %v4672 = vpop.f32.mrb[0].mxu0
        %4673 = vmatprep.mubr.bf16.mxu0 0
        %4674 = vmatmul.mubr.bf16.gmra.mrb[0].mxu0 %v2257
        %v4675 = vpop.f32.mrb[0].mxu0
        %v4676 = vadd.f32 %v4209, %v4675
        %v4677 = vpop.f32.mrb[0].mxu0
        %v4678 = vpop.f32.mrb[0].mxu0
        %v4679 = vadd.f32 %v4212, %v4678
        %v4680 = vpop.f32.mrb[0].mxu0
        %4681 = vmatprep.mubr.bf16.mxu0 0
        %4682 = vmatmul.mubr.bf16.gmra.mrb[0].mxu0 %v2260
        %v4683 = vpop.f32.mrb[0].mxu0
        %v4684 = vadd.f32 %v4217, %v4683
        %v4685 = vpop.f32.mrb[0].mxu0
        %v4686 = vpop.f32.mrb[0].mxu0
        %v4687 = vadd.f32 %v4220, %v4686
        %v4688 = vpop.f32.mrb[0].mxu0
        %4689 = vmatprep.mubr.bf16.mxu0 0
        %4690 = vmatmul.mubr.bf16.gmra.mrb[0].mxu0 %v2263
        %v4691 = vpop.f32.mrb[0].mxu0
        %v4692 = vadd.f32 %v4225, %v4691
        %v4693 = vpop.f32.mrb[0].mxu0
        %v4694 = vpop.f32.mrb[0].mxu0
        %v4695 = vadd.f32 %v4228, %v4694
        %v4696 = vpop.f32.mrb[0].mxu0
        %4697 = vmatprep.mubr.bf16.mxu0 0
        %4698 = vmatmul.mubr.bf16.gmra.mrb[0].mxu0 %v2266
        %v4699 = vpop.f32.mrb[0].mxu0
        %v4700 = vadd.f32 %v4233, %v4699
        %v4701 = vpop.f32.mrb[0].mxu0
        %v4702 = vpop.f32.mrb[0].mxu0
        %v4703 = vadd.f32 %v4236, %v4702
        %v4704 = vpop.f32.mrb[0].mxu0
        %4705 = vmatprep.mubr.bf16.mxu0 0
        %4706 = vmatmul.mubr.bf16.gmra.mrb[0].mxu0 %v2269
        %v4707 = vpop.f32.mrb[0].mxu0
        %v4708 = vadd.f32 %v4241, %v4707
        %v4709 = vpop.f32.mrb[0].mxu0
        %v4710 = vpop.f32.mrb[0].mxu0
        %v4711 = vadd.f32 %v4244, %v4710
        %v4712 = vpop.f32.mrb[0].mxu0
        %4713 = vmatprep.mubr.bf16.mxu0 0
        %4714 = vmatmul.mubr.bf16.gmra.mrb[0].mxu0 %v2272
        %v4715 = vpop.f32.mrb[0].mxu0
        %v4716 = vadd.f32 %v4249, %v4715
        %v4717 = vpop.f32.mrb[0].mxu0
        %v4718 = vpop.f32.mrb[0].mxu0
        %v4719 = vadd.f32 %v4252, %v4718
        %v4720 = vpop.f32.mrb[0].mxu0
        %4721 = vmatprep.mubr.bf16.mxu0 0
        %4722 = vmatmul.mubr.bf16.gmra.mrb[0].mxu0 %v2275
        %v4723 = vpop.f32.mrb[0].mxu0
        %v4724 = vadd.f32 %v4257, %v4723
        %v4725 = vpop.f32.mrb[0].mxu0
        %v4726 = vpop.f32.mrb[0].mxu0
        %v4727 = vadd.f32 %v4260, %v4726
        %v4728 = vpop.f32.mrb[0].mxu0
        %4729 = vmatprep.mubr.bf16.mxu0 0
        %4730 = vmatmul.mubr.bf16.gmra.mrb[0].mxu0 %v2278
        %v4731 = vpop.f32.mrb[0].mxu0
        %v4732 = vadd.f32 %v4265, %v4731
        %v4733 = vpop.f32.mrb[0].mxu0
        %v4734 = vpop.f32.mrb[0].mxu0
        %v4735 = vadd.f32 %v4268, %v4734
        %v4736 = vpop.f32.mrb[0].mxu0
        %4737 = vmatprep.mubr.bf16.mxu0 0
        %4738 = vmatmul.mubr.bf16.gmra.mrb[0].mxu0 %v2281
        %v4739 = vpop.f32.mrb[0].mxu0
        %v4740 = vadd.f32 %v4273, %v4739
        %v4741 = vpop.f32.mrb[0].mxu0
        %v4742 = vpop.f32.mrb[0].mxu0
        %v4743 = vadd.f32 %v4276, %v4742
        %v4744 = vpop.f32.mrb[0].mxu0
        %4745 = vmatprep.mubr.bf16.mxu0 0
        %4746 = vmatmul.mubr.bf16.gmra.mrb[0].mxu0 %v2284
        %v4747 = vpop.f32.mrb[0].mxu0
        %v4748 = vadd.f32 %v4281, %v4747
        %v4749 = vpop.f32.mrb[0].mxu0
        %v4750 = vpop.f32.mrb[0].mxu0
        %v4751 = vadd.f32 %v4284, %v4750
        %v4752 = vpop.f32.mrb[0].mxu0
        %4753 = vmatprep.mubr.bf16.mxu0 0
        %4754 = vmatmul.mubr.bf16.gmra.mrb[0].mxu0 %v2287
        %v4755 = vpop.f32.mrb[0].mxu0
        %v4756 = vadd.f32 %v4289, %v4755
        %v4757 = vpop.f32.mrb[0].mxu0
        %v4758 = vpop.f32.mrb[0].mxu0
        %v4759 = vadd.f32 %v4292, %v4758
        %v4760 = vpop.f32.mrb[0].mxu0
        %4761 = vmatprep.mubr.bf16.mxu0 0
        %4762 = vmatmul.mubr.bf16.gmra.mrb[0].mxu0 %v2290
        %v4763 = vpop.f32.mrb[0].mxu0
        %v4764 = vadd.f32 %v4297, %v4763
        %v4765 = vpop.f32.mrb[0].mxu0
        %v4766 = vpop.f32.mrb[0].mxu0
        %v4767 = vadd.f32 %v4300, %v4766
        %v4768 = vpop.f32.mrb[0].mxu0
        %4769 = vmatprep.mubr.bf16.mxu0 0
        %4770 = vmatmul.mubr.bf16.gmra.mrb[0].mxu0 %v2293
        %v4771 = vpop.f32.mrb[0].mxu0
        %v4772 = vadd.f32 %v4305, %v4771
        %v4773 = vpop.f32.mrb[0].mxu0
        %v4774 = vpop.f32.mrb[0].mxu0
        %v4775 = vadd.f32 %v4308, %v4774
        %v4776 = vpop.f32.mrb[0].mxu0
        %4777 = vmatprep.mubr.bf16.mxu0 0
        %4778 = vmatmul.mubr.bf16.gmra.mrb[0].mxu0 %v2296
        %v4779 = vpop.f32.mrb[0].mxu0
        %v4780 = vadd.f32 %v4313, %v4779
        %v4781 = vpop.f32.mrb[0].mxu0
        %v4782 = vpop.f32.mrb[0].mxu0
        %v4783 = vadd.f32 %v4316, %v4782
        %v4784 = vpop.f32.mrb[0].mxu0
        %4785 = vmatprep.mubr.bf16.mxu0 0
        %4786 = vmatmul.mubr.bf16.gmra.mrb[0].mxu0 %v2299
        %v4787 = vpop.f32.mrb[0].mxu0
        %v4788 = vadd.f32 %v4321, %v4787
        %v4789 = vpop.f32.mrb[0].mxu0
        %v4790 = vpop.f32.mrb[0].mxu0
        %v4791 = vadd.f32 %v4324, %v4790
        %v4792 = vpop.f32.mrb[0].mxu0
        %4793 = vmatprep.mubr.bf16.mxu0 0
        %4794 = vmatmul.mubr.bf16.gmra.mrb[0].mxu0 %v2302
        %v4795 = vpop.f32.mrb[0].mxu0
        %v4796 = vadd.f32 %v4329, %v4795
        %v4797 = vpop.f32.mrb[0].mxu0
        %v4798 = vpop.f32.mrb[0].mxu0
        %v4799 = vadd.f32 %v4332, %v4798
        %v4800 = vpop.f32.mrb[0].mxu0
        %4801 = vmatprep.mubr.bf16.mxu0 0
        %4802 = vmatmul.mubr.bf16.gmra.mrb[0].mxu0 %v2305
        %v4803 = vpop.f32.mrb[0].mxu0
        %v4804 = vadd.f32 %v4337, %v4803
        %v4805 = vpop.f32.mrb[0].mxu0
        %v4806 = vpop.f32.mrb[0].mxu0
        %v4807 = vadd.f32 %v4340, %v4806
        %v4808 = vpop.f32.mrb[0].mxu0
        %4809 = vmatprep.mubr.bf16.mxu0 0
        %4810 = vmatmul.mubr.bf16.gmra.mrb[0].mxu0 %v2308
        %v4811 = vpop.f32.mrb[0].mxu0
        %v4812 = vadd.f32 %v4345, %v4811
        %v4813 = vpop.f32.mrb[0].mxu0
        %v4814 = vpop.f32.mrb[0].mxu0
        %v4815 = vadd.f32 %v4348, %v4814
        %v4816 = vpop.f32.mrb[0].mxu0
        %4817 = vmatprep.mubr.bf16.mxu0 0
        %4818 = vmatmul.mubr.bf16.gmra.mrb[0].mxu0 %v2311
        %v4819 = vpop.f32.mrb[0].mxu0
        %v4820 = vadd.f32 %v4353, %v4819
        %v4821 = vpop.f32.mrb[0].mxu0
        %v4822 = vpop.f32.mrb[0].mxu0
        %v4823 = vadd.f32 %v4356, %v4822
        %v4824 = vpop.f32.mrb[0].mxu0
        %4825 = vmatprep.mubr.bf16.mxu0 0
        %4826 = vmatmul.mubr.bf16.gmra.mrb[0].mxu0 %v2314
        %v4827 = vpop.f32.mrb[0].mxu0
        %v4828 = vadd.f32 %v4361, %v4827
        %v4829 = vpop.f32.mrb[0].mxu0
        %v4830 = vpop.f32.mrb[0].mxu0
        %v4831 = vadd.f32 %v4364, %v4830
        %v4832 = vpop.f32.mrb[0].mxu0
        %4833 = vmatprep.mubr.bf16.mxu0 0
        %4834 = vmatmul.mubr.bf16.gmra.mrb[0].mxu0 %v2317
        %v4835 = vpop.f32.mrb[0].mxu0
        %v4836 = vadd.f32 %v4369, %v4835
        %v4837 = vpop.f32.mrb[0].mxu0
        %v4838 = vpop.f32.mrb[0].mxu0
        %v4839 = vadd.f32 %v4372, %v4838
        %v4840 = vpop.f32.mrb[0].mxu0
        %4841 = vmatprep.mubr.bf16.mxu0 0
        %4842 = vmatmul.mubr.bf16.gmra.mrb[0].mxu0 %v2320
        %v4843 = vpop.f32.mrb[0].mxu0
        %v4844 = vadd.f32 %v4377, %v4843
        %v4845 = vpop.f32.mrb[0].mxu0
        %v4846 = vpop.f32.mrb[0].mxu0
        %v4847 = vadd.f32 %v4380, %v4846
        %v4848 = vpop.f32.mrb[0].mxu0
        %4849 = vmatprep.mubr.bf16.mxu0 0
        %4850 = vmatmul.mubr.bf16.gmra.mrb[0].mxu0 %v2323
        %v4851 = vpop.f32.mrb[0].mxu0
        %v4852 = vadd.f32 %v4385, %v4851
        %v4853 = vpop.f32.mrb[0].mxu0
        %v4854 = vpop.f32.mrb[0].mxu0
        %v4855 = vadd.f32 %v4388, %v4854
        %v4856 = vpop.f32.mrb[0].mxu0
        %4857 = vmatprep.mubr.bf16.mxu0 0
        %4858 = vmatmul.mubr.bf16.gmra.mrb[0].mxu0 %v2326
        %v4859 = vpop.f32.mrb[0].mxu0
        %v4860 = vadd.f32 %v4393, %v4859
        %v4861 = vpop.f32.mrb[0].mxu0
        %v4862 = vpop.f32.mrb[0].mxu0
        %v4863 = vadd.f32 %v4396, %v4862
        %v4864 = vpop.f32.mrb[0].mxu0
        %4865 = vmatprep.mubr.bf16.mxu0 0
        %4866 = vmatmul.mubr.bf16.gmra.mrb[0].mxu0 %v2329
        %v4867 = vpop.f32.mrb[0].mxu0
        %v4868 = vadd.f32 %v4401, %v4867
        %v4869 = vpop.f32.mrb[0].mxu0
        %v4870 = vpop.f32.mrb[0].mxu0
        %v4871 = vadd.f32 %v4404, %v4870
        %v4872 = vpop.f32.mrb[0].mxu0
        %4873 = vdwg.mxu0
        %v4874 = vadd.f32 %v3410, %v3439
        %v4875 = vadd.f32 %v3413, %v3445
        %v4876 = vadd.f32 %v3418, %v3449
        %v4877 = vadd.f32 %v3421, %v3455
        %v4878 = vadd.f32 %v3426, %v3459
        %v4879 = vadd.f32 %v3429, %v3465
        %v4880 = vadd.f32 %v3434, %v3469
        %v4881 = vadd.f32 %v3437, %v3475
        %v4882 = vadd.f32 %v3443, %v3479
        %v4883 = vadd.f32 %v3447, %v3485
        %v4884 = vadd.f32 %v3453, %v3489
        %v4885 = vadd.f32 %v3457, %v3495
        %v4886 = vadd.f32 %v3463, %v3499
        %v4887 = vadd.f32 %v3467, %v3505
        %v4888 = vadd.f32 %v3473, %v3509
        %v4889 = vadd.f32 %v3477, %v3515
        %v4890 = vadd.f32 %v3483, %v3519
        %v4891 = vadd.f32 %v3487, %v3525
        %v4892 = vadd.f32 %v3493, %v3529
        %v4893 = vadd.f32 %v3497, %v3535
        %v4894 = vadd.f32 %v3503, %v3539
        %v4895 = vadd.f32 %v3507, %v3545
        %v4896 = vadd.f32 %v3513, %v3549
        %v4897 = vadd.f32 %v3517, %v3555
        %v4898 = vadd.f32 %v3523, %v3559
        %v4899 = vadd.f32 %v3527, %v3565
        %v4900 = vadd.f32 %v3533, %v3569
        %v4901 = vadd.f32 %v3537, %v3575
        %v4902 = vadd.f32 %v3543, %v3579
        %v4903 = vadd.f32 %v3547, %v3585
        %v4904 = vadd.f32 %v3553, %v3589
        %v4905 = vadd.f32 %v3557, %v3595
        %v4906 = vadd.f32 %v3563, %v3599
        %v4907 = vadd.f32 %v3567, %v3605
        %v4908 = vadd.f32 %v3573, %v3609
        %v4909 = vadd.f32 %v3577, %v3615
        %v4910 = vadd.f32 %v3583, %v3619
        %v4911 = vadd.f32 %v3587, %v3625
        %v4912 = vadd.f32 %v3593, %v3629
        %v4913 = vadd.f32 %v3597, %v3635
        %v4914 = vadd.f32 %v3603, %v3639
        %v4915 = vadd.f32 %v3607, %v3645
        %v4916 = vadd.f32 %v3613, %v3649
        %v4917 = vadd.f32 %v3617, %v3655
        %v4918 = vadd.f32 %v3623, %v3659
        %v4919 = vadd.f32 %v3627, %v3665
        %v4920 = vadd.f32 %v3633, %v3669
        %v4921 = vadd.f32 %v3637, %v3675
        %v4922 = vadd.f32 %v3643, %v3679
        %v4923 = vadd.f32 %v3647, %v3685
        %v4924 = vadd.f32 %v3653, %v3689
        %v4925 = vadd.f32 %v3657, %v3695
        %v4926 = vadd.f32 %v3663, %v3699
        %v4927 = vadd.f32 %v3667, %v3705
        %v4928 = vadd.f32 %v3673, %v3709
        %v4929 = vadd.f32 %v3677, %v3715
        %v4930 = vadd.f32 %v3683, %v3719
        %v4931 = vadd.f32 %v3687, %v3725
        %v4932 = vadd.f32 %v3693, %v3729
        %v4933 = vadd.f32 %v3697, %v3735
        %v4934 = vadd.f32 %v3703, %v3739
        %v4935 = vadd.f32 %v3707, %v3745
        %v4936 = vadd.f32 %v3713, %v3749
        %v4937 = vadd.f32 %v3717, %v3755
        %v4938 = vadd.f32 %v3723, %v3759
        %v4939 = vadd.f32 %v3727, %v3765
        %v4940 = vadd.f32 %v3733, %v3769
        %v4941 = vadd.f32 %v3737, %v3775
        %v4942 = vadd.f32 %v3743, %v3779
        %v4943 = vadd.f32 %v3747, %v3785
        %v4944 = vadd.f32 %v3753, %v3789
        %v4945 = vadd.f32 %v3757, %v3795
        %v4946 = vadd.f32 %v3763, %v3799
        %v4947 = vadd.f32 %v3767, %v3805
        %v4948 = vadd.f32 %v3773, %v3809
        %v4949 = vadd.f32 %v3777, %v3815
        %v4950 = vadd.f32 %v3783, %v3819
        %v4951 = vadd.f32 %v3787, %v3825
        %v4952 = vadd.f32 %v3793, %v3829
        %v4953 = vadd.f32 %v3797, %v3835
        %v4954 = vadd.f32 %v3803, %v3839
        %v4955 = vadd.f32 %v3807, %v3845
        %v4956 = vadd.f32 %v3813, %v3849
        %v4957 = vadd.f32 %v3817, %v3855
        %v4958 = vadd.f32 %v3823, %v3859
        %v4959 = vadd.f32 %v3827, %v3865
        %v4960 = vadd.f32 %v3833, %v3869
        %v4961 = vadd.f32 %v3837, %v3875
        %v4962 = vadd.f32 %v3843, %v3879
        %v4963 = vadd.f32 %v3847, %v3885
        %v4964 = vadd.f32 %v3853, %v3889
        %v4965 = vadd.f32 %v3857, %v3894
        %v4966 = vadd.f32 %v3863, %v3897
        %v4967 = vadd.f32 %v3867, %v3902
        %v4968 = vadd.f32 %v3873, %v3905
        %v4969 = vadd.f32 %v3877, %v3910
        %v4970 = vadd.f32 %v3883, %v3913
        %v4971 = vadd.f32 %v3887, %v3918
        %v4972 = vadd.f32 %v4874, %v4484
        %v4973 = vadd.f32 %v4875, %v4487
        %v4974 = vadd.f32 %v4876, %v4492
        %v4975 = vadd.f32 %v4877, %v4495
        %v4976 = vadd.f32 %v4878, %v4500
        %v4977 = vadd.f32 %v4879, %v4503
        %v4978 = vadd.f32 %v4880, %v4508
        %v4979 = vadd.f32 %v4881, %v4511
        %v4980 = vadd.f32 %v4882, %v4516
        %v4981 = vadd.f32 %v4883, %v4519
        %v4982 = vadd.f32 %v4884, %v4524
        %v4983 = vadd.f32 %v4885, %v4527
        %v4984 = vadd.f32 %v4886, %v4532
        %v4985 = vadd.f32 %v4887, %v4535
        %v4986 = vadd.f32 %v4888, %v4540
        %v4987 = vadd.f32 %v4889, %v4543
        %v4988 = vadd.f32 %v4890, %v4548
        %v4989 = vadd.f32 %v4891, %v4551
        %v4990 = vadd.f32 %v4892, %v4556
        %v4991 = vadd.f32 %v4893, %v4559
        %v4992 = vadd.f32 %v4894, %v4564
        %v4993 = vadd.f32 %v4895, %v4567
        %v4994 = vadd.f32 %v4896, %v4572
        %v4995 = vadd.f32 %v4897, %v4575
        %v4996 = vadd.f32 %v4898, %v4580
        %v4997 = vadd.f32 %v4899, %v4583
        %v4998 = vadd.f32 %v4900, %v4588
        %v4999 = vadd.f32 %v4901, %v4591
        %v5000 = vadd.f32 %v4902, %v4596
        %v5001 = vadd.f32 %v4903, %v4599
        %v5002 = vadd.f32 %v4904, %v4604
        %v5003 = vadd.f32 %v4905, %v4607
        %v5004 = vadd.f32 %v4906, %v4612
        %v5005 = vadd.f32 %v4907, %v4615
        %v5006 = vadd.f32 %v4908, %v4620
        %v5007 = vadd.f32 %v4909, %v4623
        %v5008 = vadd.f32 %v4910, %v4628
        %v5009 = vadd.f32 %v4911, %v4631
        %v5010 = vadd.f32 %v4912, %v4636
        %v5011 = vadd.f32 %v4913, %v4639
        %v5012 = vadd.f32 %v4914, %v4644
        %v5013 = vadd.f32 %v4915, %v4647
        %v5014 = vadd.f32 %v4916, %v4652
        %v5015 = vadd.f32 %v4917, %v4655
        %v5016 = vadd.f32 %v4918, %v4660
        %v5017 = vadd.f32 %v4919, %v4663
        %v5018 = vadd.f32 %v4920, %v4668
        %v5019 = vadd.f32 %v4921, %v4671
        %v5020 = vadd.f32 %v4922, %v4676
        %v5021 = vadd.f32 %v4923, %v4679
        %v5022 = vadd.f32 %v4924, %v4684
        %v5023 = vadd.f32 %v4925, %v4687
        %v5024 = vadd.f32 %v4926, %v4692
        %v5025 = vadd.f32 %v4927, %v4695
        %v5026 = vadd.f32 %v4928, %v4700
        %v5027 = vadd.f32 %v4929, %v4703
        %v5028 = vadd.f32 %v4930, %v4708
        %v5029 = vadd.f32 %v4931, %v4711
        %v5030 = vadd.f32 %v4932, %v4716
        %v5031 = vadd.f32 %v4933, %v4719
        %v5032 = vadd.f32 %v4934, %v4724
        %v5033 = vadd.f32 %v4935, %v4727
        %v5034 = vadd.f32 %v4936, %v4732
        %v5035 = vadd.f32 %v4937, %v4735
        %v5036 = vadd.f32 %v4938, %v4740
        %v5037 = vadd.f32 %v4939, %v4743
        %v5038 = vadd.f32 %v4940, %v4748
        %v5039 = vadd.f32 %v4941, %v4751
        %v5040 = vadd.f32 %v4942, %v4756
        %v5041 = vadd.f32 %v4943, %v4759
        %v5042 = vadd.f32 %v4944, %v4764
        %v5043 = vadd.f32 %v4945, %v4767
        %v5044 = vadd.f32 %v4946, %v4772
        %v5045 = vadd.f32 %v4947, %v4775
        %v5046 = vadd.f32 %v4948, %v4780
        %v5047 = vadd.f32 %v4949, %v4783
        %v5048 = vadd.f32 %v4950, %v4788
        %v5049 = vadd.f32 %v4951, %v4791
        %v5050 = vadd.f32 %v4952, %v4796
        %v5051 = vadd.f32 %v4953, %v4799
        %v5052 = vadd.f32 %v4954, %v4804
        %v5053 = vadd.f32 %v4955, %v4807
        %v5054 = vadd.f32 %v4956, %v4812
        %v5055 = vadd.f32 %v4957, %v4815
        %v5056 = vadd.f32 %v4958, %v4820
        %v5057 = vadd.f32 %v4959, %v4823
        %v5058 = vadd.f32 %v4960, %v4828
        %v5059 = vadd.f32 %v4961, %v4831
        %v5060 = vadd.f32 %v4962, %v4836
        %v5061 = vadd.f32 %v4963, %v4839
        %v5062 = vadd.f32 %v4964, %v4844
        %v5063 = vadd.f32 %v4965, %v4847
        %v5064 = vadd.f32 %v4966, %v4852
        %v5065 = vadd.f32 %v4967, %v4855
        %v5066 = vadd.f32 %v4968, %v4860
        %v5067 = vadd.f32 %v4969, %v4863
        %v5068 = vadd.f32 %v4970, %v4868
        %v5069 = vadd.f32 %v4971, %v4871
        %5070 = vst [vmem:[%s121] sm:$0xff] %v4972
        %5071 = vst [vmem:[%s121 + $0x8] sm:$0xff] %v4973
        %5072 = vst [vmem:[%s121 + $0x10] sm:$0xff] %v4974
        %5073 = vst [vmem:[%s121 + $0x18] sm:$0xff] %v4975
        %5074 = vst [vmem:[%s121 + $0x20] sm:$0xff] %v4976
        %5075 = vst [vmem:[%s121 + $0x28] sm:$0xff] %v4977
        %5076 = vst [vmem:[%s121 + $0x30] sm:$0xff] %v4978
        %5077 = vst [vmem:[%s121 + $0x38] sm:$0xff] %v4979
        %5078 = vst [vmem:[%s121 + $0x40] sm:$0xff] %v4980
        %5079 = vst [vmem:[%s121 + $0x48] sm:$0xff] %v4981
        %5080 = vst [vmem:[%s121 + $0x50] sm:$0xff] %v4982
        %5081 = vst [vmem:[%s121 + $0x58] sm:$0xff] %v4983
        %5082 = vst [vmem:[%s121 + $0x60] sm:$0xff] %v4984
        %5083 = vst [vmem:[%s121 + $0x68] sm:$0xff] %v4985
        %5084 = vst [vmem:[%s121 + $0x70] sm:$0xff] %v4986
        %5085 = vst [vmem:[%s121 + $0x78] sm:$0xff] %v4987
        %5086 = vst [vmem:[%s121 + $0x80] sm:$0xff] %v4988
        %5087 = vst [vmem:[%s121 + $0x88] sm:$0xff] %v4989
        %5088 = vst [vmem:[%s121 + $0x90] sm:$0xff] %v4990
        %5089 = vst [vmem:[%s121 + $0x98] sm:$0xff] %v4991
        %5090 = vst [vmem:[%s121 + $0xa0] sm:$0xff] %v4992
        %5091 = vst [vmem:[%s121 + $0xa8] sm:$0xff] %v4993
        %5092 = vst [vmem:[%s121 + $0xb0] sm:$0xff] %v4994
        %5093 = vst [vmem:[%s121 + $0xb8] sm:$0xff] %v4995
        %5094 = vst [vmem:[%s121 + $0xc0] sm:$0xff] %v4996
        %5095 = vst [vmem:[%s121 + $0xc8] sm:$0xff] %v4997
        %5096 = vst [vmem:[%s121 + $0xd0] sm:$0xff] %v4998
        %5097 = vst [vmem:[%s121 + $0xd8] sm:$0xff] %v4999
        %5098 = vst [vmem:[%s121 + $0xe0] sm:$0xff] %v5000
        %5099 = vst [vmem:[%s121 + $0xe8] sm:$0xff] %v5001
        %5100 = vst [vmem:[%s121 + $0xf0] sm:$0xff] %v5002
        %5101 = vst [vmem:[%s121 + $0xf8] sm:$0xff] %v5003
        %5102 = vst [vmem:[%s121 + $0x100] sm:$0xff] %v5004
        %5103 = vst [vmem:[%s121 + $0x108] sm:$0xff] %v5005
        %5104 = vst [vmem:[%s121 + $0x110] sm:$0xff] %v5006
        %5105 = vst [vmem:[%s121 + $0x118] sm:$0xff] %v5007
        %5106 = vst [vmem:[%s121 + $0x120] sm:$0xff] %v5008
        %5107 = vst [vmem:[%s121 + $0x128] sm:$0xff] %v5009
        %5108 = vst [vmem:[%s121 + $0x130] sm:$0xff] %v5010
        %5109 = vst [vmem:[%s121 + $0x138] sm:$0xff] %v5011
        %5110 = vst [vmem:[%s121 + $0x140] sm:$0xff] %v5012
        %5111 = vst [vmem:[%s121 + $0x148] sm:$0xff] %v5013
        %5112 = vst [vmem:[%s121 + $0x150] sm:$0xff] %v5014
        %5113 = vst [vmem:[%s121 + $0x158] sm:$0xff] %v5015
        %5114 = vst [vmem:[%s121 + $0x160] sm:$0xff] %v5016
        %5115 = vst [vmem:[%s121 + $0x168] sm:$0xff] %v5017
        %5116 = vst [vmem:[%s121 + $0x170] sm:$0xff] %v5018
        %5117 = vst [vmem:[%s121 + $0x178] sm:$0xff] %v5019
        %5118 = vst [vmem:[%s121 + $0x180] sm:$0xff] %v5020
        %5119 = vst [vmem:[%s121 + $0x188] sm:$0xff] %v5021
        %5120 = vst [vmem:[%s121 + $0x190] sm:$0xff] %v5022
        %5121 = vst [vmem:[%s121 + $0x198] sm:$0xff] %v5023
        %5122 = vst [vmem:[%s121 + $0x1a0] sm:$0xff] %v5024
        %5123 = vst [vmem:[%s121 + $0x1a8] sm:$0xff] %v5025
        %5124 = vst [vmem:[%s121 + $0x1b0] sm:$0xff] %v5026
        %5125 = vst [vmem:[%s121 + $0x1b8] sm:$0xff] %v5027
        %5126 = vst [vmem:[%s121 + $0x1c0] sm:$0xff] %v5028
        %5127 = vst [vmem:[%s121 + $0x1c8] sm:$0xff] %v5029
        %5128 = vst [vmem:[%s121 + $0x1d0] sm:$0xff] %v5030
        %5129 = vst [vmem:[%s121 + $0x1d8] sm:$0xff] %v5031
        %5130 = vst [vmem:[%s121 + $0x1e0] sm:$0xff] %v5032
        %5131 = vst [vmem:[%s121 + $0x1e8] sm:$0xff] %v5033
        %5132 = vst [vmem:[%s121 + $0x1f0] sm:$0xff] %v5034
        %5133 = vst [vmem:[%s121 + $0x1f8] sm:$0xff] %v5035
        %5134 = vst [vmem:[%s121 + $0x200] sm:$0xff] %v5036
        %5135 = vst [vmem:[%s121 + $0x208] sm:$0xff] %v5037
        %5136 = vst [vmem:[%s121 + $0x210] sm:$0xff] %v5038
        %5137 = vst [vmem:[%s121 + $0x218] sm:$0xff] %v5039
        %5138 = vst [vmem:[%s121 + $0x220] sm:$0xff] %v5040
        %5139 = vst [vmem:[%s121 + $0x228] sm:$0xff] %v5041
        %5140 = vst [vmem:[%s121 + $0x230] sm:$0xff] %v5042
        %5141 = vst [vmem:[%s121 + $0x238] sm:$0xff] %v5043
        %5142 = vst [vmem:[%s121 + $0x240] sm:$0xff] %v5044
        %5143 = vst [vmem:[%s121 + $0x248] sm:$0xff] %v5045
        %5144 = vst [vmem:[%s121 + $0x250] sm:$0xff] %v5046
        %5145 = vst [vmem:[%s121 + $0x258] sm:$0xff] %v5047
        %5146 = vst [vmem:[%s121 + $0x260] sm:$0xff] %v5048
        %5147 = vst [vmem:[%s121 + $0x268] sm:$0xff] %v5049
        %5148 = vst [vmem:[%s121 + $0x270] sm:$0xff] %v5050
        %5149 = vst [vmem:[%s121 + $0x278] sm:$0xff] %v5051
        %5150 = vst [vmem:[%s121 + $0x280] sm:$0xff] %v5052
        %5151 = vst [vmem:[%s121 + $0x288] sm:$0xff] %v5053
        %5152 = vst [vmem:[%s121 + $0x290] sm:$0xff] %v5054
        %5153 = vst [vmem:[%s121 + $0x298] sm:$0xff] %v5055
        %5154 = vst [vmem:[%s121 + $0x2a0] sm:$0xff] %v5056
        %5155 = vst [vmem:[%s121 + $0x2a8] sm:$0xff] %v5057
        %5156 = vst [vmem:[%s121 + $0x2b0] sm:$0xff] %v5058
        %5157 = vst [vmem:[%s121 + $0x2b8] sm:$0xff] %v5059
        %5158 = vst [vmem:[%s121 + $0x2c0] sm:$0xff] %v5060
        %5159 = vst [vmem:[%s121 + $0x2c8] sm:$0xff] %v5061
        %5160 = vst [vmem:[%s121 + $0x2d0] sm:$0xff] %v5062
        %5161 = vst [vmem:[%s121 + $0x2d8] sm:$0xff] %v5063
        %5162 = vst [vmem:[%s121 + $0x2e0] sm:$0xff] %v5064
        %5163 = vst [vmem:[%s121 + $0x2e8] sm:$0xff] %v5065
        %5164 = vst [vmem:[%s121 + $0x2f0] sm:$0xff] %v5066
        %5165 = vst [vmem:[%s121 + $0x2f8] sm:$0xff] %v5067
        %5166 = vst [vmem:[%s121 + $0x300] sm:$0xff] %v5068
        %5167 = vst [vmem:[%s121 + $0x308] sm:$0xff] %v5069
        %s5168 = sand.u32 %s66, 1
        %s5169 = scalar_lea.sflag [#allocation4], %s5168
        %s5170 = sand.u32 %s66, 1
        %s5171 = smul.addr %s5170, 784
        %s5172 = scalar_lea.vmem [#allocation3], %s5171
        // Predicated region
        $region29: #{relu_conv2d.1} parent=27 // pred_check
          %p5173 = pneg %p76
        $region30: #{relu_conv2d.1} parent=27 // pred_check_branch
          %5175 = sbr.rel (%p5173) target = $region32
        $region31: #{relu_conv2d.1} parent=27 // pred_region
          %s5176 = smul.u32 14, %s16
          %s5178 = ssub.s32 12544, 12544
          %5179 = vsyncadd %s5169, %s5178
          %s5180 = smul.addr %s5176, 7
          %s5181 = smul.addr %s5180, 128
          %s5182 = scalar_lea.hbm %s2, %s5181
          %s5183 = sshll.u32 %s5172, 4
          %s5184 = int_to_ptr.vmem [resolvable:$true] %s5183
          %5189 = dma.vmem_to_hbm [thread:$0]  %s5184, 12544, %s5182, %s5169, 128, 128, 8
        $region32: #{relu_conv2d.1} parent=27 // pred_fallthru
          _
      $region28: #{relu_conv2d.1} parent=5 // pred_fallthru
        _
      %p5190 = scmp.le.s32.totalorder 2, %s11
      // Predicated region
      $region33: #{relu_conv2d.1} parent=5 // pred_check
        %p5191 = pneg %p5190
      $region34: #{relu_conv2d.1} parent=5 // pred_check_branch
        %5193 = sbr.rel (%p5191) target = $region36
      $region35: #{relu_conv2d.1} parent=5 // pred_region
        %s5194 = ssub.s32 %s11, 2
        // Predicated region
        $region37: #{relu_conv2d.1} parent=35 // pred_check
          %p5195 = pneg %p82
        $region38: #{relu_conv2d.1} parent=35 // pred_check_branch
          %5197 = sbr.rel (%p5195) target = $region40
        $region39: #{relu_conv2d.1} parent=35 // pred_region
          %s5198 = sand.u32 %s67, 1
          %s5199 = scalar_lea.sflag [#allocation4], %s5198
          %s5200 = sand.u32 %s67, 1
          %s5201 = smul.addr %s5200, 784
          %s5202 = scalar_lea.vmem [#allocation3], %s5201
          %5203 = dma.done %s5199, 12544
        $region40: #{relu_conv2d.1} parent=35 // pred_fallthru
          _
      $region36: #{relu_conv2d.1} parent=5 // pred_fallthru
        _
    $region6: #{relu_conv2d.1} parent=1 // loop_footer
      %s15 = sadd.s32 1, %s11
    $region7: #{relu_conv2d.1} parent=1 // loop_footer_branch
      %10 = sbr.rel target = $region3
    $region8: #{relu_conv2d.1} parent=1 // loop_exit
      _
    %5204 = vsyncpa [#allocation4], 1
    %s5205 = scalar_lea.sflag [#allocation4], 1
    %5206 = vsyncpa %s5205, 1

</llo_original>
